<compile_context>
chip_gen: v7x
topology: tpu7x:2x2x1
jax: 0.10.0
libtpu: 0.0.40
codegen_flags: <defaults>
</compile_context>

<pallas_src>
import functools

import jax
import jax.numpy as jnp
import numpy as np
from jax.experimental import pallas as pl
from jax.experimental.pallas import tpu as pltpu

NEG_SLOPE = 0.2
BN_EPS = 1e-5
_LANES = 128


def _query_vmem_limit():
    # Generation-aware scoped-VMEM cap: ~85% of physical (v5e/v6e: 128 MiB,
    # v7x: 64 MiB per TensorCore), clipped to a value XLA always accepts.
    try:
        cap = int(pltpu.get_tpu_info().vmem_capacity_bytes)
        return min(int(cap * 0.85), 112 * 1024 * 1024)
    except Exception:           # conservative fallback if the query fails
        return 32 * 1024 * 1024


_VMEM_LIMIT = _query_vmem_limit()
# ~rows of (Wo, Cpad) output produced per grid step; big tiles amortize the
# ~0.35us per-step overhead.  Scaled down when VMEM is small (v7x).
_TARGET_ROWS = 1024 if _VMEM_LIMIT >= 48 * 1024 * 1024 else 512


# ----------------------------- Pallas kernels ------------------------------ #

def _conv_bias_kernel(x_ref, w_ref, b_ref, o_ref, *, k, th, wo, act):
    """Implicit-GEMM conv (+bias, optional LeakyReLU) for one output-row tile.

    x_ref: (1, Hin, Win, Ce)  resident padded (+space-to-depth) input, bf16
    w_ref: (k, k*Ce, Cpad)    resident weights, width taps folded into K, bf16
    b_ref: (1, Cpad)          resident bias, f32
    o_ref: (1, th, wo, Cpad)  output tile (bf16 or f32)
    """
    ho0 = pl.program_id(1) * th
    ce = x_ref.shape[-1]
    cpad = o_ref.shape[-1]
    acc = jnp.zeros((th * wo, cpad), jnp.float32)
    # k dots per tile: M = th*wo, K = k*Ce, N = Cpad.  Folding width taps into
    # K keeps K MXU-friendly on all generations (full k*k fold only helps the
    # 256-deep MXUs and multiplies the in-kernel gather copies).
    for a in range(k):
        xa = jnp.concatenate(
            [x_ref[0, pl.ds(ho0 + a, th), pl.ds(bw, wo), :] for bw in range(k)],
            axis=-1).reshape(th * wo, k * ce)
        acc = acc + jnp.dot(xa, w_ref[a], preferred_element_type=jnp.float32)
    y = acc + b_ref[...]
    if act:
        y = jnp.where(y >= 0, y, NEG_SLOPE * y)
    o_ref[0] = y.reshape(th, wo, cpad).astype(o_ref.dtype)


def _conv_stats_kernel(x_ref, w_ref, o_ref, s_ref, *, k, th, wo, ho_valid,
                       mask_rows):
    """BN pass 1: implicit-GEMM conv (no bias) -> bf16 y + f32 per-tile stats."""
    ho0 = pl.program_id(1) * th
    ce = x_ref.shape[-1]
    cpad = o_ref.shape[-1]
    acc = jnp.zeros((th * wo, cpad), jnp.float32)
    for a in range(k):
        xa = jnp.concatenate(
            [x_ref[0, pl.ds(ho0 + a, th), pl.ds(bw, wo), :] for bw in range(k)],
            axis=-1).reshape(th * wo, k * ce)
        acc = acc + jnp.dot(xa, w_ref[a], preferred_element_type=jnp.float32)
    # bf16 intermediate halves the HBM write/read of the (dominant) conv output.
    o_ref[0] = acc.reshape(th, wo, cpad).astype(o_ref.dtype)
    if mask_rows:
        # Rows >= ho_valid are zero-padding artifacts of the ragged last tile;
        # drop them from the batch statistics.
        row = ho0 + jax.lax.broadcasted_iota(jnp.int32, (th * wo, 1), 0) // wo
        accm = jnp.where(row < ho_valid, acc, 0.0)
    else:
        accm = acc
    s_ref[0, 0] = jnp.concatenate(
        [jnp.sum(accm, axis=0, keepdims=True),
         jnp.sum(accm * acc, axis=0, keepdims=True)], axis=0)


def _bn_act_kernel(y_ref, sc_ref, sh_ref, o_ref):
    """BN pass 2 (whole-block): y*scale + shift, LeakyReLU(0.2), bf16 out."""
    y = y_ref[0].astype(jnp.float32) * sc_ref[...] + sh_ref[...]
    o_ref[0] = jnp.where(y >= 0, y, NEG_SLOPE * y).astype(o_ref.dtype)


# ------------------------------- glue (JAX) -------------------------------- #

def _cpad(c):
    return -(-c // _LANES) * _LANES


def _pick_th(ho, wo):
    """Row-tile height: ~_TARGET_ROWS output rows per step; no divisibility."""
    return max(1, min(ho, _TARGET_ROWS // max(wo, 1)))


def _pick_div_th(ho, wo):
    """Largest divisor of ho within the row budget (for the BN epilogue pass,
    whose input height is already a multiple of the pass-1 tile)."""
    cap = max(1, _TARGET_ROWS // max(wo, 1))
    best = 1
    for d in range(1, ho + 1):
        if ho % d == 0 and d <= cap:
            best = d
    return best


def _conv_call(x_pad, w_taps, vec, *, k, kind):
    """One implicit-GEMM conv layer (effective stride 1).

    x_pad:  (N, Ho+k-1, Wo+k-1, Ce) bf16 (already spatially padded / s2d'ed)
    w_taps: (k, k*Ce, Cpad) bf16
    kind: "bias_lrelu" -> bf16 [N, Hop, Wo, Cpad]
          "bias"       -> f32  [N, Hop, Wo, Cpad]
          "bn_stats"   -> (bf16 y [N, Hop, Wo, Cpad], f32 stats [N, nt, 2, Cpad])
    Hop = nt*th >= Ho; callers slice rows back to Ho.
    """
    N, Hin, Win, Ce = x_pad.shape
    _, Kdim, Cpad = w_taps.shape
    Ho, Wo = Hin - k + 1, Win - k + 1
    th = _pick_th(Ho, Wo)
    nt = pl.cdiv(Ho, th)
    Hop = nt * th
    if Hop > Ho:
        # Ragged last row-tile: zero-pad input rows so all tiles stay large;
        # the extra output rows are sliced off by the caller and masked out of
        # the BN statistics in-kernel.
        x_pad = jnp.pad(x_pad, ((0, 0), (0, Hop - Ho), (0, 0), (0, 0)))
        Hin = Hop + k - 1
    grid = (N, nt)

    x_block = (1, Hin, Win, Ce)
    x_bytes = int(np.prod(x_block)) * x_pad.dtype.itemsize
    if 2 * x_bytes > _VMEM_LIMIT // 3:
        # v7x (64 MiB/TC): don't double-buffer the large resident input block.
        x_spec = pl.BlockSpec(x_block, lambda n, t: (n, 0, 0, 0),
                              pipeline_mode=pl.Buffered(1))
    else:
        x_spec = pl.BlockSpec(x_block, lambda n, t: (n, 0, 0, 0))
    w_spec = pl.BlockSpec((k, Kdim, Cpad), lambda n, t: (0, 0, 0))
    v_spec = pl.BlockSpec((1, Cpad), lambda n, t: (0, 0))
    o_spec = pl.BlockSpec((1, th, Wo, Cpad), lambda n, t: (n, t, 0, 0))

    flops = 2 * N * Hop * Wo * (k * Kdim) * Cpad
    cp = pltpu.CompilerParams(
        dimension_semantics=("parallel", "parallel"),
        vmem_limit_bytes=_VMEM_LIMIT)

    if kind == "bn_stats":
        out_bytes = N * Hop * Wo * Cpad * 2 + N * nt * 2 * Cpad * 4
        ce_est = pl.CostEstimate(
            flops=flops, transcendentals=0,
            bytes_accessed=x_pad.size * 2 + w_taps.size * 2 + out_bytes)
        return pl.pallas_call(
            functools.partial(_conv_stats_kernel, k=k, th=th, wo=Wo,
                              ho_valid=Ho, mask_rows=Hop > Ho),
            grid=grid,
            in_specs=[x_spec, w_spec],
            out_specs=(o_spec,
                       pl.BlockSpec((1, 1, 2, Cpad), lambda n, t: (n, t, 0, 0))),
            out_shape=(jax.ShapeDtypeStruct((N, Hop, Wo, Cpad), jnp.bfloat16),
                       jax.ShapeDtypeStruct((N, nt, 2, Cpad), jnp.float32)),
            compiler_params=cp,
            cost_estimate=ce_est,
        )(x_pad, w_taps)

    act = kind == "bias_lrelu"
    out_dtype = jnp.bfloat16 if act else jnp.float32
    out_bytes = N * Hop * Wo * Cpad * (2 if act else 4)
    ce_est = pl.CostEstimate(
        flops=flops, transcendentals=0,
        bytes_accessed=x_pad.size * 2 + w_taps.size * 2 + Cpad * 4 + out_bytes)
    return pl.pallas_call(
        functools.partial(_conv_bias_kernel, k=k, th=th, wo=Wo, act=act),
        grid=grid,
        in_specs=[x_spec, w_spec, v_spec],
        out_specs=o_spec,
        out_shape=jax.ShapeDtypeStruct((N, Hop, Wo, Cpad), out_dtype),
        compiler_params=cp,
        cost_estimate=ce_est,
    )(x_pad, w_taps, vec)


def _bn_act_call(y, scale, shift):
    N, Hop, Wo, Cpad = y.shape
    th = _pick_div_th(Hop, Wo)
    nt = Hop // th
    blk = pl.BlockSpec((1, th, Wo, Cpad), lambda n, t: (n, t, 0, 0))
    v_spec = pl.BlockSpec((1, Cpad), lambda n, t: (0, 0))
    ce_est = pl.CostEstimate(flops=3 * y.size, transcendentals=0,
                             bytes_accessed=y.size * 2 + y.size * 2 + 8 * Cpad)
    return pl.pallas_call(
        _bn_act_kernel,
        grid=(N, nt),
        in_specs=[blk, v_spec, v_spec],
        out_specs=blk,
        out_shape=jax.ShapeDtypeStruct((N, Hop, Wo, Cpad), jnp.bfloat16),
        compiler_params=pltpu.CompilerParams(
            dimension_semantics=("parallel", "parallel"),
            vmem_limit_bytes=_VMEM_LIMIT),
        cost_estimate=ce_est,
    )(y, scale, shift)


# -------- weight / activation prep (XLA side; activation-sized only) -------- #

def _space_to_depth2(xp):
    N, Hp, Wp, C = xp.shape
    x = xp.reshape(N, Hp // 2, 2, Wp // 2, 2, C)
    x = jnp.transpose(x, (0, 1, 3, 2, 4, 5))
    return x.reshape(N, Hp // 2, Wp // 2, 4 * C)


def _prep_w_s2(w_oihw, cpad):
    # 4x4/stride-2 conv == 2x2/stride-1 conv over space-to-depth(2) input, with
    # the two width taps folded into the contraction dim:
    #   out[ho,wo] = sum_a  xcat_a[ho,wo] @ W'[a],
    #   xcat_a[ho,wo] = concat_b xs[ho+a, wo+b]                 (len 2*4*Cin)
    #   W'[a][(b*4 + p*2 + q)*Cin + c, co] = W[co, c, 2a+p, 2b+q]
    cout, cin, _, _ = w_oihw.shape
    w = w_oihw.reshape(cout, cin, 2, 2, 2, 2)            # [co, c, a, p, b, q]
    w = jnp.transpose(w, (2, 4, 3, 5, 1, 0))             # [a, b, p, q, c, co]
    w = w.reshape(2, 2 * 4 * cin, cout)                  # [a, (b,p,q,c), co]
    return jnp.pad(w, ((0, 0), (0, 0), (0, cpad - cout))).astype(jnp.bfloat16)


def _prep_w_s1(w_oihw, cpad):
    # k x k stride-1 conv with the k width taps folded into K:
    #   W'[a][b*Cin + c, co] = W[co, c, a, b]
    cout, cin, kh, kw = w_oihw.shape
    w = jnp.transpose(w_oihw, (2, 3, 1, 0)).reshape(kh, kw * cin, cout)
    return jnp.pad(w, ((0, 0), (0, 0), (0, cpad - cout))).astype(jnp.bfloat16)


def _pad_vec(v, cpad):
    v = v.reshape(1, -1).astype(jnp.float32)
    return jnp.pad(v, ((0, 0), (0, cpad - v.shape[1])))


# ------------------------------- conv layers -------------------------------- #

def _conv4x4_s2_layer(x_nhwc, w_oihw, *, bias=None, bn=None):
    """Conv2d(k=4, s=2, p=1) + {bias+LeakyReLU | BatchNorm+LeakyReLU}."""
    N, H, W, Cin = x_nhwc.shape
    assert H % 2 == 0 and W % 2 == 0, "even spatial dims required"
    # TODO(synk): odd spatial sizes would need an extra masked output row/col.
    Ho, Wo = H // 2, W // 2
    cout = w_oihw.shape[0]
    cpad = _cpad(cout)
    # TODO(synk): this pad + space-to-depth + cast (and the [..., :cout] slice
    # below) is still ~one activation-sized XLA round trip per layer; the next
    # step would be emitting the following layer's space-to-depth layout
    # directly from the epilogue kernels via out_specs.
    xp = jnp.pad(x_nhwc, ((0, 0), (1, 1), (1, 1), (0, 0)))
    xs = _space_to_depth2(xp).astype(jnp.bfloat16)
    w_taps = _prep_w_s2(w_oihw, cpad)

    if bn is None:
        out = _conv_call(xs, w_taps, _pad_vec(bias, cpad), k=2, kind="bias_lrelu")
        return out[:, :Ho, :, :cout]

    gamma, beta = bn
    y, stats = _conv_call(xs, w_taps, None, k=2, kind="bn_stats")
    count = jnp.float32(N * Ho * Wo)
    ssum = jnp.sum(stats[:, :, 0, :], axis=(0, 1))
    ssq = jnp.sum(stats[:, :, 1, :], axis=(0, 1))
    mean = ssum / count
    # Biased batch variance via E[x^2]-E[x]^2 in f32 (clamped); adequate at the
    # activation scales of this net — switch to shifted sums if means grow.
    var = jnp.maximum(ssq / count - mean * mean, 0.0)
    g = _pad_vec(gamma, cpad)
    b = _pad_vec(beta, cpad)
    scale = g * jax.lax.rsqrt(var + BN_EPS)[None, :]
    shift = b - mean[None, :] * scale
    # TODO(synk): running_mean/var (eval-mode BN) are training-time state and
    # are not modeled; this matches training-mode batch statistics.
    out = _bn_act_call(y, scale, shift)
    return out[:, :Ho, :, :cout]


def _conv4x4_s1_layer(x_nhwc, w_oihw, bias):
    """Final Conv2d(k=4, s=1, p=1) + bias."""
    N, H, W, _ = x_nhwc.shape
    Ho, Wo = H - 1, W - 1
    cout = w_oihw.shape[0]
    cpad = _cpad(cout)
    # TODO(synk): cout=1 still pads the store lanes to 128; a narrow masked
    # output block would trim the (tiny) final-layer HBM write further.
    xp = jnp.pad(x_nhwc, ((0, 0), (1, 1), (1, 1), (0, 0))).astype(jnp.bfloat16)
    w_taps = _prep_w_s1(w_oihw, cpad)
    out = _conv_call(xp, w_taps, _pad_vec(bias, cpad), k=4, kind="bias")
    return out[:, :Ho, :, :cout]


# --------------------------- model: params + fwd ---------------------------- #

def init_params(key, in_c, ndf=16, n_layers=3):
    ks = jax.random.split(key, 4 * n_layers + 4)
    p = {}
    p["w0"] = 0.05 * jax.random.normal(ks[0], (ndf, in_c, 4, 4), jnp.float32)
    p["b0"] = 0.05 * jax.random.normal(ks[1], (ndf,), jnp.float32)
    nf_mult = 1
    for n in range(1, n_layers):
        nf_prev, nf_mult = nf_mult, min(2 ** n, 8)
        p[f"w{n}"] = 0.05 * jax.random.normal(
            ks[4 * n], (ndf * nf_mult, ndf * nf_prev, 4, 4), jnp.float32)
        p[f"gamma{n}"] = 1.0 + 0.1 * jax.random.normal(
            ks[4 * n + 1], (ndf * nf_mult,), jnp.float32)
        p[f"beta{n}"] = 0.1 * jax.random.normal(
            ks[4 * n + 2], (ndf * nf_mult,), jnp.float32)
    p["wf"] = 0.05 * jax.random.normal(ks[-2], (1, ndf * nf_mult, 4, 4),
                                       jnp.float32)
    p["bf"] = 0.05 * jax.random.normal(ks[-1], (1,), jnp.float32)
    return p


@functools.partial(jax.jit, static_argnames=("n_layers",))
def patchgan_forward(x_nchw, params, n_layers=3):
    x = jnp.transpose(x_nchw, (0, 2, 3, 1))              # NCHW -> NHWC
    x = _conv4x4_s2_layer(x, params["w0"], bias=params["b0"])
    for n in range(1, n_layers):
        x = _conv4x4_s2_layer(x, params[f"w{n}"],
                              bn=(params[f"gamma{n}"], params[f"beta{n}"]))
    x = _conv4x4_s1_layer(x, params["wf"], params["bf"])
    return jnp.transpose(x, (0, 3, 1, 2))                # NHWC -> NCHW


# Pure-JAX reference (lax.conv, f32) for correctness check.
def ref_forward(x, params, n_layers=3):
    hi = jax.lax.Precision.HIGHEST

    def conv(x, w, stride, pad, b=None):
        y = jax.lax.conv_general_dilated(
            x, w, (stride, stride), [(pad, pad), (pad, pad)],
            dimension_numbers=("NCHW", "OIHW", "NCHW"), precision=hi)
        return y if b is None else y + b[None, :, None, None]

    def lrelu(y):
        return jnp.where(y >= 0, y, NEG_SLOPE * y)

    def bn(y, g, b):
        mean = jnp.mean(y, axis=(0, 2, 3), keepdims=True)
        var = jnp.mean((y - mean) ** 2, axis=(0, 2, 3), keepdims=True)
        yn = (y - mean) / jnp.sqrt(var + BN_EPS)
        return yn * g[None, :, None, None] + b[None, :, None, None]

    y = lrelu(conv(x, params["w0"], 2, 1, params["b0"]))
    for n in range(1, n_layers):
        y = lrelu(bn(conv(y, params[f"w{n}"], 2, 1),
                     params[f"gamma{n}"], params[f"beta{n}"]))
    return conv(y, params["wf"], 1, 1, params["bf"])


if __name__ == "__main__":
    key = jax.random.PRNGKey(0)
    kx, kp = jax.random.split(key)
    in_c, ndf, n_layers = 4, 16, 3
    x = jax.random.normal(kx, (2, in_c, 16, 16), jnp.float32)  # NCHW
    params = init_params(kp, in_c, ndf, n_layers)

    out = patchgan_forward(x, params, n_layers=n_layers)
    out = jax.block_until_ready(out)
    assert out.shape == (2, 1, 1, 1), out.shape

    ref = jax.block_until_ready(ref_forward(x, params, n_layers))
    # bf16 MXU inputs + bf16 BN intermediate (f32 accumulation / stats) ->
    # relaxed tolerance vs the f32 reference.
    np.testing.assert_allclose(np.asarray(out, np.float32), np.asarray(ref),
                               rtol=4e-2, atol=4e-2)
    print("KERNEL_OK")
</pallas_src>

<mosaic_0001>
module attributes {stable_mosaic.version = 11 : i64} {
  func.func @_conv_bias_kernel(%arg0: i32, %arg1: i32, %arg2: memref<1x9x9x16xbf16, #tpu.memory_space<vmem>>, %arg3: memref<2x32x128xbf16, #tpu.memory_space<vmem>>, %arg4: memref<1x128xf32, #tpu.memory_space<vmem>>, %arg5: memref<1x8x8x128xbf16, #tpu.memory_space<vmem>>) attributes {dimension_semantics = [#tpu.dimension_semantics<parallel>, #tpu.dimension_semantics<parallel>], iteration_bounds = array<i64: 2, 1>, scalar_prefetch = 0 : i64, scratch_operands = 0 : i64, tpu.core_type = #tpu.core_type<tc>, window_params = [{transform_indices = @transform_0, window_bounds = array<i64: 1, 9, 9, 16>}, {pipeline_mode = #tpu.pipeline_mode<synchronous>, transform_indices = @transform_1, window_bounds = array<i64: 2, 32, 128>}, {pipeline_mode = #tpu.pipeline_mode<synchronous>, transform_indices = @transform_2, window_bounds = array<i64: 1, 128>}, {transform_indices = @transform_3, window_bounds = array<i64: 1, 8, 8, 128>}]} {
    %c8_i32 = arith.constant 8 : i32
    %0 = arith.muli %arg1, %c8_i32 : i32
    %cst = arith.constant 0.000000e+00 : f32
    %1 = vector.broadcast %cst : f32 to vector<64x128xf32>
    %c0_i32 = arith.constant 0 : i32
    %2 = arith.addi %0, %c0_i32 : i32
    %c0 = arith.constant 0 : index
    %3 = arith.index_cast %2 : i32 to index
    %c0_0 = arith.constant 0 : index
    %c0_1 = arith.constant 0 : index
    %4 = vector.load %arg2[%c0, %3, %c0_0, %c0_1] : memref<1x9x9x16xbf16, #tpu.memory_space<vmem>>, vector<1x8x8x16xbf16>
    %5 = vector.shape_cast %4 : vector<1x8x8x16xbf16> to vector<8x8x16xbf16>
    %c0_i32_2 = arith.constant 0 : i32
    %6 = arith.addi %0, %c0_i32_2 : i32
    %c0_3 = arith.constant 0 : index
    %7 = arith.index_cast %6 : i32 to index
    %c1 = arith.constant 1 : index
    %c0_4 = arith.constant 0 : index
    %8 = vector.load %arg2[%c0_3, %7, %c1, %c0_4] : memref<1x9x9x16xbf16, #tpu.memory_space<vmem>>, vector<1x8x8x16xbf16>
    %9 = vector.shape_cast %8 : vector<1x8x8x16xbf16> to vector<8x8x16xbf16>
    %10 = tpu.concatenate %5, %9 in 2 : vector<8x8x16xbf16>, vector<8x8x16xbf16> -> vector<8x8x32xbf16>
    %11 = vector.shape_cast %10 : vector<8x8x32xbf16> to vector<64x32xbf16>
    %c0_5 = arith.constant 0 : index
    %c0_6 = arith.constant 0 : index
    %c0_7 = arith.constant 0 : index
    %12 = vector.load %arg3[%c0_5, %c0_6, %c0_7] : memref<2x32x128xbf16, #tpu.memory_space<vmem>>, vector<1x32x128xbf16>
    %13 = vector.shape_cast %12 : vector<1x32x128xbf16> to vector<32x128xbf16>
    %cst_8 = arith.constant dense<0.000000e+00> : vector<64x128xf32>
    %14 = tpu.matmul %11, %13, %cst_8 {dimension_numbers = #tpu.dot_dimension_numbers<[1], [0], [0], [1], [0, 0, 1, 1], [], []>} : vector<64x32xbf16>, vector<32x128xbf16>, vector<64x128xf32> -> vector<64x128xf32>
    %15 = arith.addf %1, %14 : vector<64x128xf32>
    %c1_i32 = arith.constant 1 : i32
    %16 = arith.addi %0, %c1_i32 : i32
    %c0_9 = arith.constant 0 : index
    %17 = arith.index_cast %16 : i32 to index
    %c0_10 = arith.constant 0 : index
    %c0_11 = arith.constant 0 : index
    %18 = vector.load %arg2[%c0_9, %17, %c0_10, %c0_11] : memref<1x9x9x16xbf16, #tpu.memory_space<vmem>>, vector<1x8x8x16xbf16>
    %19 = vector.shape_cast %18 : vector<1x8x8x16xbf16> to vector<8x8x16xbf16>
    %c1_i32_12 = arith.constant 1 : i32
    %20 = arith.addi %0, %c1_i32_12 : i32
    %c0_13 = arith.constant 0 : index
    %21 = arith.index_cast %20 : i32 to index
    %c1_14 = arith.constant 1 : index
    %c0_15 = arith.constant 0 : index
    %22 = vector.load %arg2[%c0_13, %21, %c1_14, %c0_15] : memref<1x9x9x16xbf16, #tpu.memory_space<vmem>>, vector<1x8x8x16xbf16>
    %23 = vector.shape_cast %22 : vector<1x8x8x16xbf16> to vector<8x8x16xbf16>
    %24 = tpu.concatenate %19, %23 in 2 : vector<8x8x16xbf16>, vector<8x8x16xbf16> -> vector<8x8x32xbf16>
    %25 = vector.shape_cast %24 : vector<8x8x32xbf16> to vector<64x32xbf16>
    %c1_16 = arith.constant 1 : index
    %c0_17 = arith.constant 0 : index
    %c0_18 = arith.constant 0 : index
    %26 = vector.load %arg3[%c1_16, %c0_17, %c0_18] : memref<2x32x128xbf16, #tpu.memory_space<vmem>>, vector<1x32x128xbf16>
    %27 = vector.shape_cast %26 : vector<1x32x128xbf16> to vector<32x128xbf16>
    %cst_19 = arith.constant dense<0.000000e+00> : vector<64x128xf32>
    %28 = tpu.matmul %25, %27, %cst_19 {dimension_numbers = #tpu.dot_dimension_numbers<[1], [0], [0], [1], [0, 0, 1, 1], [], []>} : vector<64x32xbf16>, vector<32x128xbf16>, vector<64x128xf32> -> vector<64x128xf32>
    %29 = arith.addf %15, %28 : vector<64x128xf32>
    %c0_20 = arith.constant 0 : index
    %c0_21 = arith.constant 0 : index
    %30 = vector.load %arg4[%c0_20, %c0_21] : memref<1x128xf32, #tpu.memory_space<vmem>>, vector<1x128xf32>
    %31 = vector.broadcast %30 : vector<1x128xf32> to vector<64x128xf32>
    %32 = arith.addf %29, %31 : vector<64x128xf32>
    %cst_22 = arith.constant 0.000000e+00 : f32
    %33 = vector.broadcast %cst_22 : f32 to vector<64x128xf32>
    %34 = arith.cmpf oge, %32, %33 : vector<64x128xf32>
    %cst_23 = arith.constant 2.000000e-01 : f32
    %35 = vector.broadcast %cst_23 : f32 to vector<64x128xf32>
    %36 = arith.mulf %35, %32 : vector<64x128xf32>
    %37 = arith.select %34, %32, %36 : vector<64x128xi1>, vector<64x128xf32>
    %38 = vector.shape_cast %37 : vector<64x128xf32> to vector<8x8x128xf32>
    %39 = arith.truncf %38 : vector<8x8x128xf32> to vector<8x8x128xbf16>
    %c0_24 = arith.constant 0 : index
    %c0_25 = arith.constant 0 : index
    %c0_26 = arith.constant 0 : index
    %c0_27 = arith.constant 0 : index
    %40 = vector.load %arg5[%c0_24, %c0_25, %c0_26, %c0_27] : memref<1x8x8x128xbf16, #tpu.memory_space<vmem>>, vector<1x8x8x128xbf16>
    %41 = vector.shape_cast %40 : vector<1x8x8x128xbf16> to vector<8x8x128xbf16>
    %42 = vector.shape_cast %39 : vector<8x8x128xbf16> to vector<1x8x8x128xbf16>
    tpu.vector_store %arg5[%c0_24, %c0_25, %c0_26, %c0_27], %42 {strides = array<i32>} : memref<1x8x8x128xbf16, #tpu.memory_space<vmem>>, vector<1x8x8x128xbf16>,
    return
  }
  func.func @transform_0(%arg0: i32, %arg1: i32) -> (i32, i32, i32, i32) {
    %c0_i32 = arith.constant 0 : i32
    %c0_i32_0 = arith.constant 0 : i32
    %c0_i32_1 = arith.constant 0 : i32
    %c0_i32_2 = arith.constant 0 : i32
    return %arg0, %c0_i32, %c0_i32_0, %c0_i32_1 : i32, i32, i32, i32
  }
  func.func @transform_1(%arg0: i32, %arg1: i32) -> (i32, i32, i32) {
    %c0_i32 = arith.constant 0 : i32
    %c0_i32_0 = arith.constant 0 : i32
    %c0_i32_1 = arith.constant 0 : i32
    %c0_i32_2 = arith.constant 0 : i32
    return %c0_i32, %c0_i32_0, %c0_i32_1 : i32, i32, i32
  }
  func.func @transform_2(%arg0: i32, %arg1: i32) -> (i32, i32) {
    %c0_i32 = arith.constant 0 : i32
    %c0_i32_0 = arith.constant 0 : i32
    %c0_i32_1 = arith.constant 0 : i32
    return %c0_i32, %c0_i32_0 : i32, i32
  }
  func.func @transform_3(%arg0: i32, %arg1: i32) -> (i32, i32, i32, i32) {
    %c0_i32 = arith.constant 0 : i32
    %c0_i32_0 = arith.constant 0 : i32
    %c0_i32_1 = arith.constant 0 : i32
    return %arg0, %arg1, %c0_i32, %c0_i32_0 : i32, i32, i32, i32
  }
}

module attributes {stable_mosaic.version = 11 : i64} {
  func.func @_conv_stats_kernel(%arg0: i32, %arg1: i32, %arg2: memref<1x5x5x64xbf16, #tpu.memory_space<vmem>>, %arg3: memref<2x128x128xbf16, #tpu.memory_space<vmem>>, %arg4: memref<1x4x4x128xbf16, #tpu.memory_space<vmem>>, %arg5: memref<1x1x2x128xf32, #tpu.memory_space<vmem>>) attributes {dimension_semantics = [#tpu.dimension_semantics<parallel>, #tpu.dimension_semantics<parallel>], iteration_bounds = array<i64: 2, 1>, scalar_prefetch = 0 : i64, scratch_operands = 0 : i64, tpu.core_type = #tpu.core_type<tc>, window_params = [{transform_indices = @transform_0, window_bounds = array<i64: 1, 5, 5, 64>}, {pipeline_mode = #tpu.pipeline_mode<synchronous>, transform_indices = @transform_1, window_bounds = array<i64: 2, 128, 128>}, {transform_indices = @transform_2, window_bounds = array<i64: 1, 4, 4, 128>}, {transform_indices = @transform_3, window_bounds = array<i64: 1, 1, 2, 128>}]} {
    %c4_i32 = arith.constant 4 : i32
    %0 = arith.muli %arg1, %c4_i32 : i32
    %cst = arith.constant 0.000000e+00 : f32
    %1 = vector.broadcast %cst : f32 to vector<16x128xf32>
    %c0_i32 = arith.constant 0 : i32
    %2 = arith.addi %0, %c0_i32 : i32
    %c0 = arith.constant 0 : index
    %3 = arith.index_cast %2 : i32 to index
    %c0_0 = arith.constant 0 : index
    %c0_1 = arith.constant 0 : index
    %4 = vector.load %arg2[%c0, %3, %c0_0, %c0_1] : memref<1x5x5x64xbf16, #tpu.memory_space<vmem>>, vector<1x4x4x64xbf16>
    %5 = vector.shape_cast %4 : vector<1x4x4x64xbf16> to vector<4x4x64xbf16>
    %c0_i32_2 = arith.constant 0 : i32
    %6 = arith.addi %0, %c0_i32_2 : i32
    %c0_3 = arith.constant 0 : index
    %7 = arith.index_cast %6 : i32 to index
    %c1 = arith.constant 1 : index
    %c0_4 = arith.constant 0 : index
    %8 = vector.load %arg2[%c0_3, %7, %c1, %c0_4] : memref<1x5x5x64xbf16, #tpu.memory_space<vmem>>, vector<1x4x4x64xbf16>
    %9 = vector.shape_cast %8 : vector<1x4x4x64xbf16> to vector<4x4x64xbf16>
    %10 = tpu.concatenate %5, %9 in 2 : vector<4x4x64xbf16>, vector<4x4x64xbf16> -> vector<4x4x128xbf16>
    %11 = vector.shape_cast %10 : vector<4x4x128xbf16> to vector<16x128xbf16>
    %c0_5 = arith.constant 0 : index
    %c0_6 = arith.constant 0 : index
    %c0_7 = arith.constant 0 : index
    %12 = vector.load %arg3[%c0_5, %c0_6, %c0_7] : memref<2x128x128xbf16, #tpu.memory_space<vmem>>, vector<1x128x128xbf16>
    %13 = vector.shape_cast %12 : vector<1x128x128xbf16> to vector<128x128xbf16>
    %cst_8 = arith.constant dense<0.000000e+00> : vector<16x128xf32>
    %14 = tpu.matmul %11, %13, %cst_8 {dimension_numbers = #tpu.dot_dimension_numbers<[1], [0], [0], [1], [0, 0, 1, 1], [], []>} : vector<16x128xbf16>, vector<128x128xbf16>, vector<16x128xf32> -> vector<16x128xf32>
    %15 = arith.addf %1, %14 : vector<16x128xf32>
    %c1_i32 = arith.constant 1 : i32
    %16 = arith.addi %0, %c1_i32 : i32
    %c0_9 = arith.constant 0 : index
    %17 = arith.index_cast %16 : i32 to index
    %c0_10 = arith.constant 0 : index
    %c0_11 = arith.constant 0 : index
    %18 = vector.load %arg2[%c0_9, %17, %c0_10, %c0_11] : memref<1x5x5x64xbf16, #tpu.memory_space<vmem>>, vector<1x4x4x64xbf16>
    %19 = vector.shape_cast %18 : vector<1x4x4x64xbf16> to vector<4x4x64xbf16>
    %c1_i32_12 = arith.constant 1 : i32
    %20 = arith.addi %0, %c1_i32_12 : i32
    %c0_13 = arith.constant 0 : index
    %21 = arith.index_cast %20 : i32 to index
    %c1_14 = arith.constant 1 : index
    %c0_15 = arith.constant 0 : index
    %22 = vector.load %arg2[%c0_13, %21, %c1_14, %c0_15] : memref<1x5x5x64xbf16, #tpu.memory_space<vmem>>, vector<1x4x4x64xbf16>
    %23 = vector.shape_cast %22 : vector<1x4x4x64xbf16> to vector<4x4x64xbf16>
    %24 = tpu.concatenate %19, %23 in 2 : vector<4x4x64xbf16>, vector<4x4x64xbf16> -> vector<4x4x128xbf16>
    %25 = vector.shape_cast %24 : vector<4x4x128xbf16> to vector<16x128xbf16>
    %c1_16 = arith.constant 1 : index
    %c0_17 = arith.constant 0 : index
    %c0_18 = arith.constant 0 : index
    %26 = vector.load %arg3[%c1_16, %c0_17, %c0_18] : memref<2x128x128xbf16, #tpu.memory_space<vmem>>, vector<1x128x128xbf16>
    %27 = vector.shape_cast %26 : vector<1x128x128xbf16> to vector<128x128xbf16>
    %cst_19 = arith.constant dense<0.000000e+00> : vector<16x128xf32>
    %28 = tpu.matmul %25, %27, %cst_19 {dimension_numbers = #tpu.dot_dimension_numbers<[1], [0], [0], [1], [0, 0, 1, 1], [], []>} : vector<16x128xbf16>, vector<128x128xbf16>, vector<16x128xf32> -> vector<16x128xf32>
    %29 = arith.addf %15, %28 : vector<16x128xf32>
    %30 = vector.shape_cast %29 : vector<16x128xf32> to vector<4x4x128xf32>
    %31 = arith.truncf %30 : vector<4x4x128xf32> to vector<4x4x128xbf16>
    %c0_20 = arith.constant 0 : index
    %c0_21 = arith.constant 0 : index
    %c0_22 = arith.constant 0 : index
    %c0_23 = arith.constant 0 : index
    %32 = vector.load %arg4[%c0_20, %c0_21, %c0_22, %c0_23] : memref<1x4x4x128xbf16, #tpu.memory_space<vmem>>, vector<1x4x4x128xbf16>
    %33 = vector.shape_cast %32 : vector<1x4x4x128xbf16> to vector<4x4x128xbf16>
    %34 = vector.shape_cast %31 : vector<4x4x128xbf16> to vector<1x4x4x128xbf16>
    tpu.vector_store %arg4[%c0_20, %c0_21, %c0_22, %c0_23], %34 {strides = array<i32>} : memref<1x4x4x128xbf16, #tpu.memory_space<vmem>>, vector<1x4x4x128xbf16>,
    %cst_24 = arith.constant dense<0.000000e+00> : vector<128xf32>
    %35 = vector.multi_reduction <add>, %29, %cst_24 [0] : vector<16x128xf32> to vector<128xf32>
    %36 = vector.shape_cast %35 : vector<128xf32> to vector<1x128xf32>
    %37 = arith.mulf %29, %29 : vector<16x128xf32>
    %cst_25 = arith.constant dense<0.000000e+00> : vector<128xf32>
    %38 = vector.multi_reduction <add>, %37, %cst_25 [0] : vector<16x128xf32> to vector<128xf32>
    %39 = vector.shape_cast %38 : vector<128xf32> to vector<1x128xf32>
    %40 = tpu.concatenate %36, %39 in 0 : vector<1x128xf32>, vector<1x128xf32> -> vector<2x128xf32>
    %c0_26 = arith.constant 0 : index
    %c0_27 = arith.constant 0 : index
    %c0_28 = arith.constant 0 : index
    %c0_29 = arith.constant 0 : index
    %41 = vector.load %arg5[%c0_26, %c0_27, %c0_28, %c0_29] : memref<1x1x2x128xf32, #tpu.memory_space<vmem>>, vector<1x1x2x128xf32>
    %42 = vector.shape_cast %41 : vector<1x1x2x128xf32> to vector<2x128xf32>
    %43 = vector.shape_cast %40 : vector<2x128xf32> to vector<1x1x2x128xf32>
    tpu.vector_store %arg5[%c0_26, %c0_27, %c0_28, %c0_29], %43 {strides = array<i32>} : memref<1x1x2x128xf32, #tpu.memory_space<vmem>>, vector<1x1x2x128xf32>,
    return
  }
  func.func @transform_0(%arg0: i32, %arg1: i32) -> (i32, i32, i32, i32) {
    %c0_i32 = arith.constant 0 : i32
    %c0_i32_0 = arith.constant 0 : i32
    %c0_i32_1 = arith.constant 0 : i32
    %c0_i32_2 = arith.constant 0 : i32
    return %arg0, %c0_i32, %c0_i32_0, %c0_i32_1 : i32, i32, i32, i32
  }
  func.func @transform_1(%arg0: i32, %arg1: i32) -> (i32, i32, i32) {
    %c0_i32 = arith.constant 0 : i32
    %c0_i32_0 = arith.constant 0 : i32
    %c0_i32_1 = arith.constant 0 : i32
    %c0_i32_2 = arith.constant 0 : i32
    return %c0_i32, %c0_i32_0, %c0_i32_1 : i32, i32, i32
  }
  func.func @transform_2(%arg0: i32, %arg1: i32) -> (i32, i32, i32, i32) {
    %c0_i32 = arith.constant 0 : i32
    %c0_i32_0 = arith.constant 0 : i32
    %c0_i32_1 = arith.constant 0 : i32
    return %arg0, %arg1, %c0_i32, %c0_i32_0 : i32, i32, i32, i32
  }
  func.func @transform_3(%arg0: i32, %arg1: i32) -> (i32, i32, i32, i32) {
    %c0_i32 = arith.constant 0 : i32
    %c0_i32_0 = arith.constant 0 : i32
    %c0_i32_1 = arith.constant 0 : i32
    return %arg0, %arg1, %c0_i32, %c0_i32_0 : i32, i32, i32, i32
  }
}

module attributes {stable_mosaic.version = 11 : i64} {
  func.func @_bn_act_kernel(%arg0: i32, %arg1: i32, %arg2: memref<1x4x4x128xbf16, #tpu.memory_space<vmem>>, %arg3: memref<1x128xf32, #tpu.memory_space<vmem>>, %arg4: memref<1x128xf32, #tpu.memory_space<vmem>>, %arg5: memref<1x4x4x128xbf16, #tpu.memory_space<vmem>>) attributes {dimension_semantics = [#tpu.dimension_semantics<parallel>, #tpu.dimension_semantics<parallel>], iteration_bounds = array<i64: 2, 1>, scalar_prefetch = 0 : i64, scratch_operands = 0 : i64, tpu.core_type = #tpu.core_type<tc>, window_params = [{transform_indices = @transform_0, window_bounds = array<i64: 1, 4, 4, 128>}, {pipeline_mode = #tpu.pipeline_mode<synchronous>, transform_indices = @transform_1, window_bounds = array<i64: 1, 128>}, {pipeline_mode = #tpu.pipeline_mode<synchronous>, transform_indices = @transform_2, window_bounds = array<i64: 1, 128>}, {transform_indices = @transform_3, window_bounds = array<i64: 1, 4, 4, 128>}]} {
    %c0 = arith.constant 0 : index
    %c0_0 = arith.constant 0 : index
    %c0_1 = arith.constant 0 : index
    %c0_2 = arith.constant 0 : index
    %0 = vector.load %arg2[%c0, %c0_0, %c0_1, %c0_2] : memref<1x4x4x128xbf16, #tpu.memory_space<vmem>>, vector<1x4x4x128xbf16>
    %1 = vector.shape_cast %0 : vector<1x4x4x128xbf16> to vector<4x4x128xbf16>
    %2 = arith.extf %1 : vector<4x4x128xbf16> to vector<4x4x128xf32>
    %c0_3 = arith.constant 0 : index
    %c0_4 = arith.constant 0 : index
    %3 = vector.load %arg3[%c0_3, %c0_4] : memref<1x128xf32, #tpu.memory_space<vmem>>, vector<1x128xf32>
    %4 = vector.shape_cast %3 : vector<1x128xf32> to vector<1x1x128xf32>
    %5 = vector.broadcast %4 : vector<1x1x128xf32> to vector<4x4x128xf32>
    %6 = arith.mulf %2, %5 : vector<4x4x128xf32>
    %c0_5 = arith.constant 0 : index
    %c0_6 = arith.constant 0 : index
    %7 = vector.load %arg4[%c0_5, %c0_6] : memref<1x128xf32, #tpu.memory_space<vmem>>, vector<1x128xf32>
    %8 = vector.shape_cast %7 : vector<1x128xf32> to vector<1x1x128xf32>
    %9 = vector.broadcast %8 : vector<1x1x128xf32> to vector<4x4x128xf32>
    %10 = arith.addf %6, %9 : vector<4x4x128xf32>
    %cst = arith.constant 0.000000e+00 : f32
    %11 = vector.broadcast %cst : f32 to vector<4x4x128xf32>
    %12 = arith.cmpf oge, %10, %11 : vector<4x4x128xf32>
    %cst_7 = arith.constant 2.000000e-01 : f32
    %13 = vector.broadcast %cst_7 : f32 to vector<4x4x128xf32>
    %14 = arith.mulf %13, %10 : vector<4x4x128xf32>
    %15 = arith.select %12, %10, %14 : vector<4x4x128xi1>, vector<4x4x128xf32>
    %16 = arith.truncf %15 : vector<4x4x128xf32> to vector<4x4x128xbf16>
    %c0_8 = arith.constant 0 : index
    %c0_9 = arith.constant 0 : index
    %c0_10 = arith.constant 0 : index
    %c0_11 = arith.constant 0 : index
    %17 = vector.load %arg5[%c0_8, %c0_9, %c0_10, %c0_11] : memref<1x4x4x128xbf16, #tpu.memory_space<vmem>>, vector<1x4x4x128xbf16>
    %18 = vector.shape_cast %17 : vector<1x4x4x128xbf16> to vector<4x4x128xbf16>
    %19 = vector.shape_cast %16 : vector<4x4x128xbf16> to vector<1x4x4x128xbf16>
    tpu.vector_store %arg5[%c0_8, %c0_9, %c0_10, %c0_11], %19 {strides = array<i32>} : memref<1x4x4x128xbf16, #tpu.memory_space<vmem>>, vector<1x4x4x128xbf16>,
    return
  }
  func.func @transform_0(%arg0: i32, %arg1: i32) -> (i32, i32, i32, i32) {
    %c0_i32 = arith.constant 0 : i32
    %c0_i32_0 = arith.constant 0 : i32
    %c0_i32_1 = arith.constant 0 : i32
    return %arg0, %arg1, %c0_i32, %c0_i32_0 : i32, i32, i32, i32
  }
  func.func @transform_1(%arg0: i32, %arg1: i32) -> (i32, i32) {
    %c0_i32 = arith.constant 0 : i32
    %c0_i32_0 = arith.constant 0 : i32
    %c0_i32_1 = arith.constant 0 : i32
    return %c0_i32, %c0_i32_0 : i32, i32
  }
  func.func @transform_2(%arg0: i32, %arg1: i32) -> (i32, i32) {
    %c0_i32 = arith.constant 0 : i32
    %c0_i32_0 = arith.constant 0 : i32
    %c0_i32_1 = arith.constant 0 : i32
    return %c0_i32, %c0_i32_0 : i32, i32
  }
  func.func @transform_3(%arg0: i32, %arg1: i32) -> (i32, i32, i32, i32) {
    %c0_i32 = arith.constant 0 : i32
    %c0_i32_0 = arith.constant 0 : i32
    %c0_i32_1 = arith.constant 0 : i32
    return %arg0, %arg1, %c0_i32, %c0_i32_0 : i32, i32, i32, i32
  }
}

module attributes {stable_mosaic.version = 11 : i64} {
  func.func @_bn_act_kernel(%arg0: i32, %arg1: i32, %arg2: memref<1x2x2x128xbf16, #tpu.memory_space<vmem>>, %arg3: memref<1x128xf32, #tpu.memory_space<vmem>>, %arg4: memref<1x128xf32, #tpu.memory_space<vmem>>, %arg5: memref<1x2x2x128xbf16, #tpu.memory_space<vmem>>) attributes {dimension_semantics = [#tpu.dimension_semantics<parallel>, #tpu.dimension_semantics<parallel>], iteration_bounds = array<i64: 2, 1>, scalar_prefetch = 0 : i64, scratch_operands = 0 : i64, tpu.core_type = #tpu.core_type<tc>, window_params = [{transform_indices = @transform_0, window_bounds = array<i64: 1, 2, 2, 128>}, {pipeline_mode = #tpu.pipeline_mode<synchronous>, transform_indices = @transform_1, window_bounds = array<i64: 1, 128>}, {pipeline_mode = #tpu.pipeline_mode<synchronous>, transform_indices = @transform_2, window_bounds = array<i64: 1, 128>}, {transform_indices = @transform_3, window_bounds = array<i64: 1, 2, 2, 128>}]} {
    %c0 = arith.constant 0 : index
    %c0_0 = arith.constant 0 : index
    %c0_1 = arith.constant 0 : index
    %c0_2 = arith.constant 0 : index
    %0 = vector.load %arg2[%c0, %c0_0, %c0_1, %c0_2] : memref<1x2x2x128xbf16, #tpu.memory_space<vmem>>, vector<1x2x2x128xbf16>
    %1 = vector.shape_cast %0 : vector<1x2x2x128xbf16> to vector<2x2x128xbf16>
    %2 = arith.extf %1 : vector<2x2x128xbf16> to vector<2x2x128xf32>
    %c0_3 = arith.constant 0 : index
    %c0_4 = arith.constant 0 : index
    %3 = vector.load %arg3[%c0_3, %c0_4] : memref<1x128xf32, #tpu.memory_space<vmem>>, vector<1x128xf32>
    %4 = vector.shape_cast %3 : vector<1x128xf32> to vector<1x1x128xf32>
    %5 = vector.broadcast %4 : vector<1x1x128xf32> to vector<2x2x128xf32>
    %6 = arith.mulf %2, %5 : vector<2x2x128xf32>
    %c0_5 = arith.constant 0 : index
    %c0_6 = arith.constant 0 : index
    %7 = vector.load %arg4[%c0_5, %c0_6] : memref<1x128xf32, #tpu.memory_space<vmem>>, vector<1x128xf32>
    %8 = vector.shape_cast %7 : vector<1x128xf32> to vector<1x1x128xf32>
    %9 = vector.broadcast %8 : vector<1x1x128xf32> to vector<2x2x128xf32>
    %10 = arith.addf %6, %9 : vector<2x2x128xf32>
    %cst = arith.constant 0.000000e+00 : f32
    %11 = vector.broadcast %cst : f32 to vector<2x2x128xf32>
    %12 = arith.cmpf oge, %10, %11 : vector<2x2x128xf32>
    %cst_7 = arith.constant 2.000000e-01 : f32
    %13 = vector.broadcast %cst_7 : f32 to vector<2x2x128xf32>
    %14 = arith.mulf %13, %10 : vector<2x2x128xf32>
    %15 = arith.select %12, %10, %14 : vector<2x2x128xi1>, vector<2x2x128xf32>
    %16 = arith.truncf %15 : vector<2x2x128xf32> to vector<2x2x128xbf16>
    %c0_8 = arith.constant 0 : index
    %c0_9 = arith.constant 0 : index
    %c0_10 = arith.constant 0 : index
    %c0_11 = arith.constant 0 : index
    %17 = vector.load %arg5[%c0_8, %c0_9, %c0_10, %c0_11] : memref<1x2x2x128xbf16, #tpu.memory_space<vmem>>, vector<1x2x2x128xbf16>
    %18 = vector.shape_cast %17 : vector<1x2x2x128xbf16> to vector<2x2x128xbf16>
    %19 = vector.shape_cast %16 : vector<2x2x128xbf16> to vector<1x2x2x128xbf16>
    tpu.vector_store %arg5[%c0_8, %c0_9, %c0_10, %c0_11], %19 {strides = array<i32>} : memref<1x2x2x128xbf16, #tpu.memory_space<vmem>>, vector<1x2x2x128xbf16>,
    return
  }
  func.func @transform_0(%arg0: i32, %arg1: i32) -> (i32, i32, i32, i32) {
    %c0_i32 = arith.constant 0 : i32
    %c0_i32_0 = arith.constant 0 : i32
    %c0_i32_1 = arith.constant 0 : i32
    return %arg0, %arg1, %c0_i32, %c0_i32_0 : i32, i32, i32, i32
  }
  func.func @transform_1(%arg0: i32, %arg1: i32) -> (i32, i32) {
    %c0_i32 = arith.constant 0 : i32
    %c0_i32_0 = arith.constant 0 : i32
    %c0_i32_1 = arith.constant 0 : i32
    return %c0_i32, %c0_i32_0 : i32, i32
  }
  func.func @transform_2(%arg0: i32, %arg1: i32) -> (i32, i32) {
    %c0_i32 = arith.constant 0 : i32
    %c0_i32_0 = arith.constant 0 : i32
    %c0_i32_1 = arith.constant 0 : i32
    return %c0_i32, %c0_i32_0 : i32, i32
  }
  func.func @transform_3(%arg0: i32, %arg1: i32) -> (i32, i32, i32, i32) {
    %c0_i32 = arith.constant 0 : i32
    %c0_i32_0 = arith.constant 0 : i32
    %c0_i32_1 = arith.constant 0 : i32
    return %arg0, %arg1, %c0_i32, %c0_i32_0 : i32, i32, i32, i32
  }
}

module attributes {stable_mosaic.version = 11 : i64} {
  func.func @_conv_stats_kernel(%arg0: i32, %arg1: i32, %arg2: memref<1x3x3x128xbf16, #tpu.memory_space<vmem>>, %arg3: memref<2x256x128xbf16, #tpu.memory_space<vmem>>, %arg4: memref<1x2x2x128xbf16, #tpu.memory_space<vmem>>, %arg5: memref<1x1x2x128xf32, #tpu.memory_space<vmem>>) attributes {dimension_semantics = [#tpu.dimension_semantics<parallel>, #tpu.dimension_semantics<parallel>], iteration_bounds = array<i64: 2, 1>, scalar_prefetch = 0 : i64, scratch_operands = 0 : i64, tpu.core_type = #tpu.core_type<tc>, window_params = [{transform_indices = @transform_0, window_bounds = array<i64: 1, 3, 3, 128>}, {pipeline_mode = #tpu.pipeline_mode<synchronous>, transform_indices = @transform_1, window_bounds = array<i64: 2, 256, 128>}, {transform_indices = @transform_2, window_bounds = array<i64: 1, 2, 2, 128>}, {transform_indices = @transform_3, window_bounds = array<i64: 1, 1, 2, 128>}]} {
    %c2_i32 = arith.constant 2 : i32
    %0 = arith.muli %arg1, %c2_i32 : i32
    %cst = arith.constant 0.000000e+00 : f32
    %1 = vector.broadcast %cst : f32 to vector<4x128xf32>
    %c0_i32 = arith.constant 0 : i32
    %2 = arith.addi %0, %c0_i32 : i32
    %c0 = arith.constant 0 : index
    %3 = arith.index_cast %2 : i32 to index
    %c0_0 = arith.constant 0 : index
    %c0_1 = arith.constant 0 : index
    %4 = vector.load %arg2[%c0, %3, %c0_0, %c0_1] : memref<1x3x3x128xbf16, #tpu.memory_space<vmem>>, vector<1x2x2x128xbf16>
    %5 = vector.shape_cast %4 : vector<1x2x2x128xbf16> to vector<2x2x128xbf16>
    %c0_i32_2 = arith.constant 0 : i32
    %6 = arith.addi %0, %c0_i32_2 : i32
    %c0_3 = arith.constant 0 : index
    %7 = arith.index_cast %6 : i32 to index
    %c1 = arith.constant 1 : index
    %c0_4 = arith.constant 0 : index
    %8 = vector.load %arg2[%c0_3, %7, %c1, %c0_4] : memref<1x3x3x128xbf16, #tpu.memory_space<vmem>>, vector<1x2x2x128xbf16>
    %9 = vector.shape_cast %8 : vector<1x2x2x128xbf16> to vector<2x2x128xbf16>
    %10 = tpu.concatenate %5, %9 in 2 : vector<2x2x128xbf16>, vector<2x2x128xbf16> -> vector<2x2x256xbf16>
    %11 = vector.shape_cast %10 : vector<2x2x256xbf16> to vector<4x256xbf16>
    %c0_5 = arith.constant 0 : index
    %c0_6 = arith.constant 0 : index
    %c0_7 = arith.constant 0 : index
    %12 = vector.load %arg3[%c0_5, %c0_6, %c0_7] : memref<2x256x128xbf16, #tpu.memory_space<vmem>>, vector<1x256x128xbf16>
    %13 = vector.shape_cast %12 : vector<1x256x128xbf16> to vector<256x128xbf16>
    %cst_8 = arith.constant dense<0.000000e+00> : vector<4x128xf32>
    %14 = tpu.matmul %11, %13, %cst_8 {dimension_numbers = #tpu.dot_dimension_numbers<[1], [0], [0], [1], [0, 0, 1, 1], [], []>} : vector<4x256xbf16>, vector<256x128xbf16>, vector<4x128xf32> -> vector<4x128xf32>
    %15 = arith.addf %1, %14 : vector<4x128xf32>
    %c1_i32 = arith.constant 1 : i32
    %16 = arith.addi %0, %c1_i32 : i32
    %c0_9 = arith.constant 0 : index
    %17 = arith.index_cast %16 : i32 to index
    %c0_10 = arith.constant 0 : index
    %c0_11 = arith.constant 0 : index
    %18 = vector.load %arg2[%c0_9, %17, %c0_10, %c0_11] : memref<1x3x3x128xbf16, #tpu.memory_space<vmem>>, vector<1x2x2x128xbf16>
    %19 = vector.shape_cast %18 : vector<1x2x2x128xbf16> to vector<2x2x128xbf16>
    %c1_i32_12 = arith.constant 1 : i32
    %20 = arith.addi %0, %c1_i32_12 : i32
    %c0_13 = arith.constant 0 : index
    %21 = arith.index_cast %20 : i32 to index
    %c1_14 = arith.constant 1 : index
    %c0_15 = arith.constant 0 : index
    %22 = vector.load %arg2[%c0_13, %21, %c1_14, %c0_15] : memref<1x3x3x128xbf16, #tpu.memory_space<vmem>>, vector<1x2x2x128xbf16>
    %23 = vector.shape_cast %22 : vector<1x2x2x128xbf16> to vector<2x2x128xbf16>
    %24 = tpu.concatenate %19, %23 in 2 : vector<2x2x128xbf16>, vector<2x2x128xbf16> -> vector<2x2x256xbf16>
    %25 = vector.shape_cast %24 : vector<2x2x256xbf16> to vector<4x256xbf16>
    %c1_16 = arith.constant 1 : index
    %c0_17 = arith.constant 0 : index
    %c0_18 = arith.constant 0 : index
    %26 = vector.load %arg3[%c1_16, %c0_17, %c0_18] : memref<2x256x128xbf16, #tpu.memory_space<vmem>>, vector<1x256x128xbf16>
    %27 = vector.shape_cast %26 : vector<1x256x128xbf16> to vector<256x128xbf16>
    %cst_19 = arith.constant dense<0.000000e+00> : vector<4x128xf32>
    %28 = tpu.matmul %25, %27, %cst_19 {dimension_numbers = #tpu.dot_dimension_numbers<[1], [0], [0], [1], [0, 0, 1, 1], [], []>} : vector<4x256xbf16>, vector<256x128xbf16>, vector<4x128xf32> -> vector<4x128xf32>
    %29 = arith.addf %15, %28 : vector<4x128xf32>
    %30 = vector.shape_cast %29 : vector<4x128xf32> to vector<2x2x128xf32>
    %31 = arith.truncf %30 : vector<2x2x128xf32> to vector<2x2x128xbf16>
    %c0_20 = arith.constant 0 : index
    %c0_21 = arith.constant 0 : index
    %c0_22 = arith.constant 0 : index
    %c0_23 = arith.constant 0 : index
    %32 = vector.load %arg4[%c0_20, %c0_21, %c0_22, %c0_23] : memref<1x2x2x128xbf16, #tpu.memory_space<vmem>>, vector<1x2x2x128xbf16>
    %33 = vector.shape_cast %32 : vector<1x2x2x128xbf16> to vector<2x2x128xbf16>
    %34 = vector.shape_cast %31 : vector<2x2x128xbf16> to vector<1x2x2x128xbf16>
    tpu.vector_store %arg4[%c0_20, %c0_21, %c0_22, %c0_23], %34 {strides = array<i32>} : memref<1x2x2x128xbf16, #tpu.memory_space<vmem>>, vector<1x2x2x128xbf16>,
    %cst_24 = arith.constant dense<0.000000e+00> : vector<128xf32>
    %35 = vector.multi_reduction <add>, %29, %cst_24 [0] : vector<4x128xf32> to vector<128xf32>
    %36 = vector.shape_cast %35 : vector<128xf32> to vector<1x128xf32>
    %37 = arith.mulf %29, %29 : vector<4x128xf32>
    %cst_25 = arith.constant dense<0.000000e+00> : vector<128xf32>
    %38 = vector.multi_reduction <add>, %37, %cst_25 [0] : vector<4x128xf32> to vector<128xf32>
    %39 = vector.shape_cast %38 : vector<128xf32> to vector<1x128xf32>
    %40 = tpu.concatenate %36, %39 in 0 : vector<1x128xf32>, vector<1x128xf32> -> vector<2x128xf32>
    %c0_26 = arith.constant 0 : index
    %c0_27 = arith.constant 0 : index
    %c0_28 = arith.constant 0 : index
    %c0_29 = arith.constant 0 : index
    %41 = vector.load %arg5[%c0_26, %c0_27, %c0_28, %c0_29] : memref<1x1x2x128xf32, #tpu.memory_space<vmem>>, vector<1x1x2x128xf32>
    %42 = vector.shape_cast %41 : vector<1x1x2x128xf32> to vector<2x128xf32>
    %43 = vector.shape_cast %40 : vector<2x128xf32> to vector<1x1x2x128xf32>
    tpu.vector_store %arg5[%c0_26, %c0_27, %c0_28, %c0_29], %43 {strides = array<i32>} : memref<1x1x2x128xf32, #tpu.memory_space<vmem>>, vector<1x1x2x128xf32>,
    return
  }
  func.func @transform_0(%arg0: i32, %arg1: i32) -> (i32, i32, i32, i32) {
    %c0_i32 = arith.constant 0 : i32
    %c0_i32_0 = arith.constant 0 : i32
    %c0_i32_1 = arith.constant 0 : i32
    %c0_i32_2 = arith.constant 0 : i32
    return %arg0, %c0_i32, %c0_i32_0, %c0_i32_1 : i32, i32, i32, i32
  }
  func.func @transform_1(%arg0: i32, %arg1: i32) -> (i32, i32, i32) {
    %c0_i32 = arith.constant 0 : i32
    %c0_i32_0 = arith.constant 0 : i32
    %c0_i32_1 = arith.constant 0 : i32
    %c0_i32_2 = arith.constant 0 : i32
    return %c0_i32, %c0_i32_0, %c0_i32_1 : i32, i32, i32
  }
  func.func @transform_2(%arg0: i32, %arg1: i32) -> (i32, i32, i32, i32) {
    %c0_i32 = arith.constant 0 : i32
    %c0_i32_0 = arith.constant 0 : i32
    %c0_i32_1 = arith.constant 0 : i32
    return %arg0, %arg1, %c0_i32, %c0_i32_0 : i32, i32, i32, i32
  }
  func.func @transform_3(%arg0: i32, %arg1: i32) -> (i32, i32, i32, i32) {
    %c0_i32 = arith.constant 0 : i32
    %c0_i32_0 = arith.constant 0 : i32
    %c0_i32_1 = arith.constant 0 : i32
    return %arg0, %arg1, %c0_i32, %c0_i32_0 : i32, i32, i32, i32
  }
}

module attributes {stable_mosaic.version = 11 : i64} {
  func.func @_conv_bias_kernel(%arg0: i32, %arg1: i32, %arg2: memref<1x4x4x64xbf16, #tpu.memory_space<vmem>>, %arg3: memref<4x256x128xbf16, #tpu.memory_space<vmem>>, %arg4: memref<1x128xf32, #tpu.memory_space<vmem>>, %arg5: memref<1x1x1x128xf32, #tpu.memory_space<vmem>>) attributes {dimension_semantics = [#tpu.dimension_semantics<parallel>, #tpu.dimension_semantics<parallel>], iteration_bounds = array<i64: 2, 1>, scalar_prefetch = 0 : i64, scratch_operands = 0 : i64, tpu.core_type = #tpu.core_type<tc>, window_params = [{transform_indices = @transform_0, window_bounds = array<i64: 1, 4, 4, 64>}, {pipeline_mode = #tpu.pipeline_mode<synchronous>, transform_indices = @transform_1, window_bounds = array<i64: 4, 256, 128>}, {pipeline_mode = #tpu.pipeline_mode<synchronous>, transform_indices = @transform_2, window_bounds = array<i64: 1, 128>}, {transform_indices = @transform_3, window_bounds = array<i64: 1, 1, 1, 128>}]} {
    %c1_i32 = arith.constant 1 : i32
    %0 = arith.muli %arg1, %c1_i32 : i32
    %cst = arith.constant 0.000000e+00 : f32
    %1 = vector.broadcast %cst : f32 to vector<1x128xf32>
    %c0_i32 = arith.constant 0 : i32
    %2 = arith.addi %0, %c0_i32 : i32
    %c0 = arith.constant 0 : index
    %3 = arith.index_cast %2 : i32 to index
    %c0_0 = arith.constant 0 : index
    %c0_1 = arith.constant 0 : index
    %4 = vector.load %arg2[%c0, %3, %c0_0, %c0_1] : memref<1x4x4x64xbf16, #tpu.memory_space<vmem>>, vector<1x1x1x64xbf16>
    %5 = vector.shape_cast %4 : vector<1x1x1x64xbf16> to vector<1x1x64xbf16>
    %c0_i32_2 = arith.constant 0 : i32
    %6 = arith.addi %0, %c0_i32_2 : i32
    %c0_3 = arith.constant 0 : index
    %7 = arith.index_cast %6 : i32 to index
    %c1 = arith.constant 1 : index
    %c0_4 = arith.constant 0 : index
    %8 = vector.load %arg2[%c0_3, %7, %c1, %c0_4] : memref<1x4x4x64xbf16, #tpu.memory_space<vmem>>, vector<1x1x1x64xbf16>
    %9 = vector.shape_cast %8 : vector<1x1x1x64xbf16> to vector<1x1x64xbf16>
    %c0_i32_5 = arith.constant 0 : i32
    %10 = arith.addi %0, %c0_i32_5 : i32
    %c0_6 = arith.constant 0 : index
    %11 = arith.index_cast %10 : i32 to index
    %c2 = arith.constant 2 : index
    %c0_7 = arith.constant 0 : index
    %12 = vector.load %arg2[%c0_6, %11, %c2, %c0_7] : memref<1x4x4x64xbf16, #tpu.memory_space<vmem>>, vector<1x1x1x64xbf16>
    %13 = vector.shape_cast %12 : vector<1x1x1x64xbf16> to vector<1x1x64xbf16>
    %c0_i32_8 = arith.constant 0 : i32
    %14 = arith.addi %0, %c0_i32_8 : i32
    %c0_9 = arith.constant 0 : index
    %15 = arith.index_cast %14 : i32 to index
    %c3 = arith.constant 3 : index
    %c0_10 = arith.constant 0 : index
    %16 = vector.load %arg2[%c0_9, %15, %c3, %c0_10] : memref<1x4x4x64xbf16, #tpu.memory_space<vmem>>, vector<1x1x1x64xbf16>
    %17 = vector.shape_cast %16 : vector<1x1x1x64xbf16> to vector<1x1x64xbf16>
    %18 = tpu.concatenate %5, %9, %13, %17 in 2 : vector<1x1x64xbf16>, vector<1x1x64xbf16>, vector<1x1x64xbf16>, vector<1x1x64xbf16> -> vector<1x1x256xbf16>
    %19 = vector.shape_cast %18 : vector<1x1x256xbf16> to vector<1x256xbf16>
    %c0_11 = arith.constant 0 : index
    %c0_12 = arith.constant 0 : index
    %c0_13 = arith.constant 0 : index
    %20 = vector.load %arg3[%c0_11, %c0_12, %c0_13] : memref<4x256x128xbf16, #tpu.memory_space<vmem>>, vector<1x256x128xbf16>
    %21 = vector.shape_cast %20 : vector<1x256x128xbf16> to vector<256x128xbf16>
    %cst_14 = arith.constant dense<0.000000e+00> : vector<1x128xf32>
    %22 = tpu.matmul %19, %21, %cst_14 {dimension_numbers = #tpu.dot_dimension_numbers<[1], [0], [0], [1], [0, 0, 1, 1], [], []>} : vector<1x256xbf16>, vector<256x128xbf16>, vector<1x128xf32> -> vector<1x128xf32>
    %23 = arith.addf %1, %22 : vector<1x128xf32>
    %c1_i32_15 = arith.constant 1 : i32
    %24 = arith.addi %0, %c1_i32_15 : i32
    %c0_16 = arith.constant 0 : index
    %25 = arith.index_cast %24 : i32 to index
    %c0_17 = arith.constant 0 : index
    %c0_18 = arith.constant 0 : index
    %26 = vector.load %arg2[%c0_16, %25, %c0_17, %c0_18] : memref<1x4x4x64xbf16, #tpu.memory_space<vmem>>, vector<1x1x1x64xbf16>
    %27 = vector.shape_cast %26 : vector<1x1x1x64xbf16> to vector<1x1x64xbf16>
    %c1_i32_19 = arith.constant 1 : i32
    %28 = arith.addi %0, %c1_i32_19 : i32
    %c0_20 = arith.constant 0 : index
    %29 = arith.index_cast %28 : i32 to index
    %c1_21 = arith.constant 1 : index
    %c0_22 = arith.constant 0 : index
    %30 = vector.load %arg2[%c0_20, %29, %c1_21, %c0_22] : memref<1x4x4x64xbf16, #tpu.memory_space<vmem>>, vector<1x1x1x64xbf16>
    %31 = vector.shape_cast %30 : vector<1x1x1x64xbf16> to vector<1x1x64xbf16>
    %c1_i32_23 = arith.constant 1 : i32
    %32 = arith.addi %0, %c1_i32_23 : i32
    %c0_24 = arith.constant 0 : index
    %33 = arith.index_cast %32 : i32 to index
    %c2_25 = arith.constant 2 : index
    %c0_26 = arith.constant 0 : index
    %34 = vector.load %arg2[%c0_24, %33, %c2_25, %c0_26] : memref<1x4x4x64xbf16, #tpu.memory_space<vmem>>, vector<1x1x1x64xbf16>
    %35 = vector.shape_cast %34 : vector<1x1x1x64xbf16> to vector<1x1x64xbf16>
    %c1_i32_27 = arith.constant 1 : i32
    %36 = arith.addi %0, %c1_i32_27 : i32
    %c0_28 = arith.constant 0 : index
    %37 = arith.index_cast %36 : i32 to index
    %c3_29 = arith.constant 3 : index
    %c0_30 = arith.constant 0 : index
    %38 = vector.load %arg2[%c0_28, %37, %c3_29, %c0_30] : memref<1x4x4x64xbf16, #tpu.memory_space<vmem>>, vector<1x1x1x64xbf16>
    %39 = vector.shape_cast %38 : vector<1x1x1x64xbf16> to vector<1x1x64xbf16>
    %40 = tpu.concatenate %27, %31, %35, %39 in 2 : vector<1x1x64xbf16>, vector<1x1x64xbf16>, vector<1x1x64xbf16>, vector<1x1x64xbf16> -> vector<1x1x256xbf16>
    %41 = vector.shape_cast %40 : vector<1x1x256xbf16> to vector<1x256xbf16>
    %c1_31 = arith.constant 1 : index
    %c0_32 = arith.constant 0 : index
    %c0_33 = arith.constant 0 : index
    %42 = vector.load %arg3[%c1_31, %c0_32, %c0_33] : memref<4x256x128xbf16, #tpu.memory_space<vmem>>, vector<1x256x128xbf16>
    %43 = vector.shape_cast %42 : vector<1x256x128xbf16> to vector<256x128xbf16>
    %cst_34 = arith.constant dense<0.000000e+00> : vector<1x128xf32>
    %44 = tpu.matmul %41, %43, %cst_34 {dimension_numbers = #tpu.dot_dimension_numbers<[1], [0], [0], [1], [0, 0, 1, 1], [], []>} : vector<1x256xbf16>, vector<256x128xbf16>, vector<1x128xf32> -> vector<1x128xf32>
    %45 = arith.addf %23, %44 : vector<1x128xf32>
    %c2_i32 = arith.constant 2 : i32
    %46 = arith.addi %0, %c2_i32 : i32
    %c0_35 = arith.constant 0 : index
    %47 = arith.index_cast %46 : i32 to index
    %c0_36 = arith.constant 0 : index
    %c0_37 = arith.constant 0 : index
    %48 = vector.load %arg2[%c0_35, %47, %c0_36, %c0_37] : memref<1x4x4x64xbf16, #tpu.memory_space<vmem>>, vector<1x1x1x64xbf16>
    %49 = vector.shape_cast %48 : vector<1x1x1x64xbf16> to vector<1x1x64xbf16>
    %c2_i32_38 = arith.constant 2 : i32
    %50 = arith.addi %0, %c2_i32_38 : i32
    %c0_39 = arith.constant 0 : index
    %51 = arith.index_cast %50 : i32 to index
    %c1_40 = arith.constant 1 : index
    %c0_41 = arith.constant 0 : index
    %52 = vector.load %arg2[%c0_39, %51, %c1_40, %c0_41] : memref<1x4x4x64xbf16, #tpu.memory_space<vmem>>, vector<1x1x1x64xbf16>
    %53 = vector.shape_cast %52 : vector<1x1x1x64xbf16> to vector<1x1x64xbf16>
    %c2_i32_42 = arith.constant 2 : i32
    %54 = arith.addi %0, %c2_i32_42 : i32
    %c0_43 = arith.constant 0 : index
    %55 = arith.index_cast %54 : i32 to index
    %c2_44 = arith.constant 2 : index
    %c0_45 = arith.constant 0 : index
    %56 = vector.load %arg2[%c0_43, %55, %c2_44, %c0_45] : memref<1x4x4x64xbf16, #tpu.memory_space<vmem>>, vector<1x1x1x64xbf16>
    %57 = vector.shape_cast %56 : vector<1x1x1x64xbf16> to vector<1x1x64xbf16>
    %c2_i32_46 = arith.constant 2 : i32
    %58 = arith.addi %0, %c2_i32_46 : i32
    %c0_47 = arith.constant 0 : index
    %59 = arith.index_cast %58 : i32 to index
    %c3_48 = arith.constant 3 : index
    %c0_49 = arith.constant 0 : index
    %60 = vector.load %arg2[%c0_47, %59, %c3_48, %c0_49] : memref<1x4x4x64xbf16, #tpu.memory_space<vmem>>, vector<1x1x1x64xbf16>
    %61 = vector.shape_cast %60 : vector<1x1x1x64xbf16> to vector<1x1x64xbf16>
    %62 = tpu.concatenate %49, %53, %57, %61 in 2 : vector<1x1x64xbf16>, vector<1x1x64xbf16>, vector<1x1x64xbf16>, vector<1x1x64xbf16> -> vector<1x1x256xbf16>
    %63 = vector.shape_cast %62 : vector<1x1x256xbf16> to vector<1x256xbf16>
    %c2_50 = arith.constant 2 : index
    %c0_51 = arith.constant 0 : index
    %c0_52 = arith.constant 0 : index
    %64 = vector.load %arg3[%c2_50, %c0_51, %c0_52] : memref<4x256x128xbf16, #tpu.memory_space<vmem>>, vector<1x256x128xbf16>
    %65 = vector.shape_cast %64 : vector<1x256x128xbf16> to vector<256x128xbf16>
    %cst_53 = arith.constant dense<0.000000e+00> : vector<1x128xf32>
    %66 = tpu.matmul %63, %65, %cst_53 {dimension_numbers = #tpu.dot_dimension_numbers<[1], [0], [0], [1], [0, 0, 1, 1], [], []>} : vector<1x256xbf16>, vector<256x128xbf16>, vector<1x128xf32> -> vector<1x128xf32>
    %67 = arith.addf %45, %66 : vector<1x128xf32>
    %c3_i32 = arith.constant 3 : i32
    %68 = arith.addi %0, %c3_i32 : i32
    %c0_54 = arith.constant 0 : index
    %69 = arith.index_cast %68 : i32 to index
    %c0_55 = arith.constant 0 : index
    %c0_56 = arith.constant 0 : index
    %70 = vector.load %arg2[%c0_54, %69, %c0_55, %c0_56] : memref<1x4x4x64xbf16, #tpu.memory_space<vmem>>, vector<1x1x1x64xbf16>
    %71 = vector.shape_cast %70 : vector<1x1x1x64xbf16> to vector<1x1x64xbf16>
    %c3_i32_57 = arith.constant 3 : i32
    %72 = arith.addi %0, %c3_i32_57 : i32
    %c0_58 = arith.constant 0 : index
    %73 = arith.index_cast %72 : i32 to index
    %c1_59 = arith.constant 1 : index
    %c0_60 = arith.constant 0 : index
    %74 = vector.load %arg2[%c0_58, %73, %c1_59, %c0_60] : memref<1x4x4x64xbf16, #tpu.memory_space<vmem>>, vector<1x1x1x64xbf16>
    %75 = vector.shape_cast %74 : vector<1x1x1x64xbf16> to vector<1x1x64xbf16>
    %c3_i32_61 = arith.constant 3 : i32
    %76 = arith.addi %0, %c3_i32_61 : i32
    %c0_62 = arith.constant 0 : index
    %77 = arith.index_cast %76 : i32 to index
    %c2_63 = arith.constant 2 : index
    %c0_64 = arith.constant 0 : index
    %78 = vector.load %arg2[%c0_62, %77, %c2_63, %c0_64] : memref<1x4x4x64xbf16, #tpu.memory_space<vmem>>, vector<1x1x1x64xbf16>
    %79 = vector.shape_cast %78 : vector<1x1x1x64xbf16> to vector<1x1x64xbf16>
    %c3_i32_65 = arith.constant 3 : i32
    %80 = arith.addi %0, %c3_i32_65 : i32
    %c0_66 = arith.constant 0 : index
    %81 = arith.index_cast %80 : i32 to index
    %c3_67 = arith.constant 3 : index
    %c0_68 = arith.constant 0 : index
    %82 = vector.load %arg2[%c0_66, %81, %c3_67, %c0_68] : memref<1x4x4x64xbf16, #tpu.memory_space<vmem>>, vector<1x1x1x64xbf16>
    %83 = vector.shape_cast %82 : vector<1x1x1x64xbf16> to vector<1x1x64xbf16>
    %84 = tpu.concatenate %71, %75, %79, %83 in 2 : vector<1x1x64xbf16>, vector<1x1x64xbf16>, vector<1x1x64xbf16>, vector<1x1x64xbf16> -> vector<1x1x256xbf16>
    %85 = vector.shape_cast %84 : vector<1x1x256xbf16> to vector<1x256xbf16>
    %c3_69 = arith.constant 3 : index
    %c0_70 = arith.constant 0 : index
    %c0_71 = arith.constant 0 : index
    %86 = vector.load %arg3[%c3_69, %c0_70, %c0_71] : memref<4x256x128xbf16, #tpu.memory_space<vmem>>, vector<1x256x128xbf16>
    %87 = vector.shape_cast %86 : vector<1x256x128xbf16> to vector<256x128xbf16>
    %cst_72 = arith.constant dense<0.000000e+00> : vector<1x128xf32>
    %88 = tpu.matmul %85, %87, %cst_72 {dimension_numbers = #tpu.dot_dimension_numbers<[1], [0], [0], [1], [0, 0, 1, 1], [], []>} : vector<1x256xbf16>, vector<256x128xbf16>, vector<1x128xf32> -> vector<1x128xf32>
    %89 = arith.addf %67, %88 : vector<1x128xf32>
    %c0_73 = arith.constant 0 : index
    %c0_74 = arith.constant 0 : index
    %90 = vector.load %arg4[%c0_73, %c0_74] : memref<1x128xf32, #tpu.memory_space<vmem>>, vector<1x128xf32>
    %91 = arith.addf %89, %90 : vector<1x128xf32>
    %92 = vector.shape_cast %91 : vector<1x128xf32> to vector<1x1x128xf32>
    %c0_75 = arith.constant 0 : index
    %c0_76 = arith.constant 0 : index
    %c0_77 = arith.constant 0 : index
    %c0_78 = arith.constant 0 : index
    %93 = vector.load %arg5[%c0_75, %c0_76, %c0_77, %c0_78] : memref<1x1x1x128xf32, #tpu.memory_space<vmem>>, vector<1x1x1x128xf32>
    %94 = vector.shape_cast %93 : vector<1x1x1x128xf32> to vector<1x1x128xf32>
    %95 = vector.shape_cast %92 : vector<1x1x128xf32> to vector<1x1x1x128xf32>
    tpu.vector_store %arg5[%c0_75, %c0_76, %c0_77, %c0_78], %95 {strides = array<i32>} : memref<1x1x1x128xf32, #tpu.memory_space<vmem>>, vector<1x1x1x128xf32>,
    return
  }
  func.func @transform_0(%arg0: i32, %arg1: i32) -> (i32, i32, i32, i32) {
    %c0_i32 = arith.constant 0 : i32
    %c0_i32_0 = arith.constant 0 : i32
    %c0_i32_1 = arith.constant 0 : i32
    %c0_i32_2 = arith.constant 0 : i32
    return %arg0, %c0_i32, %c0_i32_0, %c0_i32_1 : i32, i32, i32, i32
  }
  func.func @transform_1(%arg0: i32, %arg1: i32) -> (i32, i32, i32) {
    %c0_i32 = arith.constant 0 : i32
    %c0_i32_0 = arith.constant 0 : i32
    %c0_i32_1 = arith.constant 0 : i32
    %c0_i32_2 = arith.constant 0 : i32
    return %c0_i32, %c0_i32_0, %c0_i32_1 : i32, i32, i32
  }
  func.func @transform_2(%arg0: i32, %arg1: i32) -> (i32, i32) {
    %c0_i32 = arith.constant 0 : i32
    %c0_i32_0 = arith.constant 0 : i32
    %c0_i32_1 = arith.constant 0 : i32
    return %c0_i32, %c0_i32_0 : i32, i32
  }
  func.func @transform_3(%arg0: i32, %arg1: i32) -> (i32, i32, i32, i32) {
    %c0_i32 = arith.constant 0 : i32
    %c0_i32_0 = arith.constant 0 : i32
    %c0_i32_1 = arith.constant 0 : i32
    return %arg0, %arg1, %c0_i32, %c0_i32_0 : i32, i32, i32, i32
  }
}

</mosaic_0001>

<llo_original>
// kernel: patchgan_forward.6
$region0: #{patchgan_forward.6}
  #allocation0 [shape = 'u32[]', space=smem, size = 0x4, offset = 0x4, fixed_abs, tag = 'smem constant byte address 0x4 - core index']
  #allocation1 [shape = 'u32[144,128]{1,0:T(1,128)}', space=vmem, size = 0x12000, scoped, tag = 'internal scratch']
  %s0 = inlined_call_operand.vmem [shape: bf16[2,9,9,16], index: 0, kind: input, shape index: {}]
  %s1 = inlined_call_operand.vmem [shape: bf16[2,32,128], index: 1, kind: input, shape index: {}]
  %s2 = inlined_call_operand.vmem [shape: f32[1,128], index: 2, kind: input, shape index: {}]
  %s3 = inlined_call_operand.vmem [shape: bf16[2,8,8,128], index: 3, kind: output, shape index: {}]
  %s4 = sld [smem:[#allocation0]]
  $region45: #{patchgan_forward.6} parent=0
    _
  %s6 = ssub.s32 1, %s4
  %s7 = scalar_select 0, %s6, %s4
  loop: start=0, step=1, limit=4
  $region2: #{patchgan_forward.6} parent=0 // loop_pre_header
    _
  $region3: #{patchgan_forward.6} parent=0 // loop_header
    %s9 = sphi 0, %s13
    %p10 = scmp.ge.s32.totalorder %s9, 4
    %s16 = sphi 0, %s28
    %s17 = sphi 0, %s24
    %s18 = sphi 0, %s16
    %s19 = sphi 0, %s17
    %s20 = sphi 0, %s18
    %s21 = sphi 0, %s19
    %s31 = sphi 0, %s33
    %s34 = sphi 0, %s31
    %s35 = sphi 0, %s34
    %s51 = sphi 0, %s35
    %s55 = sphi 0, %s55
    %s57 = sphi 0, %s55
    %s58 = sphi 0, %s57
    %s72 = sphi 0, %s58
    %s76 = sphi 0, %s76
    %s78 = sphi 0, %s76
    %s79 = sphi 0, %s78
    %s93 = sphi 0, %s79
    %s101 = sphi 0, %s103
    %s104 = sphi 0, %s101
    %s105 = sphi 0, %s104
    %s121 = sphi 0, %s105
  $region4: #{patchgan_forward.6} parent=0 // loop_header_branch
    %12 = sbr.rel (%p10) target = $region8
  $region5: #{patchgan_forward.6} parent=0 // loop_body
    %s14 = ssub.s32 %s9, 1
    %s15 = ssub.s32 %s9, 2
    %s22 = sadd.s32 1, %s17
    %p23 = scmp.ge.s32.totalorder %s22, 1
    %s24 = scalar_select %p23, 0, %s22
    %s25 = sadd.s32 1, %s16
    %s26 = scalar_select %p23, %s25, %s16
    %p27 = scmp.ge.s32.totalorder %s26, 2
    %s28 = scalar_select %p27, 0, %s26
    %s29 = ssub.s32 %s16, %s28
    %p30 = scmp.eq.s32.totalorder %s29, 0
    %s32 = sadd.s32 %s31, 1
    %s33 = scalar_select %p30, %s31, %s32
    %p36 = pneg %p30
    %p37 = scmp.eq.s32.totalorder %s9, 1
    %p38 = por %p36, %p37
    %p39 = scmp.ne.s32.totalorder %s31, %s34
    %p40 = scmp.eq.s32.totalorder %s9, 0
    %p41 = por %p39, %p40
    %p42 = scmp.ne.s32.totalorder %s31, %s34
    %p43 = scmp.eq.s32.totalorder %s14, 1
    %p44 = por %p42, %p43
    %p45 = scmp.ne.s32.totalorder %s34, %s35
    %p46 = scmp.eq.s32.totalorder %s14, 0
    %p47 = por %p45, %p46
    %p48 = scmp.ne.s32.totalorder %s34, %s35
    %p49 = scmp.eq.s32.totalorder %s15, 1
    %p50 = por %p48, %p49
    %p52 = scmp.ne.s32.totalorder %s35, %s51
    %p53 = scmp.eq.s32.totalorder %s15, 0
    %p54 = por %p52, %p53
    %s56 = sadd.s32 %s55, 1
    %p59 = scmp.eq.s32.totalorder %s9, 1
    %p60 = scmp.ne.s32.totalorder %s55, %s57
    %p61 = scmp.eq.s32.totalorder %s9, 0
    %p62 = por %p60, %p61
    %p63 = scmp.ne.s32.totalorder %s55, %s57
    %p64 = scmp.eq.s32.totalorder %s14, 1
    %p65 = por %p63, %p64
    %p66 = scmp.ne.s32.totalorder %s57, %s58
    %p67 = scmp.eq.s32.totalorder %s14, 0
    %p68 = por %p66, %p67
    %p69 = scmp.ne.s32.totalorder %s57, %s58
    %p70 = scmp.eq.s32.totalorder %s15, 1
    %p71 = por %p69, %p70
    %p73 = scmp.ne.s32.totalorder %s58, %s72
    %p74 = scmp.eq.s32.totalorder %s15, 0
    %p75 = por %p73, %p74
    %s77 = sadd.s32 %s76, 1
    %p80 = scmp.eq.s32.totalorder %s9, 1
    %p81 = scmp.ne.s32.totalorder %s76, %s78
    %p82 = scmp.eq.s32.totalorder %s9, 0
    %p83 = por %p81, %p82
    %p84 = scmp.ne.s32.totalorder %s76, %s78
    %p85 = scmp.eq.s32.totalorder %s14, 1
    %p86 = por %p84, %p85
    %p87 = scmp.ne.s32.totalorder %s78, %s79
    %p88 = scmp.eq.s32.totalorder %s14, 0
    %p89 = por %p87, %p88
    %p90 = scmp.ne.s32.totalorder %s78, %s79
    %p91 = scmp.eq.s32.totalorder %s15, 1
    %p92 = por %p90, %p91
    %p94 = scmp.ne.s32.totalorder %s79, %s93
    %p95 = scmp.eq.s32.totalorder %s15, 0
    %p96 = por %p94, %p95
    %s97 = ssub.s32 %s16, %s28
    %s98 = ssub.s32 %s17, %s24
    %s99 = sor.u32 %s97, %s98
    %p100 = scmp.eq.s32.totalorder %s99, 0
    %s102 = sadd.s32 %s101, 1
    %s103 = scalar_select %p100, %s101, %s102
    %p106 = pneg %p100
    %p107 = scmp.eq.s32.totalorder %s9, 1
    %p108 = por %p106, %p107
    %p109 = scmp.ne.s32.totalorder %s101, %s104
    %p110 = scmp.eq.s32.totalorder %s9, 0
    %p111 = por %p109, %p110
    %p112 = scmp.ne.s32.totalorder %s101, %s104
    %p113 = scmp.eq.s32.totalorder %s14, 1
    %p114 = por %p112, %p113
    %p115 = scmp.ne.s32.totalorder %s104, %s105
    %p116 = scmp.eq.s32.totalorder %s14, 0
    %p117 = por %p115, %p116
    %p118 = scmp.ne.s32.totalorder %s104, %s105
    %p119 = scmp.eq.s32.totalorder %s15, 1
    %p120 = por %p118, %p119
    %p122 = scmp.ne.s32.totalorder %s105, %s121
    %p123 = scmp.eq.s32.totalorder %s15, 0
    %p124 = por %p122, %p123
    %p125 = scmp.le.s32.totalorder 1, %s9
    %p126 = scmp.lt.s32.totalorder %s9, 3
    %p127 = pnand %p125, %p126
    %p128 = pneg %p127
    // Predicated region
    $region9: #{patchgan_forward.6} parent=5 // pred_check
      _
    $region10: #{patchgan_forward.6} parent=5 // pred_check_branch
      %130 = sbr.rel (%p127) target = $region12
    $region11: #{patchgan_forward.6} parent=5 // pred_region
      %s131 = ssub.s32 %s9, 1
      // Predicated region
      $region13: #{patchgan_forward.6} parent=11 // pred_check
        %p132 = pneg %p68
      $region14: #{patchgan_forward.6} parent=11 // pred_check_branch
        %134 = sbr.rel (%p132) target = $region16
      $region15: #{patchgan_forward.6} parent=11 // pred_region
        _
      $region16: #{patchgan_forward.6} parent=11 // pred_fallthru
        _
      // Predicated region
      $region17: #{patchgan_forward.6} parent=11 // pred_check
        %p135 = pneg %p89
      $region18: #{patchgan_forward.6} parent=11 // pred_check_branch
        %137 = sbr.rel (%p135) target = $region20
      $region19: #{patchgan_forward.6} parent=11 // pred_region
        _
      $region20: #{patchgan_forward.6} parent=11 // pred_fallthru
        _
    $region12: #{patchgan_forward.6} parent=5 // pred_fallthru
      _
    %p138 = scmp.lt.s32.totalorder %s9, 2
    // Predicated region
    $region21: #{patchgan_forward.6} parent=5 // pred_check
      %p139 = pneg %p138
    $region22: #{patchgan_forward.6} parent=5 // pred_check_branch
      %141 = sbr.rel (%p139) target = $region24
    $region23: #{patchgan_forward.6} parent=5 // pred_region
      // Predicated region
      $region25: #{patchgan_forward.6} parent=23 // pred_check
        %p142 = pneg %p41
      $region26: #{patchgan_forward.6} parent=23 // pred_check_branch
        %144 = sbr.rel (%p142) target = $region28
      $region27: #{patchgan_forward.6} parent=23 // pred_region
        %p145 = scmp.lt.s32.totalorder %s16, 1
        %s146 = scalar_select %p145, %s16, 1
        %s147 = smul.addr %s146, 18
        %s148 = smul.addr %s147, 4
        %s149 = scalar_lea.vmem %s0, %s148
      $region28: #{patchgan_forward.6} parent=23 // pred_fallthru
        _
    $region24: #{patchgan_forward.6} parent=5 // pred_fallthru
      _
    %p150 = scmp.le.s32.totalorder 1, %s9
    %p151 = scmp.lt.s32.totalorder %s9, 3
    %p152 = pnand %p150, %p151
    %p153 = pneg %p152
    // Predicated region
    $region29: #{patchgan_forward.6} parent=5 // pred_check
      _
    $region30: #{patchgan_forward.6} parent=5 // pred_check_branch
      %155 = sbr.rel (%p152) target = $region32
    $region31: #{patchgan_forward.6} parent=5 // pred_region
      %s156 = ssub.s32 %s9, 1
      %p157 = scmp.lt.s32.totalorder %s18, 1
      %s158 = scalar_select %p157, %s18, 1
      %s159 = smul.addr %s158, 18
      %s160 = smul.addr %s159, 4
      %s161 = scalar_lea.vmem %s0, %s160
      %p162 = pneg %p47
      %p163 = pneg %p44
      %p164 = pneg %p68
      %p165 = pneg %p65
      %p166 = pneg %p89
      %p167 = pneg %p86
      %p168 = pneg %p117
      %p169 = pneg %p114
      %s170 = smul.u32 8, %s19
      %p171 = scmp.lt.s32.totalorder %s18, 1
      %s172 = scalar_select %p171, %s18, 1
      %p173 = scmp.lt.s32.totalorder %s170, 7
      %s174 = scalar_select %p173, %s170, 7
      %s175 = smul.addr %s172, 8
      %s176 = sadd.s32 %s174, %s175
      %s177 = smul.addr %s176, 4
      %s178 = scalar_lea.vmem %s3, %s177
      %p179 = scmp.lt.s32.totalorder %s18, 1
      %s180 = scalar_select %p179, %s18, 1
      %s181 = smul.addr %s180, 18
      %s182 = smul.addr %s181, 4
      %s183 = scalar_lea.vmem %s0, %s182
      %s184 = smul.u32 8, %s19
      %p185 = scmp.lt.s32.totalorder %s18, 1
      %s186 = scalar_select %p185, %s18, 1
      %p187 = scmp.lt.s32.totalorder %s184, 7
      %s188 = scalar_select %p187, %s184, 7
      %s189 = smul.addr %s186, 8
      %s190 = sadd.s32 %s188, %s189
      %s191 = smul.addr %s190, 4
      %s192 = scalar_lea.vmem %s3, %s191
      %s193 = smul.u32 8, %s19
      %s195 = smul.u32 %s19, 8
      %s196 = smul.u32 %s195, 2
      %s197 = smul.addr %s196, 4
      %s198 = scalar_lea.vmem %s183, %s197
      %v199 = vld [vmem:[%s198] sm:$0xf]
      %v200 = vld [vmem:[%s198 + $0x8] sm:$0xf]
      %v201 = vld [vmem:[%s198 + $0x10] sm:$0xf]
      %v202 = vld [vmem:[%s198 + $0x18] sm:$0xf]
      %v203 = vld [vmem:[%s198 + $0x20] sm:$0xf]
      %v204 = vld [vmem:[%s198 + $0x28] sm:$0xf]
      %v205 = vld [vmem:[%s198 + $0x30] sm:$0xf]
      %v206 = vld [vmem:[%s198 + $0x38] sm:$0xf]
      %v207 = vld [vmem:[%s198 + $0x4] sm:$0x1]
      %v208 = vld [vmem:[%s198 + $0xc] sm:$0x1]
      %v209 = vld [vmem:[%s198 + $0x14] sm:$0x1]
      %v210 = vld [vmem:[%s198 + $0x1c] sm:$0x1]
      %v211 = vld [vmem:[%s198 + $0x24] sm:$0x1]
      %v212 = vld [vmem:[%s198 + $0x2c] sm:$0x1]
      %v213 = vld [vmem:[%s198 + $0x34] sm:$0x1]
      %v214 = vld [vmem:[%s198 + $0x3c] sm:$0x1]
      %v231 = vunpack.c.l.b16 %v199
      %v232 = vunpack.c.l.b16 %v207
      %v233 = vunpack.c.l.b16 %v200
      %v234 = vunpack.c.l.b16 %v208
      %v235 = vunpack.c.l.b16 %v201
      %v236 = vunpack.c.l.b16 %v209
      %v237 = vunpack.c.l.b16 %v202
      %v238 = vunpack.c.l.b16 %v210
      %v239 = vunpack.c.l.b16 %v203
      %v240 = vunpack.c.l.b16 %v211
      %v241 = vunpack.c.l.b16 %v204
      %v242 = vunpack.c.l.b16 %v212
      %v243 = vunpack.c.l.b16 %v205
      %v244 = vunpack.c.l.b16 %v213
      %v245 = vunpack.c.l.b16 %v206
      %v246 = vunpack.c.l.b16 %v214
      %v247 = vpack.c.b16 %v232, %v231
      %v248 = vpack.c.b16 %v234, %v233
      %v249 = vpack.c.b16 %v236, %v235
      %v250 = vpack.c.b16 %v238, %v237
      %v251 = vpack.c.b16 %v240, %v239
      %v252 = vpack.c.b16 %v242, %v241
      %v253 = vpack.c.b16 %v244, %v243
      %v254 = vpack.c.b16 %v246, %v245
      %v256 = vshrl.u32 %v247, 16
      %v258 = vshll.u32 %v247, 16
      %v260 = vrot.slane %v258, 1
      %v261 = vor.u32 %v256, %v260
      %v263 = vshrl.u32 %v248, 16
      %v265 = vshll.u32 %v248, 16
      %v267 = vrot.slane %v265, 1
      %v268 = vor.u32 %v263, %v267
      %v270 = vshrl.u32 %v249, 16
      %v272 = vshll.u32 %v249, 16
      %v274 = vrot.slane %v272, 1
      %v275 = vor.u32 %v270, %v274
      %v277 = vshrl.u32 %v250, 16
      %v279 = vshll.u32 %v250, 16
      %v281 = vrot.slane %v279, 1
      %v282 = vor.u32 %v277, %v281
      %v284 = vshrl.u32 %v251, 16
      %v286 = vshll.u32 %v251, 16
      %v288 = vrot.slane %v286, 1
      %v289 = vor.u32 %v284, %v288
      %v291 = vshrl.u32 %v252, 16
      %v293 = vshll.u32 %v252, 16
      %v295 = vrot.slane %v293, 1
      %v296 = vor.u32 %v291, %v295
      %v298 = vshrl.u32 %v253, 16
      %v300 = vshll.u32 %v253, 16
      %v302 = vrot.slane %v300, 1
      %v303 = vor.u32 %v298, %v302
      %v305 = vshrl.u32 %v254, 16
      %v307 = vshll.u32 %v254, 16
      %v309 = vrot.slane %v307, 1
      %v310 = vor.u32 %v305, %v309
      %311 = vrot.lane.b32.xlu0 %v261, 16
      %v312 = vpop.permute.xlu0 %311
      %313 = vrot.lane.b32.xlu0 %v268, 16
      %v314 = vpop.permute.xlu0 %313
      %315 = vrot.lane.b32.xlu0 %v275, 16
      %v316 = vpop.permute.xlu0 %315
      %317 = vrot.lane.b32.xlu0 %v282, 16
      %v318 = vpop.permute.xlu0 %317
      %319 = vrot.lane.b32.xlu0 %v289, 16
      %v320 = vpop.permute.xlu0 %319
      %321 = vrot.lane.b32.xlu0 %v296, 16
      %v322 = vpop.permute.xlu0 %321
      %323 = vrot.lane.b32.xlu0 %v303, 16
      %v324 = vpop.permute.xlu0 %323
      %325 = vrot.lane.b32.xlu0 %v310, 16
      %v326 = vpop.permute.xlu0 %325
      %vm327 = vcmask 130048
      %v330 = vsel %vm327, %v199, %v312
      %v333 = vsel %vm327, %v200, %v314
      %v336 = vsel %vm327, %v201, %v316
      %v339 = vsel %vm327, %v202, %v318
      %v342 = vsel %vm327, %v203, %v320
      %v345 = vsel %vm327, %v204, %v322
      %v348 = vsel %vm327, %v205, %v324
      %v351 = vsel %vm327, %v206, %v326
      %v352 = vld [vmem:[%s1] sm:$0xf]
      %v353 = vld [vmem:[%s1 + $0x4] sm:$0xf]
      %v354 = vld [vmem:[%s1 + $0x8] sm:$0xf]
      %v355 = vld [vmem:[%s1 + $0xc] sm:$0xf]
      %s356 = sadd.s32 %s195, 1
      %s357 = smul.u32 %s356, 2
      %s358 = smul.addr %s357, 4
      %s359 = scalar_lea.vmem %s183, %s358
      %v360 = vld [vmem:[%s359] sm:$0xf]
      %v361 = vld [vmem:[%s359 + $0x8] sm:$0xf]
      %v362 = vld [vmem:[%s359 + $0x10] sm:$0xf]
      %v363 = vld [vmem:[%s359 + $0x18] sm:$0xf]
      %v364 = vld [vmem:[%s359 + $0x20] sm:$0xf]
      %v365 = vld [vmem:[%s359 + $0x28] sm:$0xf]
      %v366 = vld [vmem:[%s359 + $0x30] sm:$0xf]
      %v367 = vld [vmem:[%s359 + $0x38] sm:$0xf]
      %v368 = vld [vmem:[%s359 + $0x4] sm:$0x1]
      %v369 = vld [vmem:[%s359 + $0xc] sm:$0x1]
      %v370 = vld [vmem:[%s359 + $0x14] sm:$0x1]
      %v371 = vld [vmem:[%s359 + $0x1c] sm:$0x1]
      %v372 = vld [vmem:[%s359 + $0x24] sm:$0x1]
      %v373 = vld [vmem:[%s359 + $0x2c] sm:$0x1]
      %v374 = vld [vmem:[%s359 + $0x34] sm:$0x1]
      %v375 = vld [vmem:[%s359 + $0x3c] sm:$0x1]
      %v392 = vunpack.c.l.b16 %v360
      %v393 = vunpack.c.l.b16 %v368
      %v394 = vunpack.c.l.b16 %v361
      %v395 = vunpack.c.l.b16 %v369
      %v396 = vunpack.c.l.b16 %v362
      %v397 = vunpack.c.l.b16 %v370
      %v398 = vunpack.c.l.b16 %v363
      %v399 = vunpack.c.l.b16 %v371
      %v400 = vunpack.c.l.b16 %v364
      %v401 = vunpack.c.l.b16 %v372
      %v402 = vunpack.c.l.b16 %v365
      %v403 = vunpack.c.l.b16 %v373
      %v404 = vunpack.c.l.b16 %v366
      %v405 = vunpack.c.l.b16 %v374
      %v406 = vunpack.c.l.b16 %v367
      %v407 = vunpack.c.l.b16 %v375
      %v408 = vpack.c.b16 %v393, %v392
      %v409 = vpack.c.b16 %v395, %v394
      %v410 = vpack.c.b16 %v397, %v396
      %v411 = vpack.c.b16 %v399, %v398
      %v412 = vpack.c.b16 %v401, %v400
      %v413 = vpack.c.b16 %v403, %v402
      %v414 = vpack.c.b16 %v405, %v404
      %v415 = vpack.c.b16 %v407, %v406
      %v417 = vshrl.u32 %v408, 16
      %v419 = vshll.u32 %v408, 16
      %v421 = vrot.slane %v419, 1
      %v422 = vor.u32 %v417, %v421
      %v424 = vshrl.u32 %v409, 16
      %v426 = vshll.u32 %v409, 16
      %v428 = vrot.slane %v426, 1
      %v429 = vor.u32 %v424, %v428
      %v431 = vshrl.u32 %v410, 16
      %v433 = vshll.u32 %v410, 16
      %v435 = vrot.slane %v433, 1
      %v436 = vor.u32 %v431, %v435
      %v438 = vshrl.u32 %v411, 16
      %v440 = vshll.u32 %v411, 16
      %v442 = vrot.slane %v440, 1
      %v443 = vor.u32 %v438, %v442
      %v445 = vshrl.u32 %v412, 16
      %v447 = vshll.u32 %v412, 16
      %v449 = vrot.slane %v447, 1
      %v450 = vor.u32 %v445, %v449
      %v452 = vshrl.u32 %v413, 16
      %v454 = vshll.u32 %v413, 16
      %v456 = vrot.slane %v454, 1
      %v457 = vor.u32 %v452, %v456
      %v459 = vshrl.u32 %v414, 16
      %v461 = vshll.u32 %v414, 16
      %v463 = vrot.slane %v461, 1
      %v464 = vor.u32 %v459, %v463
      %v466 = vshrl.u32 %v415, 16
      %v468 = vshll.u32 %v415, 16
      %v470 = vrot.slane %v468, 1
      %v471 = vor.u32 %v466, %v470
      %472 = vrot.lane.b32.xlu0 %v422, 16
      %v473 = vpop.permute.xlu0 %472
      %474 = vrot.lane.b32.xlu0 %v429, 16
      %v475 = vpop.permute.xlu0 %474
      %476 = vrot.lane.b32.xlu0 %v436, 16
      %v477 = vpop.permute.xlu0 %476
      %478 = vrot.lane.b32.xlu0 %v443, 16
      %v479 = vpop.permute.xlu0 %478
      %480 = vrot.lane.b32.xlu0 %v450, 16
      %v481 = vpop.permute.xlu0 %480
      %482 = vrot.lane.b32.xlu0 %v457, 16
      %v483 = vpop.permute.xlu0 %482
      %484 = vrot.lane.b32.xlu0 %v464, 16
      %v485 = vpop.permute.xlu0 %484
      %486 = vrot.lane.b32.xlu0 %v471, 16
      %v487 = vpop.permute.xlu0 %486
      %v490 = vsel %vm327, %v360, %v473
      %v493 = vsel %vm327, %v361, %v475
      %v496 = vsel %vm327, %v362, %v477
      %v499 = vsel %vm327, %v363, %v479
      %v502 = vsel %vm327, %v364, %v481
      %v505 = vsel %vm327, %v365, %v483
      %v508 = vsel %vm327, %v366, %v485
      %v511 = vsel %vm327, %v367, %v487
      %s512 = scalar_lea.vmem %s1, 16
      %v513 = vld [vmem:[%s512] sm:$0xf]
      %v514 = vld [vmem:[%s512 + $0x4] sm:$0xf]
      %v515 = vld [vmem:[%s512 + $0x8] sm:$0xf]
      %v516 = vld [vmem:[%s512 + $0xc] sm:$0xf]
      %v525 = vunpack.c.l.b16 %v490
      %v526 = vunpack.c.l.b16 %v493
      %v527 = vunpack.c.l.b16 %v496
      %v528 = vunpack.c.l.b16 %v499
      %v529 = vunpack.c.l.b16 %v502
      %v530 = vunpack.c.l.b16 %v505
      %v531 = vunpack.c.l.b16 %v508
      %v532 = vunpack.c.l.b16 %v511
      %v533 = vpack.c.b16 %v526, %v525
      %v534 = vpack.c.b16 %v528, %v527
      %v535 = vpack.c.b16 %v530, %v529
      %v536 = vpack.c.b16 %v532, %v531
      %v541 = vunpack.c.l.b16 %v513
      %v542 = vunpack.c.l.b16 %v514
      %v543 = vunpack.c.l.b16 %v515
      %v544 = vunpack.c.l.b16 %v516
      %v545 = vpack.c.b16 %v542, %v541
      %v546 = vpack.c.b16 %v544, %v543
      %vm549 = vcmask 261120
      %v551 = vsel %vm549, %v533, 0
      %v554 = vsel %vm549, %v534, 0
      %v557 = vsel %vm549, %v535, 0
      %v560 = vsel %vm549, %v536, 0
      %562 = vmatprep.subr.bf16.mxu0 0
      %563 = vmatpush1.bf16.msra.mxu0 %v545
      %564 = vmatprep.subr.bf16.mxu0 0
      %565 = vmatpush1.bf16.msra.mxu0 %v546
      %566 = vmatprep.subr.bf16.mxu0 0
      %567 = vmatpush1.bf16.msra.mxu0 0
      %568 = vmatprep.subr.bf16.mxu0 0
      %569 = vmatpush1.bf16.msra.mxu0 0
      %570 = vmatprep.subr.bf16.mxu0 0
      %571 = vmatpush1.bf16.msra.mxu0 0
      %572 = vmatprep.subr.bf16.mxu0 0
      %573 = vmatpush1.bf16.msra.mxu0 0
      %574 = vmatprep.subr.bf16.mxu0 0
      %575 = vmatpush1.bf16.msra.mxu0 0
      %576 = vmatprep.subr.bf16.mxu0 0
      %577 = vmatpush1.bf16.msra.mxu0 0
      %578 = vmatprep.subr.bf16.mxu0 0
      %579 = vmatpush1.bf16.msra.mxu0 0
      %580 = vmatprep.subr.bf16.mxu0 0
      %581 = vmatpush1.bf16.msra.mxu0 0
      %582 = vmatprep.subr.bf16.mxu0 0
      %583 = vmatpush1.bf16.msra.mxu0 0
      %584 = vmatprep.subr.bf16.mxu0 0
      %585 = vmatpush1.bf16.msra.mxu0 0
      %586 = vmatprep.subr.bf16.mxu0 0
      %587 = vmatpush1.bf16.msra.mxu0 0
      %588 = vmatprep.subr.bf16.mxu0 0
      %589 = vmatpush1.bf16.msra.mxu0 0
      %590 = vmatprep.subr.bf16.mxu0 0
      %591 = vmatpush1.bf16.msra.mxu0 0
      %592 = vmatprep.subr.bf16.mxu0 0
      %593 = vmatpush1.bf16.msra.mxu0 0
      %594 = vmatprep.mubr.bf16.mxu0 0
      %595 = vmatmul.mubr.bf16.gmra.mrb[0].mxu0 %v551
      %v596 = vpop.f32.mrb[0].mxu0
      %v597 = vadd.f32 0.0, %v596
      %v598 = vpop.f32.mrb[0].mxu0
      %v599 = vpop.f32.mrb[0].mxu0
      %v600 = vadd.f32 0.0, %v599
      %v601 = vpop.f32.mrb[0].mxu0
      %602 = vmatprep.mubr.bf16.mxu0 0
      %603 = vmatmul.mubr.bf16.gmra.mrb[0].mxu0 %v554
      %v604 = vpop.f32.mrb[0].mxu0
      %v605 = vadd.f32 0.0, %v604
      %v606 = vpop.f32.mrb[0].mxu0
      %v607 = vpop.f32.mrb[0].mxu0
      %v608 = vadd.f32 0.0, %v607
      %v609 = vpop.f32.mrb[0].mxu0
      %610 = vmatprep.mubr.bf16.mxu0 0
      %611 = vmatmul.mubr.bf16.gmra.mrb[0].mxu0 %v557
      %v612 = vpop.f32.mrb[0].mxu0
      %v613 = vadd.f32 0.0, %v612
      %v614 = vpop.f32.mrb[0].mxu0
      %v615 = vpop.f32.mrb[0].mxu0
      %v616 = vadd.f32 0.0, %v615
      %v617 = vpop.f32.mrb[0].mxu0
      %618 = vmatprep.mubr.bf16.mxu0 0
      %619 = vmatmul.mubr.bf16.gmra.mrb[0].mxu0 %v560
      %v620 = vpop.f32.mrb[0].mxu0
      %v621 = vadd.f32 0.0, %v620
      %v622 = vpop.f32.mrb[0].mxu0
      %v623 = vpop.f32.mrb[0].mxu0
      %v624 = vadd.f32 0.0, %v623
      %v625 = vpop.f32.mrb[0].mxu0
      %626 = vdwg.mxu0
      %v635 = vunpack.c.l.b16 %v330
      %v636 = vunpack.c.l.b16 %v333
      %v637 = vunpack.c.l.b16 %v336
      %v638 = vunpack.c.l.b16 %v339
      %v639 = vunpack.c.l.b16 %v342
      %v640 = vunpack.c.l.b16 %v345
      %v641 = vunpack.c.l.b16 %v348
      %v642 = vunpack.c.l.b16 %v351
      %v643 = vpack.c.b16 %v636, %v635
      %v644 = vpack.c.b16 %v638, %v637
      %v645 = vpack.c.b16 %v640, %v639
      %v646 = vpack.c.b16 %v642, %v641
      %v651 = vunpack.c.l.b16 %v352
      %v652 = vunpack.c.l.b16 %v353
      %v653 = vunpack.c.l.b16 %v354
      %v654 = vunpack.c.l.b16 %v355
      %v655 = vpack.c.b16 %v652, %v651
      %v656 = vpack.c.b16 %v654, %v653
      %v660 = vsel %vm549, %v643, 0
      %v663 = vsel %vm549, %v644, 0
      %v666 = vsel %vm549, %v645, 0
      %v669 = vsel %vm549, %v646, 0
      %671 = vmatprep.subr.bf16.mxu0 0
      %672 = vmatpush1.bf16.msra.mxu0 %v655
      %673 = vmatprep.subr.bf16.mxu0 0
      %674 = vmatpush1.bf16.msra.mxu0 %v656
      %675 = vmatprep.subr.bf16.mxu0 0
      %676 = vmatpush1.bf16.msra.mxu0 0
      %677 = vmatprep.subr.bf16.mxu0 0
      %678 = vmatpush1.bf16.msra.mxu0 0
      %679 = vmatprep.subr.bf16.mxu0 0
      %680 = vmatpush1.bf16.msra.mxu0 0
      %681 = vmatprep.subr.bf16.mxu0 0
      %682 = vmatpush1.bf16.msra.mxu0 0
      %683 = vmatprep.subr.bf16.mxu0 0
      %684 = vmatpush1.bf16.msra.mxu0 0
      %685 = vmatprep.subr.bf16.mxu0 0
      %686 = vmatpush1.bf16.msra.mxu0 0
      %687 = vmatprep.subr.bf16.mxu0 0
      %688 = vmatpush1.bf16.msra.mxu0 0
      %689 = vmatprep.subr.bf16.mxu0 0
      %690 = vmatpush1.bf16.msra.mxu0 0
      %691 = vmatprep.subr.bf16.mxu0 0
      %692 = vmatpush1.bf16.msra.mxu0 0
      %693 = vmatprep.subr.bf16.mxu0 0
      %694 = vmatpush1.bf16.msra.mxu0 0
      %695 = vmatprep.subr.bf16.mxu0 0
      %696 = vmatpush1.bf16.msra.mxu0 0
      %697 = vmatprep.subr.bf16.mxu0 0
      %698 = vmatpush1.bf16.msra.mxu0 0
      %699 = vmatprep.subr.bf16.mxu0 0
      %700 = vmatpush1.bf16.msra.mxu0 0
      %701 = vmatprep.subr.bf16.mxu0 0
      %702 = vmatpush1.bf16.msra.mxu0 0
      %703 = vmatprep.mubr.bf16.mxu0 0
      %704 = vmatmul.mubr.bf16.gmra.mrb[0].mxu0 %v660
      %v705 = vpop.f32.mrb[0].mxu0
      %v706 = vadd.f32 %v597, %v705
      %v707 = vpop.f32.mrb[0].mxu0
      %v708 = vpop.f32.mrb[0].mxu0
      %v709 = vadd.f32 %v600, %v708
      %v710 = vpop.f32.mrb[0].mxu0
      %711 = vmatprep.mubr.bf16.mxu0 0
      %712 = vmatmul.mubr.bf16.gmra.mrb[0].mxu0 %v663
      %v713 = vpop.f32.mrb[0].mxu0
      %v714 = vadd.f32 %v605, %v713
      %v715 = vpop.f32.mrb[0].mxu0
      %v716 = vpop.f32.mrb[0].mxu0
      %v717 = vadd.f32 %v608, %v716
      %v718 = vpop.f32.mrb[0].mxu0
      %719 = vmatprep.mubr.bf16.mxu0 0
      %720 = vmatmul.mubr.bf16.gmra.mrb[0].mxu0 %v666
      %v721 = vpop.f32.mrb[0].mxu0
      %v722 = vadd.f32 %v613, %v721
      %v723 = vpop.f32.mrb[0].mxu0
      %v724 = vpop.f32.mrb[0].mxu0
      %v725 = vadd.f32 %v616, %v724
      %v726 = vpop.f32.mrb[0].mxu0
      %727 = vmatprep.mubr.bf16.mxu0 0
      %728 = vmatmul.mubr.bf16.gmra.mrb[0].mxu0 %v669
      %v729 = vpop.f32.mrb[0].mxu0
      %v730 = vadd.f32 %v621, %v729
      %v731 = vpop.f32.mrb[0].mxu0
      %v732 = vpop.f32.mrb[0].mxu0
      %v733 = vadd.f32 %v624, %v732
      %v734 = vpop.f32.mrb[0].mxu0
      %735 = vdwg.mxu0
      %v736 = vld [vmem:[%s2] sm:$0x1]
      %v738 = vlaneseq
      %v739 = vshrl.u32 %v738, 7
      %v740 = vsub.s32 0, %v739
      %v741 = vrot.slane %v736, %v740
      %v743 = vadd.f32 %v706, %v741
      %v744 = vadd.f32 %v709, %v741
      %v745 = vadd.f32 %v714, %v741
      %v746 = vadd.f32 %v717, %v741
      %v747 = vadd.f32 %v722, %v741
      %v748 = vadd.f32 %v725, %v741
      %v749 = vadd.f32 %v730, %v741
      %v750 = vadd.f32 %v733, %v741
      %vm751 = vcmp.ge.f32.partialorder %v743, 0.0
      %vm752 = vcmp.ge.f32.partialorder %v744, 0.0
      %vm753 = vcmp.ge.f32.partialorder %v745, 0.0
      %vm754 = vcmp.ge.f32.partialorder %v746, 0.0
      %vm755 = vcmp.ge.f32.partialorder %v747, 0.0
      %vm756 = vcmp.ge.f32.partialorder %v748, 0.0
      %vm757 = vcmp.ge.f32.partialorder %v749, 0.0
      %vm758 = vcmp.ge.f32.partialorder %v750, 0.0
      %v759 = vmul.f32 %v743, 0.2
      %v760 = vmul.f32 %v744, 0.2
      %v761 = vmul.f32 %v745, 0.2
      %v762 = vmul.f32 %v746, 0.2
      %v763 = vmul.f32 %v747, 0.2
      %v764 = vmul.f32 %v748, 0.2
      %v765 = vmul.f32 %v749, 0.2
      %v766 = vmul.f32 %v750, 0.2
      %v767 = vsel %vm751, %v743, %v759
      %v768 = vsel %vm752, %v744, %v760
      %v769 = vsel %vm753, %v745, %v761
      %v770 = vsel %vm754, %v746, %v762
      %v771 = vsel %vm755, %v747, %v763
      %v772 = vsel %vm756, %v748, %v764
      %v773 = vsel %vm757, %v749, %v765
      %v774 = vsel %vm758, %v750, %v766
      %v775 = vpack.c.bf16 %v767, %v767
      %v776 = vpack.c.bf16 %v768, %v768
      %v777 = vpack.c.bf16 %v769, %v769
      %v778 = vpack.c.bf16 %v770, %v770
      %v779 = vpack.c.bf16 %v771, %v771
      %v780 = vpack.c.bf16 %v772, %v772
      %v781 = vpack.c.bf16 %v773, %v773
      %v782 = vpack.c.bf16 %v774, %v774
      %783 = vst [vmem:[%s192] sm:$0xf] %v775
      %784 = vst [vmem:[%s192 + $0x4] sm:$0xf] %v776
      %785 = vst [vmem:[%s192 + $0x8] sm:$0xf] %v777
      %786 = vst [vmem:[%s192 + $0xc] sm:$0xf] %v778
      %787 = vst [vmem:[%s192 + $0x10] sm:$0xf] %v779
      %788 = vst [vmem:[%s192 + $0x14] sm:$0xf] %v780
      %789 = vst [vmem:[%s192 + $0x18] sm:$0xf] %v781
      %790 = vst [vmem:[%s192 + $0x1c] sm:$0xf] %v782
      %s791 = smul.u32 8, %s19
      %p792 = scmp.lt.s32.totalorder %s18, 1
      %s793 = scalar_select %p792, %s18, 1
      %p794 = scmp.lt.s32.totalorder %s791, 7
      %s795 = scalar_select %p794, %s791, 7
      %s796 = smul.addr %s793, 8
      %s797 = sadd.s32 %s795, %s796
      %s798 = smul.addr %s797, 4
      %s799 = scalar_lea.vmem %s3, %s798
      // Predicated region
      $region33: #{patchgan_forward.6} parent=31 // pred_check
        %p800 = pneg %p114
      $region34: #{patchgan_forward.6} parent=31 // pred_check_branch
        %802 = sbr.rel (%p800) target = $region36
      $region35: #{patchgan_forward.6} parent=31 // pred_region
        %s803 = smul.u32 8, %s19
      $region36: #{patchgan_forward.6} parent=31 // pred_fallthru
        _
    $region32: #{patchgan_forward.6} parent=5 // pred_fallthru
      _
    %p804 = scmp.le.s32.totalorder 2, %s9
    // Predicated region
    $region37: #{patchgan_forward.6} parent=5 // pred_check
      %p805 = pneg %p804
    $region38: #{patchgan_forward.6} parent=5 // pred_check_branch
      %807 = sbr.rel (%p805) target = $region40
    $region39: #{patchgan_forward.6} parent=5 // pred_region
      %s808 = ssub.s32 %s9, 2
      // Predicated region
      $region41: #{patchgan_forward.6} parent=39 // pred_check
        %p809 = pneg %p120
      $region42: #{patchgan_forward.6} parent=39 // pred_check_branch
        %811 = sbr.rel (%p809) target = $region44
      $region43: #{patchgan_forward.6} parent=39 // pred_region
        %s812 = smul.u32 8, %s21
        %p813 = scmp.lt.s32.totalorder %s20, 1
        %s814 = scalar_select %p813, %s20, 1
        %p815 = scmp.lt.s32.totalorder %s812, 7
        %s816 = scalar_select %p815, %s812, 7
        %s817 = smul.addr %s814, 8
        %s818 = sadd.s32 %s816, %s817
        %s819 = smul.addr %s818, 4
        %s820 = scalar_lea.vmem %s3, %s819
      $region44: #{patchgan_forward.6} parent=39 // pred_fallthru
        _
    $region40: #{patchgan_forward.6} parent=5 // pred_fallthru
      _
  $region6: #{patchgan_forward.6} parent=0 // loop_footer
    %s13 = sadd.s32 1, %s9
  $region7: #{patchgan_forward.6} parent=0 // loop_footer_branch
    %8 = sbr.rel target = $region3
  $region8: #{patchgan_forward.6} parent=0 // loop_exit
    _

// kernel: patchgan_forward.8
$region0: #{patchgan_forward.8}
  #allocation0 [shape = 'u32[]', space=smem, size = 0x4, offset = 0x4, fixed_abs, tag = 'smem constant byte address 0x4 - core index']
  #allocation1 [shape = 'u32[144,128]{1,0:T(1,128)}', space=vmem, size = 0x12000, scoped, tag = 'internal scratch']
  %s0 = inlined_call_operand.vmem [shape: bf16[2,4,4,128], index: 0, kind: input, shape index: {}]
  %s1 = inlined_call_operand.vmem [shape: f32[1,128], index: 1, kind: input, shape index: {}]
  %s2 = inlined_call_operand.vmem [shape: f32[1,128], index: 2, kind: input, shape index: {}]
  %s3 = inlined_call_operand.vmem [shape: bf16[2,4,4,128], index: 3, kind: output, shape index: {}]
  %s4 = sld [smem:[#allocation0]]
  $region45: #{patchgan_forward.8} parent=0
    _
  %s6 = ssub.s32 1, %s4
  %s7 = scalar_select 0, %s6, %s4
  loop: start=0, step=1, limit=4
  $region2: #{patchgan_forward.8} parent=0 // loop_pre_header
    _
  $region3: #{patchgan_forward.8} parent=0 // loop_header
    %s9 = sphi 0, %s13
    %p10 = scmp.ge.s32.totalorder %s9, 4
    %s16 = sphi 0, %s28
    %s17 = sphi 0, %s24
    %s18 = sphi 0, %s16
    %s19 = sphi 0, %s17
    %s20 = sphi 0, %s18
    %s21 = sphi 0, %s19
    %s33 = sphi 0, %s35
    %s36 = sphi 0, %s33
    %s37 = sphi 0, %s36
    %s53 = sphi 0, %s37
    %s57 = sphi 0, %s57
    %s59 = sphi 0, %s57
    %s60 = sphi 0, %s59
    %s74 = sphi 0, %s60
    %s78 = sphi 0, %s78
    %s80 = sphi 0, %s78
    %s81 = sphi 0, %s80
    %s95 = sphi 0, %s81
    %s103 = sphi 0, %s105
    %s106 = sphi 0, %s103
    %s107 = sphi 0, %s106
    %s123 = sphi 0, %s107
  $region4: #{patchgan_forward.8} parent=0 // loop_header_branch
    %12 = sbr.rel (%p10) target = $region8
  $region5: #{patchgan_forward.8} parent=0 // loop_body
    %s14 = ssub.s32 %s9, 1
    %s15 = ssub.s32 %s9, 2
    %s22 = sadd.s32 1, %s17
    %p23 = scmp.ge.s32.totalorder %s22, 1
    %s24 = scalar_select %p23, 0, %s22
    %s25 = sadd.s32 1, %s16
    %s26 = scalar_select %p23, %s25, %s16
    %p27 = scmp.ge.s32.totalorder %s26, 2
    %s28 = scalar_select %p27, 0, %s26
    %s29 = ssub.s32 %s16, %s28
    %s30 = ssub.s32 %s17, %s24
    %s31 = sor.u32 %s29, %s30
    %p32 = scmp.eq.s32.totalorder %s31, 0
    %s34 = sadd.s32 %s33, 1
    %s35 = scalar_select %p32, %s33, %s34
    %p38 = pneg %p32
    %p39 = scmp.eq.s32.totalorder %s9, 1
    %p40 = por %p38, %p39
    %p41 = scmp.ne.s32.totalorder %s33, %s36
    %p42 = scmp.eq.s32.totalorder %s9, 0
    %p43 = por %p41, %p42
    %p44 = scmp.ne.s32.totalorder %s33, %s36
    %p45 = scmp.eq.s32.totalorder %s14, 1
    %p46 = por %p44, %p45
    %p47 = scmp.ne.s32.totalorder %s36, %s37
    %p48 = scmp.eq.s32.totalorder %s14, 0
    %p49 = por %p47, %p48
    %p50 = scmp.ne.s32.totalorder %s36, %s37
    %p51 = scmp.eq.s32.totalorder %s15, 1
    %p52 = por %p50, %p51
    %p54 = scmp.ne.s32.totalorder %s37, %s53
    %p55 = scmp.eq.s32.totalorder %s15, 0
    %p56 = por %p54, %p55
    %s58 = sadd.s32 %s57, 1
    %p61 = scmp.eq.s32.totalorder %s9, 1
    %p62 = scmp.ne.s32.totalorder %s57, %s59
    %p63 = scmp.eq.s32.totalorder %s9, 0
    %p64 = por %p62, %p63
    %p65 = scmp.ne.s32.totalorder %s57, %s59
    %p66 = scmp.eq.s32.totalorder %s14, 1
    %p67 = por %p65, %p66
    %p68 = scmp.ne.s32.totalorder %s59, %s60
    %p69 = scmp.eq.s32.totalorder %s14, 0
    %p70 = por %p68, %p69
    %p71 = scmp.ne.s32.totalorder %s59, %s60
    %p72 = scmp.eq.s32.totalorder %s15, 1
    %p73 = por %p71, %p72
    %p75 = scmp.ne.s32.totalorder %s60, %s74
    %p76 = scmp.eq.s32.totalorder %s15, 0
    %p77 = por %p75, %p76
    %s79 = sadd.s32 %s78, 1
    %p82 = scmp.eq.s32.totalorder %s9, 1
    %p83 = scmp.ne.s32.totalorder %s78, %s80
    %p84 = scmp.eq.s32.totalorder %s9, 0
    %p85 = por %p83, %p84
    %p86 = scmp.ne.s32.totalorder %s78, %s80
    %p87 = scmp.eq.s32.totalorder %s14, 1
    %p88 = por %p86, %p87
    %p89 = scmp.ne.s32.totalorder %s80, %s81
    %p90 = scmp.eq.s32.totalorder %s14, 0
    %p91 = por %p89, %p90
    %p92 = scmp.ne.s32.totalorder %s80, %s81
    %p93 = scmp.eq.s32.totalorder %s15, 1
    %p94 = por %p92, %p93
    %p96 = scmp.ne.s32.totalorder %s81, %s95
    %p97 = scmp.eq.s32.totalorder %s15, 0
    %p98 = por %p96, %p97
    %s99 = ssub.s32 %s16, %s28
    %s100 = ssub.s32 %s17, %s24
    %s101 = sor.u32 %s99, %s100
    %p102 = scmp.eq.s32.totalorder %s101, 0
    %s104 = sadd.s32 %s103, 1
    %s105 = scalar_select %p102, %s103, %s104
    %p108 = pneg %p102
    %p109 = scmp.eq.s32.totalorder %s9, 1
    %p110 = por %p108, %p109
    %p111 = scmp.ne.s32.totalorder %s103, %s106
    %p112 = scmp.eq.s32.totalorder %s9, 0
    %p113 = por %p111, %p112
    %p114 = scmp.ne.s32.totalorder %s103, %s106
    %p115 = scmp.eq.s32.totalorder %s14, 1
    %p116 = por %p114, %p115
    %p117 = scmp.ne.s32.totalorder %s106, %s107
    %p118 = scmp.eq.s32.totalorder %s14, 0
    %p119 = por %p117, %p118
    %p120 = scmp.ne.s32.totalorder %s106, %s107
    %p121 = scmp.eq.s32.totalorder %s15, 1
    %p122 = por %p120, %p121
    %p124 = scmp.ne.s32.totalorder %s107, %s123
    %p125 = scmp.eq.s32.totalorder %s15, 0
    %p126 = por %p124, %p125
    %p127 = scmp.le.s32.totalorder 1, %s9
    %p128 = scmp.lt.s32.totalorder %s9, 3
    %p129 = pnand %p127, %p128
    %p130 = pneg %p129
    // Predicated region
    $region9: #{patchgan_forward.8} parent=5 // pred_check
      _
    $region10: #{patchgan_forward.8} parent=5 // pred_check_branch
      %132 = sbr.rel (%p129) target = $region12
    $region11: #{patchgan_forward.8} parent=5 // pred_region
      %s133 = ssub.s32 %s9, 1
      // Predicated region
      $region13: #{patchgan_forward.8} parent=11 // pred_check
        %p134 = pneg %p70
      $region14: #{patchgan_forward.8} parent=11 // pred_check_branch
        %136 = sbr.rel (%p134) target = $region16
      $region15: #{patchgan_forward.8} parent=11 // pred_region
        _
      $region16: #{patchgan_forward.8} parent=11 // pred_fallthru
        _
      // Predicated region
      $region17: #{patchgan_forward.8} parent=11 // pred_check
        %p137 = pneg %p91
      $region18: #{patchgan_forward.8} parent=11 // pred_check_branch
        %139 = sbr.rel (%p137) target = $region20
      $region19: #{patchgan_forward.8} parent=11 // pred_region
        _
      $region20: #{patchgan_forward.8} parent=11 // pred_fallthru
        _
    $region12: #{patchgan_forward.8} parent=5 // pred_fallthru
      _
    %p140 = scmp.lt.s32.totalorder %s9, 2
    // Predicated region
    $region21: #{patchgan_forward.8} parent=5 // pred_check
      %p141 = pneg %p140
    $region22: #{patchgan_forward.8} parent=5 // pred_check_branch
      %143 = sbr.rel (%p141) target = $region24
    $region23: #{patchgan_forward.8} parent=5 // pred_region
      // Predicated region
      $region25: #{patchgan_forward.8} parent=23 // pred_check
        %p144 = pneg %p43
      $region26: #{patchgan_forward.8} parent=23 // pred_check_branch
        %146 = sbr.rel (%p144) target = $region28
      $region27: #{patchgan_forward.8} parent=23 // pred_region
        %s147 = smul.u32 4, %s17
        %p148 = scmp.lt.s32.totalorder %s16, 1
        %s149 = scalar_select %p148, %s16, 1
        %p150 = scmp.lt.s32.totalorder %s147, 3
        %s151 = scalar_select %p150, %s147, 3
        %s152 = smul.addr %s149, 4
        %s153 = sadd.s32 %s151, %s152
        %s154 = smul.addr %s153, 2
        %s155 = scalar_lea.vmem %s0, %s154
        %s156 = smul.u32 4, %s17
      $region28: #{patchgan_forward.8} parent=23 // pred_fallthru
        _
    $region24: #{patchgan_forward.8} parent=5 // pred_fallthru
      _
    %p157 = scmp.le.s32.totalorder 1, %s9
    %p158 = scmp.lt.s32.totalorder %s9, 3
    %p159 = pnand %p157, %p158
    %p160 = pneg %p159
    // Predicated region
    $region29: #{patchgan_forward.8} parent=5 // pred_check
      _
    $region30: #{patchgan_forward.8} parent=5 // pred_check_branch
      %162 = sbr.rel (%p159) target = $region32
    $region31: #{patchgan_forward.8} parent=5 // pred_region
      %s163 = ssub.s32 %s9, 1
      %s164 = smul.u32 4, %s19
      %p165 = scmp.lt.s32.totalorder %s18, 1
      %s166 = scalar_select %p165, %s18, 1
      %p167 = scmp.lt.s32.totalorder %s164, 3
      %s168 = scalar_select %p167, %s164, 3
      %s169 = smul.addr %s166, 4
      %s170 = sadd.s32 %s168, %s169
      %s171 = smul.addr %s170, 2
      %s172 = scalar_lea.vmem %s0, %s171
      %p173 = pneg %p49
      %p174 = pneg %p46
      %p175 = pneg %p70
      %p176 = pneg %p67
      %p177 = pneg %p91
      %p178 = pneg %p88
      %p179 = pneg %p119
      %p180 = pneg %p116
      %s181 = smul.u32 4, %s19
      %p182 = scmp.lt.s32.totalorder %s18, 1
      %s183 = scalar_select %p182, %s18, 1
      %p184 = scmp.lt.s32.totalorder %s181, 3
      %s185 = scalar_select %p184, %s181, 3
      %s186 = smul.addr %s183, 4
      %s187 = sadd.s32 %s185, %s186
      %s188 = smul.addr %s187, 2
      %s189 = scalar_lea.vmem %s3, %s188
      %s190 = smul.u32 4, %s19
      %p191 = scmp.lt.s32.totalorder %s18, 1
      %s192 = scalar_select %p191, %s18, 1
      %p193 = scmp.lt.s32.totalorder %s190, 3
      %s194 = scalar_select %p193, %s190, 3
      %s195 = smul.addr %s192, 4
      %s196 = sadd.s32 %s194, %s195
      %s197 = smul.addr %s196, 2
      %s198 = scalar_lea.vmem %s0, %s197
      %s199 = smul.u32 4, %s19
      %s200 = smul.u32 4, %s19
      %p201 = scmp.lt.s32.totalorder %s18, 1
      %s202 = scalar_select %p201, %s18, 1
      %p203 = scmp.lt.s32.totalorder %s200, 3
      %s204 = scalar_select %p203, %s200, 3
      %s205 = smul.addr %s202, 4
      %s206 = sadd.s32 %s204, %s205
      %s207 = smul.addr %s206, 2
      %s208 = scalar_lea.vmem %s3, %s207
      %s209 = smul.u32 4, %s19
      %v210 = vld [vmem:[%s198] sm:$0x3]
      %v211 = vld [vmem:[%s198 + $0x2] sm:$0x3]
      %v212 = vld [vmem:[%s198 + $0x4] sm:$0x3]
      %v213 = vld [vmem:[%s198 + $0x6] sm:$0x3]
      %v214 = vunpack.c.l.bf16 %v210
      %v215 = vunpack.c.l.bf16 %v211
      %v216 = vunpack.c.l.bf16 %v212
      %v217 = vunpack.c.l.bf16 %v213
      %v218 = vld [vmem:[%s1] sm:$0x1]
      %v220 = vlaneseq
      %v221 = vshrl.u32 %v220, 7
      %v222 = vsub.s32 0, %v221
      %v223 = vrot.slane %v218, %v222
      %v225 = vmul.f32 %v214, %v223
      %v226 = vmul.f32 %v215, %v223
      %v227 = vmul.f32 %v216, %v223
      %v228 = vmul.f32 %v217, %v223
      %v229 = vld [vmem:[%s2] sm:$0x1]
      %v231 = vlaneseq
      %v232 = vshrl.u32 %v231, 7
      %v233 = vsub.s32 0, %v232
      %v234 = vrot.slane %v229, %v233
      %v236 = vadd.f32 %v225, %v234
      %v237 = vadd.f32 %v226, %v234
      %v238 = vadd.f32 %v227, %v234
      %v239 = vadd.f32 %v228, %v234
      %vm240 = vcmp.ge.f32.partialorder %v236, 0.0
      %vm241 = vcmp.ge.f32.partialorder %v237, 0.0
      %vm242 = vcmp.ge.f32.partialorder %v238, 0.0
      %vm243 = vcmp.ge.f32.partialorder %v239, 0.0
      %v244 = vmul.f32 %v236, 0.2
      %v245 = vmul.f32 %v237, 0.2
      %v246 = vmul.f32 %v238, 0.2
      %v247 = vmul.f32 %v239, 0.2
      %v248 = vsel %vm240, %v236, %v244
      %v249 = vsel %vm241, %v237, %v245
      %v250 = vsel %vm242, %v238, %v246
      %v251 = vsel %vm243, %v239, %v247
      %v252 = vpack.c.bf16 %v248, %v248
      %v253 = vpack.c.bf16 %v249, %v249
      %v254 = vpack.c.bf16 %v250, %v250
      %v255 = vpack.c.bf16 %v251, %v251
      %256 = vst [vmem:[%s208] sm:$0x3] %v252
      %257 = vst [vmem:[%s208 + $0x2] sm:$0x3] %v253
      %258 = vst [vmem:[%s208 + $0x4] sm:$0x3] %v254
      %259 = vst [vmem:[%s208 + $0x6] sm:$0x3] %v255
      %s260 = smul.u32 4, %s19
      %p261 = scmp.lt.s32.totalorder %s18, 1
      %s262 = scalar_select %p261, %s18, 1
      %p263 = scmp.lt.s32.totalorder %s260, 3
      %s264 = scalar_select %p263, %s260, 3
      %s265 = smul.addr %s262, 4
      %s266 = sadd.s32 %s264, %s265
      %s267 = smul.addr %s266, 2
      %s268 = scalar_lea.vmem %s3, %s267
      // Predicated region
      $region33: #{patchgan_forward.8} parent=31 // pred_check
        %p269 = pneg %p116
      $region34: #{patchgan_forward.8} parent=31 // pred_check_branch
        %271 = sbr.rel (%p269) target = $region36
      $region35: #{patchgan_forward.8} parent=31 // pred_region
        %s272 = smul.u32 4, %s19
      $region36: #{patchgan_forward.8} parent=31 // pred_fallthru
        _
    $region32: #{patchgan_forward.8} parent=5 // pred_fallthru
      _
    %p273 = scmp.le.s32.totalorder 2, %s9
    // Predicated region
    $region37: #{patchgan_forward.8} parent=5 // pred_check
      %p274 = pneg %p273
    $region38: #{patchgan_forward.8} parent=5 // pred_check_branch
      %276 = sbr.rel (%p274) target = $region40
    $region39: #{patchgan_forward.8} parent=5 // pred_region
      %s277 = ssub.s32 %s9, 2
      // Predicated region
      $region41: #{patchgan_forward.8} parent=39 // pred_check
        %p278 = pneg %p122
      $region42: #{patchgan_forward.8} parent=39 // pred_check_branch
        %280 = sbr.rel (%p278) target = $region44
      $region43: #{patchgan_forward.8} parent=39 // pred_region
        %s281 = smul.u32 4, %s21
        %p282 = scmp.lt.s32.totalorder %s20, 1
        %s283 = scalar_select %p282, %s20, 1
        %p284 = scmp.lt.s32.totalorder %s281, 3
        %s285 = scalar_select %p284, %s281, 3
        %s286 = smul.addr %s283, 4
        %s287 = sadd.s32 %s285, %s286
        %s288 = smul.addr %s287, 2
        %s289 = scalar_lea.vmem %s3, %s288
      $region44: #{patchgan_forward.8} parent=39 // pred_fallthru
        _
    $region40: #{patchgan_forward.8} parent=5 // pred_fallthru
      _
  $region6: #{patchgan_forward.8} parent=0 // loop_footer
    %s13 = sadd.s32 1, %s9
  $region7: #{patchgan_forward.8} parent=0 // loop_footer_branch
    %8 = sbr.rel target = $region3
  $region8: #{patchgan_forward.8} parent=0 // loop_exit
    _

// kernel: patchgan_forward.7
$region0: #{patchgan_forward.7}
  #allocation0 [shape = 'u32[]', space=smem, size = 0x4, offset = 0x4, fixed_abs, tag = 'smem constant byte address 0x4 - core index']
  #allocation1 [shape = 'u32[144,128]{1,0:T(1,128)}', space=vmem, size = 0x12000, scoped, tag = 'internal scratch']
  %s0 = inlined_call_operand.vmem [shape: bf16[2,5,5,64], index: 0, kind: input, shape index: {}]
  %s1 = inlined_call_operand.vmem [shape: bf16[2,128,128], index: 1, kind: input, shape index: {}]
  %s2 = inlined_call_operand.vmem [shape: bf16[2,4,4,128], index: 2, kind: output, shape index: {0}]
  %s3 = inlined_call_operand.vmem [shape: f32[2,1,2,128], index: 3, kind: output, shape index: {1}]
  %4 = xla_tuple %s2, %s3
  %s5 = sld [smem:[#allocation0]]
  $region49: #{patchgan_forward.7} parent=0
    _
  %s7 = ssub.s32 1, %s5
  %s8 = scalar_select 0, %s7, %s5
  loop: start=0, step=1, limit=4
  $region2: #{patchgan_forward.7} parent=0 // loop_pre_header
    _
  $region3: #{patchgan_forward.7} parent=0 // loop_header
    %s10 = sphi 0, %s14
    %p11 = scmp.ge.s32.totalorder %s10, 4
    %s17 = sphi 0, %s29
    %s18 = sphi 0, %s25
    %s19 = sphi 0, %s17
    %s20 = sphi 0, %s18
    %s21 = sphi 0, %s19
    %s22 = sphi 0, %s20
    %s32 = sphi 0, %s34
    %s35 = sphi 0, %s32
    %s36 = sphi 0, %s35
    %s52 = sphi 0, %s36
    %s56 = sphi 0, %s56
    %s58 = sphi 0, %s56
    %s59 = sphi 0, %s58
    %s73 = sphi 0, %s59
    %s81 = sphi 0, %s83
    %s84 = sphi 0, %s81
    %s85 = sphi 0, %s84
    %s101 = sphi 0, %s85
    %s109 = sphi 0, %s111
    %s112 = sphi 0, %s109
    %s113 = sphi 0, %s112
    %s129 = sphi 0, %s113
  $region4: #{patchgan_forward.7} parent=0 // loop_header_branch
    %13 = sbr.rel (%p11) target = $region8
  $region5: #{patchgan_forward.7} parent=0 // loop_body
    %s15 = ssub.s32 %s10, 1
    %s16 = ssub.s32 %s10, 2
    %s23 = sadd.s32 1, %s18
    %p24 = scmp.ge.s32.totalorder %s23, 1
    %s25 = scalar_select %p24, 0, %s23
    %s26 = sadd.s32 1, %s17
    %s27 = scalar_select %p24, %s26, %s17
    %p28 = scmp.ge.s32.totalorder %s27, 2
    %s29 = scalar_select %p28, 0, %s27
    %s30 = ssub.s32 %s17, %s29
    %p31 = scmp.eq.s32.totalorder %s30, 0
    %s33 = sadd.s32 %s32, 1
    %s34 = scalar_select %p31, %s32, %s33
    %p37 = pneg %p31
    %p38 = scmp.eq.s32.totalorder %s10, 1
    %p39 = por %p37, %p38
    %p40 = scmp.ne.s32.totalorder %s32, %s35
    %p41 = scmp.eq.s32.totalorder %s10, 0
    %p42 = por %p40, %p41
    %p43 = scmp.ne.s32.totalorder %s32, %s35
    %p44 = scmp.eq.s32.totalorder %s15, 1
    %p45 = por %p43, %p44
    %p46 = scmp.ne.s32.totalorder %s35, %s36
    %p47 = scmp.eq.s32.totalorder %s15, 0
    %p48 = por %p46, %p47
    %p49 = scmp.ne.s32.totalorder %s35, %s36
    %p50 = scmp.eq.s32.totalorder %s16, 1
    %p51 = por %p49, %p50
    %p53 = scmp.ne.s32.totalorder %s36, %s52
    %p54 = scmp.eq.s32.totalorder %s16, 0
    %p55 = por %p53, %p54
    %s57 = sadd.s32 %s56, 1
    %p60 = scmp.eq.s32.totalorder %s10, 1
    %p61 = scmp.ne.s32.totalorder %s56, %s58
    %p62 = scmp.eq.s32.totalorder %s10, 0
    %p63 = por %p61, %p62
    %p64 = scmp.ne.s32.totalorder %s56, %s58
    %p65 = scmp.eq.s32.totalorder %s15, 1
    %p66 = por %p64, %p65
    %p67 = scmp.ne.s32.totalorder %s58, %s59
    %p68 = scmp.eq.s32.totalorder %s15, 0
    %p69 = por %p67, %p68
    %p70 = scmp.ne.s32.totalorder %s58, %s59
    %p71 = scmp.eq.s32.totalorder %s16, 1
    %p72 = por %p70, %p71
    %p74 = scmp.ne.s32.totalorder %s59, %s73
    %p75 = scmp.eq.s32.totalorder %s16, 0
    %p76 = por %p74, %p75
    %s77 = ssub.s32 %s17, %s29
    %s78 = ssub.s32 %s18, %s25
    %s79 = sor.u32 %s77, %s78
    %p80 = scmp.eq.s32.totalorder %s79, 0
    %s82 = sadd.s32 %s81, 1
    %s83 = scalar_select %p80, %s81, %s82
    %p86 = pneg %p80
    %p87 = scmp.eq.s32.totalorder %s10, 1
    %p88 = por %p86, %p87
    %p89 = scmp.ne.s32.totalorder %s81, %s84
    %p90 = scmp.eq.s32.totalorder %s10, 0
    %p91 = por %p89, %p90
    %p92 = scmp.ne.s32.totalorder %s81, %s84
    %p93 = scmp.eq.s32.totalorder %s15, 1
    %p94 = por %p92, %p93
    %p95 = scmp.ne.s32.totalorder %s84, %s85
    %p96 = scmp.eq.s32.totalorder %s15, 0
    %p97 = por %p95, %p96
    %p98 = scmp.ne.s32.totalorder %s84, %s85
    %p99 = scmp.eq.s32.totalorder %s16, 1
    %p100 = por %p98, %p99
    %p102 = scmp.ne.s32.totalorder %s85, %s101
    %p103 = scmp.eq.s32.totalorder %s16, 0
    %p104 = por %p102, %p103
    %s105 = ssub.s32 %s17, %s29
    %s106 = ssub.s32 %s18, %s25
    %s107 = sor.u32 %s105, %s106
    %p108 = scmp.eq.s32.totalorder %s107, 0
    %s110 = sadd.s32 %s109, 1
    %s111 = scalar_select %p108, %s109, %s110
    %p114 = pneg %p108
    %p115 = scmp.eq.s32.totalorder %s10, 1
    %p116 = por %p114, %p115
    %p117 = scmp.ne.s32.totalorder %s109, %s112
    %p118 = scmp.eq.s32.totalorder %s10, 0
    %p119 = por %p117, %p118
    %p120 = scmp.ne.s32.totalorder %s109, %s112
    %p121 = scmp.eq.s32.totalorder %s15, 1
    %p122 = por %p120, %p121
    %p123 = scmp.ne.s32.totalorder %s112, %s113
    %p124 = scmp.eq.s32.totalorder %s15, 0
    %p125 = por %p123, %p124
    %p126 = scmp.ne.s32.totalorder %s112, %s113
    %p127 = scmp.eq.s32.totalorder %s16, 1
    %p128 = por %p126, %p127
    %p130 = scmp.ne.s32.totalorder %s113, %s129
    %p131 = scmp.eq.s32.totalorder %s16, 0
    %p132 = por %p130, %p131
    %p133 = scmp.le.s32.totalorder 1, %s10
    %p134 = scmp.lt.s32.totalorder %s10, 3
    %p135 = pnand %p133, %p134
    %p136 = pneg %p135
    // Predicated region
    $region9: #{patchgan_forward.7} parent=5 // pred_check
      _
    $region10: #{patchgan_forward.7} parent=5 // pred_check_branch
      %138 = sbr.rel (%p135) target = $region12
    $region11: #{patchgan_forward.7} parent=5 // pred_region
      %s139 = ssub.s32 %s10, 1
      // Predicated region
      $region13: #{patchgan_forward.7} parent=11 // pred_check
        %p140 = pneg %p69
      $region14: #{patchgan_forward.7} parent=11 // pred_check_branch
        %142 = sbr.rel (%p140) target = $region16
      $region15: #{patchgan_forward.7} parent=11 // pred_region
        _
      $region16: #{patchgan_forward.7} parent=11 // pred_fallthru
        _
    $region12: #{patchgan_forward.7} parent=5 // pred_fallthru
      _
    %p143 = scmp.lt.s32.totalorder %s10, 2
    // Predicated region
    $region17: #{patchgan_forward.7} parent=5 // pred_check
      %p144 = pneg %p143
    $region18: #{patchgan_forward.7} parent=5 // pred_check_branch
      %146 = sbr.rel (%p144) target = $region20
    $region19: #{patchgan_forward.7} parent=5 // pred_region
      // Predicated region
      $region21: #{patchgan_forward.7} parent=19 // pred_check
        %p147 = pneg %p42
      $region22: #{patchgan_forward.7} parent=19 // pred_check_branch
        %149 = sbr.rel (%p147) target = $region24
      $region23: #{patchgan_forward.7} parent=19 // pred_region
        %p150 = scmp.lt.s32.totalorder %s17, 1
        %s151 = scalar_select %p150, %s17, 1
        %s152 = smul.addr %s151, 5
        %s153 = smul.addr %s152, 4
        %s154 = scalar_lea.vmem %s0, %s153
      $region24: #{patchgan_forward.7} parent=19 // pred_fallthru
        _
    $region20: #{patchgan_forward.7} parent=5 // pred_fallthru
      _
    %p155 = scmp.le.s32.totalorder 1, %s10
    %p156 = scmp.lt.s32.totalorder %s10, 3
    %p157 = pnand %p155, %p156
    %p158 = pneg %p157
    // Predicated region
    $region25: #{patchgan_forward.7} parent=5 // pred_check
      _
    $region26: #{patchgan_forward.7} parent=5 // pred_check_branch
      %160 = sbr.rel (%p157) target = $region28
    $region27: #{patchgan_forward.7} parent=5 // pred_region
      %s161 = ssub.s32 %s10, 1
      %p162 = scmp.lt.s32.totalorder %s19, 1
      %s163 = scalar_select %p162, %s19, 1
      %s164 = smul.addr %s163, 5
      %s165 = smul.addr %s164, 4
      %s166 = scalar_lea.vmem %s0, %s165
      %p167 = pneg %p48
      %p168 = pneg %p45
      %p169 = pneg %p69
      %p170 = pneg %p66
      %p171 = pneg %p97
      %p172 = pneg %p94
      %s173 = smul.u32 4, %s20
      %p174 = scmp.lt.s32.totalorder %s19, 1
      %s175 = scalar_select %p174, %s19, 1
      %p176 = scmp.lt.s32.totalorder %s173, 3
      %s177 = scalar_select %p176, %s173, 3
      %s178 = smul.addr %s175, 4
      %s179 = sadd.s32 %s177, %s178
      %s180 = smul.addr %s179, 2
      %s181 = scalar_lea.vmem %s2, %s180
      %p182 = pneg %p125
      %p183 = pneg %p122
      %p184 = scmp.lt.s32.totalorder %s19, 1
      %s185 = scalar_select %p184, %s19, 1
      %p186 = scmp.lt.s32.totalorder %s20, 0
      %s187 = scalar_select %p186, %s20, 0
      %s188 = sadd.s32 %s187, %s185
      %s189 = smul.addr %s188, 2
      %s190 = scalar_lea.vmem %s3, %s189
      %p191 = scmp.lt.s32.totalorder %s19, 1
      %s192 = scalar_select %p191, %s19, 1
      %s193 = smul.addr %s192, 5
      %s194 = smul.addr %s193, 4
      %s195 = scalar_lea.vmem %s0, %s194
      %s196 = smul.u32 4, %s20
      %p197 = scmp.lt.s32.totalorder %s19, 1
      %s198 = scalar_select %p197, %s19, 1
      %p199 = scmp.lt.s32.totalorder %s196, 3
      %s200 = scalar_select %p199, %s196, 3
      %s201 = smul.addr %s198, 4
      %s202 = sadd.s32 %s200, %s201
      %s203 = smul.addr %s202, 2
      %s204 = scalar_lea.vmem %s2, %s203
      %s205 = smul.u32 4, %s20
      %p206 = scmp.lt.s32.totalorder %s19, 1
      %s207 = scalar_select %p206, %s19, 1
      %p208 = scmp.lt.s32.totalorder %s20, 0
      %s209 = scalar_select %p208, %s20, 0
      %s210 = sadd.s32 %s209, %s207
      %s211 = smul.addr %s210, 2
      %s212 = scalar_lea.vmem %s3, %s211
      %s214 = smul.u32 %s20, 4
      %s215 = smul.addr %s214, 4
      %s216 = scalar_lea.vmem %s195, %s215
      %v217 = vld [vmem:[%s216] sm:$0x3]
      %v218 = vld [vmem:[%s216 + $0x4] sm:$0x3]
      %v219 = vld [vmem:[%s216 + $0x8] sm:$0x3]
      %v220 = vld [vmem:[%s216 + $0xc] sm:$0x3]
      %v221 = vld [vmem:[%s216] sm:$0x7]
      %v222 = vld [vmem:[%s216 + $0x4] sm:$0x7]
      %v223 = vld [vmem:[%s216 + $0x8] sm:$0x7]
      %v224 = vld [vmem:[%s216 + $0xc] sm:$0x7]
      %v229 = vunpack.c.l.b16 %v221
      %v230 = vunpack.c.l.b16 %v222
      %v231 = vunpack.c.l.b16 %v223
      %v232 = vunpack.c.l.b16 %v224
      %v233 = vpack.c.b16 %v229, %v229
      %v234 = vpack.c.b16 %v230, %v230
      %v235 = vpack.c.b16 %v231, %v231
      %v236 = vpack.c.b16 %v232, %v232
      %v238 = vshrl.u32 %v233, 16
      %v240 = vshll.u32 %v233, 16
      %v242 = vrot.slane %v240, 1
      %v243 = vor.u32 %v238, %v242
      %v245 = vshrl.u32 %v234, 16
      %v247 = vshll.u32 %v234, 16
      %v249 = vrot.slane %v247, 1
      %v250 = vor.u32 %v245, %v249
      %v252 = vshrl.u32 %v235, 16
      %v254 = vshll.u32 %v235, 16
      %v256 = vrot.slane %v254, 1
      %v257 = vor.u32 %v252, %v256
      %v259 = vshrl.u32 %v236, 16
      %v261 = vshll.u32 %v236, 16
      %v263 = vrot.slane %v261, 1
      %v264 = vor.u32 %v259, %v263
      %265 = vrot.lane.b32.xlu0 %v243, 64
      %v266 = vpop.permute.xlu0 %265
      %267 = vrot.lane.b32.xlu0 %v250, 64
      %v268 = vpop.permute.xlu0 %267
      %269 = vrot.lane.b32.xlu0 %v257, 64
      %v270 = vpop.permute.xlu0 %269
      %271 = vrot.lane.b32.xlu0 %v264, 64
      %v272 = vpop.permute.xlu0 %271
      %vm273 = vcmask 523264
      %v276 = vsel %vm273, %v217, %v266
      %v279 = vsel %vm273, %v218, %v268
      %v282 = vsel %vm273, %v219, %v270
      %v285 = vsel %vm273, %v220, %v272
      %v286 = vld [vmem:[%s1] sm:$0xf]
      %v287 = vld [vmem:[%s1 + $0x4] sm:$0xf]
      %v288 = vld [vmem:[%s1 + $0x8] sm:$0xf]
      %v289 = vld [vmem:[%s1 + $0xc] sm:$0xf]
      %v290 = vld [vmem:[%s1 + $0x10] sm:$0xf]
      %v291 = vld [vmem:[%s1 + $0x14] sm:$0xf]
      %v292 = vld [vmem:[%s1 + $0x18] sm:$0xf]
      %v293 = vld [vmem:[%s1 + $0x1c] sm:$0xf]
      %v294 = vld [vmem:[%s1 + $0x20] sm:$0xf]
      %v295 = vld [vmem:[%s1 + $0x24] sm:$0xf]
      %v296 = vld [vmem:[%s1 + $0x28] sm:$0xf]
      %v297 = vld [vmem:[%s1 + $0x2c] sm:$0xf]
      %v298 = vld [vmem:[%s1 + $0x30] sm:$0xf]
      %v299 = vld [vmem:[%s1 + $0x34] sm:$0xf]
      %v300 = vld [vmem:[%s1 + $0x38] sm:$0xf]
      %v301 = vld [vmem:[%s1 + $0x3c] sm:$0xf]
      %s302 = sadd.s32 %s214, 1
      %s303 = smul.addr %s302, 4
      %s304 = scalar_lea.vmem %s195, %s303
      %v305 = vld [vmem:[%s304] sm:$0x3]
      %v306 = vld [vmem:[%s304 + $0x4] sm:$0x3]
      %v307 = vld [vmem:[%s304 + $0x8] sm:$0x3]
      %v308 = vld [vmem:[%s304 + $0xc] sm:$0x3]
      %v309 = vld [vmem:[%s304] sm:$0x7]
      %v310 = vld [vmem:[%s304 + $0x4] sm:$0x7]
      %v311 = vld [vmem:[%s304 + $0x8] sm:$0x7]
      %v312 = vld [vmem:[%s304 + $0xc] sm:$0x7]
      %v317 = vunpack.c.l.b16 %v309
      %v318 = vunpack.c.l.b16 %v310
      %v319 = vunpack.c.l.b16 %v311
      %v320 = vunpack.c.l.b16 %v312
      %v321 = vpack.c.b16 %v317, %v317
      %v322 = vpack.c.b16 %v318, %v318
      %v323 = vpack.c.b16 %v319, %v319
      %v324 = vpack.c.b16 %v320, %v320
      %v326 = vshrl.u32 %v321, 16
      %v328 = vshll.u32 %v321, 16
      %v330 = vrot.slane %v328, 1
      %v331 = vor.u32 %v326, %v330
      %v333 = vshrl.u32 %v322, 16
      %v335 = vshll.u32 %v322, 16
      %v337 = vrot.slane %v335, 1
      %v338 = vor.u32 %v333, %v337
      %v340 = vshrl.u32 %v323, 16
      %v342 = vshll.u32 %v323, 16
      %v344 = vrot.slane %v342, 1
      %v345 = vor.u32 %v340, %v344
      %v347 = vshrl.u32 %v324, 16
      %v349 = vshll.u32 %v324, 16
      %v351 = vrot.slane %v349, 1
      %v352 = vor.u32 %v347, %v351
      %353 = vrot.lane.b32.xlu0 %v331, 64
      %v354 = vpop.permute.xlu0 %353
      %355 = vrot.lane.b32.xlu0 %v338, 64
      %v356 = vpop.permute.xlu0 %355
      %357 = vrot.lane.b32.xlu0 %v345, 64
      %v358 = vpop.permute.xlu0 %357
      %359 = vrot.lane.b32.xlu0 %v352, 64
      %v360 = vpop.permute.xlu0 %359
      %v363 = vsel %vm273, %v305, %v354
      %v366 = vsel %vm273, %v306, %v356
      %v369 = vsel %vm273, %v307, %v358
      %v372 = vsel %vm273, %v308, %v360
      %s373 = scalar_lea.vmem %s1, 64
      %v374 = vld [vmem:[%s373] sm:$0xf]
      %v375 = vld [vmem:[%s373 + $0x4] sm:$0xf]
      %v376 = vld [vmem:[%s373 + $0x8] sm:$0xf]
      %v377 = vld [vmem:[%s373 + $0xc] sm:$0xf]
      %v378 = vld [vmem:[%s373 + $0x10] sm:$0xf]
      %v379 = vld [vmem:[%s373 + $0x14] sm:$0xf]
      %v380 = vld [vmem:[%s373 + $0x18] sm:$0xf]
      %v381 = vld [vmem:[%s373 + $0x1c] sm:$0xf]
      %v382 = vld [vmem:[%s373 + $0x20] sm:$0xf]
      %v383 = vld [vmem:[%s373 + $0x24] sm:$0xf]
      %v384 = vld [vmem:[%s373 + $0x28] sm:$0xf]
      %v385 = vld [vmem:[%s373 + $0x2c] sm:$0xf]
      %v386 = vld [vmem:[%s373 + $0x30] sm:$0xf]
      %v387 = vld [vmem:[%s373 + $0x34] sm:$0xf]
      %v388 = vld [vmem:[%s373 + $0x38] sm:$0xf]
      %v389 = vld [vmem:[%s373 + $0x3c] sm:$0xf]
      %v394 = vcombine.low %v363, %v366
      %v395 = vcombine.low %v369, %v372
      %v397 = vunpack.c.l.s4 1983009808
      %v398 = vunpack.c.0.s8 %v397
      %v399 = vlaneseq
      %v400 = vshrl.u32 %v399, 7
      %v401 = vsub.s32 %v398, %v400
      %v402 = vrot.slane %v394, %v401
      %v404 = vunpack.c.l.s4 1983009808
      %v405 = vunpack.c.0.s8 %v404
      %v406 = vlaneseq
      %v407 = vshrl.u32 %v406, 7
      %v408 = vsub.s32 %v405, %v407
      %v409 = vrot.slane %v395, %v408
      %v410 = vcombine.low %v402, %v409
      %v428 = vunpack.c.l.b16 %v374
      %v429 = vunpack.c.l.b16 %v375
      %v430 = vunpack.c.l.b16 %v376
      %v431 = vunpack.c.l.b16 %v377
      %v432 = vunpack.c.l.b16 %v378
      %v433 = vunpack.c.l.b16 %v379
      %v434 = vunpack.c.l.b16 %v380
      %v435 = vunpack.c.l.b16 %v381
      %v436 = vunpack.c.l.b16 %v382
      %v437 = vunpack.c.l.b16 %v383
      %v438 = vunpack.c.l.b16 %v384
      %v439 = vunpack.c.l.b16 %v385
      %v440 = vunpack.c.l.b16 %v386
      %v441 = vunpack.c.l.b16 %v387
      %v442 = vunpack.c.l.b16 %v388
      %v443 = vunpack.c.l.b16 %v389
      %v444 = vpack.c.b16 %v429, %v428
      %v445 = vpack.c.b16 %v431, %v430
      %v446 = vpack.c.b16 %v433, %v432
      %v447 = vpack.c.b16 %v435, %v434
      %v448 = vpack.c.b16 %v437, %v436
      %v449 = vpack.c.b16 %v439, %v438
      %v450 = vpack.c.b16 %v441, %v440
      %v451 = vpack.c.b16 %v443, %v442
      %460 = vmatprep.subr.bf16.mxu0 0
      %461 = vmatpush1.bf16.msra.mxu0 %v444
      %462 = vmatprep.subr.bf16.mxu0 0
      %463 = vmatpush1.bf16.msra.mxu0 %v445
      %464 = vmatprep.subr.bf16.mxu0 0
      %465 = vmatpush1.bf16.msra.mxu0 %v446
      %466 = vmatprep.subr.bf16.mxu0 0
      %467 = vmatpush1.bf16.msra.mxu0 %v447
      %468 = vmatprep.subr.bf16.mxu0 0
      %469 = vmatpush1.bf16.msra.mxu0 %v448
      %470 = vmatprep.subr.bf16.mxu0 0
      %471 = vmatpush1.bf16.msra.mxu0 %v449
      %472 = vmatprep.subr.bf16.mxu0 0
      %473 = vmatpush1.bf16.msra.mxu0 %v450
      %474 = vmatprep.subr.bf16.mxu0 0
      %475 = vmatpush1.bf16.msra.mxu0 %v451
      %476 = vmatprep.subr.bf16.mxu0 0
      %477 = vmatpush1.bf16.msra.mxu0 0
      %478 = vmatprep.subr.bf16.mxu0 0
      %479 = vmatpush1.bf16.msra.mxu0 0
      %480 = vmatprep.subr.bf16.mxu0 0
      %481 = vmatpush1.bf16.msra.mxu0 0
      %482 = vmatprep.subr.bf16.mxu0 0
      %483 = vmatpush1.bf16.msra.mxu0 0
      %484 = vmatprep.subr.bf16.mxu0 0
      %485 = vmatpush1.bf16.msra.mxu0 0
      %486 = vmatprep.subr.bf16.mxu0 0
      %487 = vmatpush1.bf16.msra.mxu0 0
      %488 = vmatprep.subr.bf16.mxu0 0
      %489 = vmatpush1.bf16.msra.mxu0 0
      %490 = vmatprep.subr.bf16.mxu0 0
      %491 = vmatpush1.bf16.msra.mxu0 0
      %492 = vmatprep.mubr.bf16.mxu0 0
      %493 = vmatmul.mubr.bf16.gmra.mrb[0].mxu0 %v410
      %v494 = vpop.f32.mrb[0].mxu0
      %v495 = vadd.f32 0.0, %v494
      %v496 = vpop.f32.mrb[0].mxu0
      %v497 = vpop.f32.mrb[0].mxu0
      %v498 = vadd.f32 0.0, %v497
      %v499 = vpop.f32.mrb[0].mxu0
      %500 = vdwg.mxu0
      %v505 = vcombine.low %v276, %v279
      %v506 = vcombine.low %v282, %v285
      %v508 = vunpack.c.l.s4 1983009808
      %v509 = vunpack.c.0.s8 %v508
      %v510 = vlaneseq
      %v511 = vshrl.u32 %v510, 7
      %v512 = vsub.s32 %v509, %v511
      %v513 = vrot.slane %v505, %v512
      %v515 = vunpack.c.l.s4 1983009808
      %v516 = vunpack.c.0.s8 %v515
      %v517 = vlaneseq
      %v518 = vshrl.u32 %v517, 7
      %v519 = vsub.s32 %v516, %v518
      %v520 = vrot.slane %v506, %v519
      %v521 = vcombine.low %v513, %v520
      %v539 = vunpack.c.l.b16 %v286
      %v540 = vunpack.c.l.b16 %v287
      %v541 = vunpack.c.l.b16 %v288
      %v542 = vunpack.c.l.b16 %v289
      %v543 = vunpack.c.l.b16 %v290
      %v544 = vunpack.c.l.b16 %v291
      %v545 = vunpack.c.l.b16 %v292
      %v546 = vunpack.c.l.b16 %v293
      %v547 = vunpack.c.l.b16 %v294
      %v548 = vunpack.c.l.b16 %v295
      %v549 = vunpack.c.l.b16 %v296
      %v550 = vunpack.c.l.b16 %v297
      %v551 = vunpack.c.l.b16 %v298
      %v552 = vunpack.c.l.b16 %v299
      %v553 = vunpack.c.l.b16 %v300
      %v554 = vunpack.c.l.b16 %v301
      %v555 = vpack.c.b16 %v540, %v539
      %v556 = vpack.c.b16 %v542, %v541
      %v557 = vpack.c.b16 %v544, %v543
      %v558 = vpack.c.b16 %v546, %v545
      %v559 = vpack.c.b16 %v548, %v547
      %v560 = vpack.c.b16 %v550, %v549
      %v561 = vpack.c.b16 %v552, %v551
      %v562 = vpack.c.b16 %v554, %v553
      %571 = vmatprep.subr.bf16.mxu0 0
      %572 = vmatpush1.bf16.msra.mxu0 %v555
      %573 = vmatprep.subr.bf16.mxu0 0
      %574 = vmatpush1.bf16.msra.mxu0 %v556
      %575 = vmatprep.subr.bf16.mxu0 0
      %576 = vmatpush1.bf16.msra.mxu0 %v557
      %577 = vmatprep.subr.bf16.mxu0 0
      %578 = vmatpush1.bf16.msra.mxu0 %v558
      %579 = vmatprep.subr.bf16.mxu0 0
      %580 = vmatpush1.bf16.msra.mxu0 %v559
      %581 = vmatprep.subr.bf16.mxu0 0
      %582 = vmatpush1.bf16.msra.mxu0 %v560
      %583 = vmatprep.subr.bf16.mxu0 0
      %584 = vmatpush1.bf16.msra.mxu0 %v561
      %585 = vmatprep.subr.bf16.mxu0 0
      %586 = vmatpush1.bf16.msra.mxu0 %v562
      %587 = vmatprep.subr.bf16.mxu0 0
      %588 = vmatpush1.bf16.msra.mxu0 0
      %589 = vmatprep.subr.bf16.mxu0 0
      %590 = vmatpush1.bf16.msra.mxu0 0
      %591 = vmatprep.subr.bf16.mxu0 0
      %592 = vmatpush1.bf16.msra.mxu0 0
      %593 = vmatprep.subr.bf16.mxu0 0
      %594 = vmatpush1.bf16.msra.mxu0 0
      %595 = vmatprep.subr.bf16.mxu0 0
      %596 = vmatpush1.bf16.msra.mxu0 0
      %597 = vmatprep.subr.bf16.mxu0 0
      %598 = vmatpush1.bf16.msra.mxu0 0
      %599 = vmatprep.subr.bf16.mxu0 0
      %600 = vmatpush1.bf16.msra.mxu0 0
      %601 = vmatprep.subr.bf16.mxu0 0
      %602 = vmatpush1.bf16.msra.mxu0 0
      %603 = vmatprep.mubr.bf16.mxu0 0
      %604 = vmatmul.mubr.bf16.gmra.mrb[0].mxu0 %v521
      %v605 = vpop.f32.mrb[0].mxu0
      %v606 = vadd.f32 %v495, %v605
      %v607 = vpop.f32.mrb[0].mxu0
      %v608 = vpop.f32.mrb[0].mxu0
      %v609 = vadd.f32 %v498, %v608
      %v610 = vpop.f32.mrb[0].mxu0
      %611 = vdwg.mxu0
      %v614 = vcombine.high %v606, %v606
      %v615 = vcombine.high %v609, %v609
      %v618 = vpack.c.bf16 %v606, %v606
      %v619 = vpack.c.bf16 %v614, %v614
      %v620 = vpack.c.bf16 %v609, %v609
      %v621 = vpack.c.bf16 %v615, %v615
      %622 = vst [vmem:[%s204] sm:$0x3] %v618
      %623 = vst [vmem:[%s204 + $0x2] sm:$0x3] %v619
      %624 = vst [vmem:[%s204 + $0x4] sm:$0x3] %v620
      %625 = vst [vmem:[%s204 + $0x6] sm:$0x3] %v621
      %v626 = vadd.f32 %v606, %v609
      %v627 = vrot.slane %v626, 4
      %v628 = vadd.f32 %v626, %v627
      %v629 = vrot.slane %v628, 2
      %v630 = vadd.f32 %v628, %v629
      %v631 = vrot.slane %v630, 1
      %v632 = vadd.f32 %v630, %v631
      %v633 = vmul.f32 %v606, %v606
      %v634 = vmul.f32 %v609, %v609
      %v635 = vadd.f32 %v633, %v634
      %v636 = vrot.slane %v635, 4
      %v637 = vadd.f32 %v635, %v636
      %v638 = vrot.slane %v637, 2
      %v639 = vadd.f32 %v637, %v638
      %v640 = vrot.slane %v639, 1
      %v641 = vadd.f32 %v639, %v640
      %vm642 = vcmask 1040384
      %v643 = vsel %vm642, %v632, %v641
      %644 = vst [vmem:[%s212] sm:$0x3] %v643
      %s645 = smul.u32 4, %s20
      %p646 = scmp.lt.s32.totalorder %s19, 1
      %s647 = scalar_select %p646, %s19, 1
      %p648 = scmp.lt.s32.totalorder %s645, 3
      %s649 = scalar_select %p648, %s645, 3
      %s650 = smul.addr %s647, 4
      %s651 = sadd.s32 %s649, %s650
      %s652 = smul.addr %s651, 2
      %s653 = scalar_lea.vmem %s2, %s652
      %p654 = scmp.lt.s32.totalorder %s19, 1
      %s655 = scalar_select %p654, %s19, 1
      %p656 = scmp.lt.s32.totalorder %s20, 0
      %s657 = scalar_select %p656, %s20, 0
      %s658 = sadd.s32 %s657, %s655
      %s659 = smul.addr %s658, 2
      %s660 = scalar_lea.vmem %s3, %s659
      // Predicated region
      $region29: #{patchgan_forward.7} parent=27 // pred_check
        %p661 = pneg %p94
      $region30: #{patchgan_forward.7} parent=27 // pred_check_branch
        %663 = sbr.rel (%p661) target = $region32
      $region31: #{patchgan_forward.7} parent=27 // pred_region
        %s664 = smul.u32 4, %s20
      $region32: #{patchgan_forward.7} parent=27 // pred_fallthru
        _
      // Predicated region
      $region33: #{patchgan_forward.7} parent=27 // pred_check
        %p665 = pneg %p122
      $region34: #{patchgan_forward.7} parent=27 // pred_check_branch
        %667 = sbr.rel (%p665) target = $region36
      $region35: #{patchgan_forward.7} parent=27 // pred_region
        _
      $region36: #{patchgan_forward.7} parent=27 // pred_fallthru
        _
    $region28: #{patchgan_forward.7} parent=5 // pred_fallthru
      _
    %p668 = scmp.le.s32.totalorder 2, %s10
    // Predicated region
    $region37: #{patchgan_forward.7} parent=5 // pred_check
      %p669 = pneg %p668
    $region38: #{patchgan_forward.7} parent=5 // pred_check_branch
      %671 = sbr.rel (%p669) target = $region40
    $region39: #{patchgan_forward.7} parent=5 // pred_region
      %s672 = ssub.s32 %s10, 2
      // Predicated region
      $region41: #{patchgan_forward.7} parent=39 // pred_check
        %p673 = pneg %p100
      $region42: #{patchgan_forward.7} parent=39 // pred_check_branch
        %675 = sbr.rel (%p673) target = $region44
      $region43: #{patchgan_forward.7} parent=39 // pred_region
        %s676 = smul.u32 4, %s22
        %p677 = scmp.lt.s32.totalorder %s21, 1
        %s678 = scalar_select %p677, %s21, 1
        %p679 = scmp.lt.s32.totalorder %s676, 3
        %s680 = scalar_select %p679, %s676, 3
        %s681 = smul.addr %s678, 4
        %s682 = sadd.s32 %s680, %s681
        %s683 = smul.addr %s682, 2
        %s684 = scalar_lea.vmem %s2, %s683
      $region44: #{patchgan_forward.7} parent=39 // pred_fallthru
        _
      // Predicated region
      $region45: #{patchgan_forward.7} parent=39 // pred_check
        %p685 = pneg %p128
      $region46: #{patchgan_forward.7} parent=39 // pred_check_branch
        %687 = sbr.rel (%p685) target = $region48
      $region47: #{patchgan_forward.7} parent=39 // pred_region
        %p688 = scmp.lt.s32.totalorder %s21, 1
        %s689 = scalar_select %p688, %s21, 1
        %p690 = scmp.lt.s32.totalorder %s22, 0
        %s691 = scalar_select %p690, %s22, 0
        %s692 = sadd.s32 %s691, %s689
        %s693 = smul.addr %s692, 2
        %s694 = scalar_lea.vmem %s3, %s693
      $region48: #{patchgan_forward.7} parent=39 // pred_fallthru
        _
    $region40: #{patchgan_forward.7} parent=5 // pred_fallthru
      _
  $region6: #{patchgan_forward.7} parent=0 // loop_footer
    %s14 = sadd.s32 1, %s10
  $region7: #{patchgan_forward.7} parent=0 // loop_footer_branch
    %9 = sbr.rel target = $region3
  $region8: #{patchgan_forward.7} parent=0 // loop_exit
    _

// kernel: patchgan_forward.10
$region0: #{patchgan_forward.10}
  #allocation0 [shape = 'u32[]', space=smem, size = 0x4, offset = 0x4, fixed_abs, tag = 'smem constant byte address 0x4 - core index']
  #allocation1 [shape = 'u32[144,128]{1,0:T(1,128)}', space=vmem, size = 0x12000, scoped, tag = 'internal scratch']
  %s0 = inlined_call_operand.vmem [shape: bf16[2,2,2,128], index: 0, kind: input, shape index: {}]
  %s1 = inlined_call_operand.vmem [shape: f32[1,128], index: 1, kind: input, shape index: {}]
  %s2 = inlined_call_operand.vmem [shape: f32[1,128], index: 2, kind: input, shape index: {}]
  %s3 = inlined_call_operand.vmem [shape: bf16[2,2,2,128], index: 3, kind: output, shape index: {}]
  %s4 = sld [smem:[#allocation0]]
  $region45: #{patchgan_forward.10} parent=0
    _
  %s6 = ssub.s32 1, %s4
  %s7 = scalar_select 0, %s6, %s4
  loop: start=0, step=1, limit=4
  $region2: #{patchgan_forward.10} parent=0 // loop_pre_header
    _
  $region3: #{patchgan_forward.10} parent=0 // loop_header
    %s9 = sphi 0, %s13
    %p10 = scmp.ge.s32.totalorder %s9, 4
    %s16 = sphi 0, %s28
    %s17 = sphi 0, %s24
    %s18 = sphi 0, %s16
    %s19 = sphi 0, %s17
    %s20 = sphi 0, %s18
    %s21 = sphi 0, %s19
    %s33 = sphi 0, %s35
    %s36 = sphi 0, %s33
    %s37 = sphi 0, %s36
    %s53 = sphi 0, %s37
    %s57 = sphi 0, %s57
    %s59 = sphi 0, %s57
    %s60 = sphi 0, %s59
    %s74 = sphi 0, %s60
    %s78 = sphi 0, %s78
    %s80 = sphi 0, %s78
    %s81 = sphi 0, %s80
    %s95 = sphi 0, %s81
    %s103 = sphi 0, %s105
    %s106 = sphi 0, %s103
    %s107 = sphi 0, %s106
    %s123 = sphi 0, %s107
  $region4: #{patchgan_forward.10} parent=0 // loop_header_branch
    %12 = sbr.rel (%p10) target = $region8
  $region5: #{patchgan_forward.10} parent=0 // loop_body
    %s14 = ssub.s32 %s9, 1
    %s15 = ssub.s32 %s9, 2
    %s22 = sadd.s32 1, %s17
    %p23 = scmp.ge.s32.totalorder %s22, 1
    %s24 = scalar_select %p23, 0, %s22
    %s25 = sadd.s32 1, %s16
    %s26 = scalar_select %p23, %s25, %s16
    %p27 = scmp.ge.s32.totalorder %s26, 2
    %s28 = scalar_select %p27, 0, %s26
    %s29 = ssub.s32 %s16, %s28
    %s30 = ssub.s32 %s17, %s24
    %s31 = sor.u32 %s29, %s30
    %p32 = scmp.eq.s32.totalorder %s31, 0
    %s34 = sadd.s32 %s33, 1
    %s35 = scalar_select %p32, %s33, %s34
    %p38 = pneg %p32
    %p39 = scmp.eq.s32.totalorder %s9, 1
    %p40 = por %p38, %p39
    %p41 = scmp.ne.s32.totalorder %s33, %s36
    %p42 = scmp.eq.s32.totalorder %s9, 0
    %p43 = por %p41, %p42
    %p44 = scmp.ne.s32.totalorder %s33, %s36
    %p45 = scmp.eq.s32.totalorder %s14, 1
    %p46 = por %p44, %p45
    %p47 = scmp.ne.s32.totalorder %s36, %s37
    %p48 = scmp.eq.s32.totalorder %s14, 0
    %p49 = por %p47, %p48
    %p50 = scmp.ne.s32.totalorder %s36, %s37
    %p51 = scmp.eq.s32.totalorder %s15, 1
    %p52 = por %p50, %p51
    %p54 = scmp.ne.s32.totalorder %s37, %s53
    %p55 = scmp.eq.s32.totalorder %s15, 0
    %p56 = por %p54, %p55
    %s58 = sadd.s32 %s57, 1
    %p61 = scmp.eq.s32.totalorder %s9, 1
    %p62 = scmp.ne.s32.totalorder %s57, %s59
    %p63 = scmp.eq.s32.totalorder %s9, 0
    %p64 = por %p62, %p63
    %p65 = scmp.ne.s32.totalorder %s57, %s59
    %p66 = scmp.eq.s32.totalorder %s14, 1
    %p67 = por %p65, %p66
    %p68 = scmp.ne.s32.totalorder %s59, %s60
    %p69 = scmp.eq.s32.totalorder %s14, 0
    %p70 = por %p68, %p69
    %p71 = scmp.ne.s32.totalorder %s59, %s60
    %p72 = scmp.eq.s32.totalorder %s15, 1
    %p73 = por %p71, %p72
    %p75 = scmp.ne.s32.totalorder %s60, %s74
    %p76 = scmp.eq.s32.totalorder %s15, 0
    %p77 = por %p75, %p76
    %s79 = sadd.s32 %s78, 1
    %p82 = scmp.eq.s32.totalorder %s9, 1
    %p83 = scmp.ne.s32.totalorder %s78, %s80
    %p84 = scmp.eq.s32.totalorder %s9, 0
    %p85 = por %p83, %p84
    %p86 = scmp.ne.s32.totalorder %s78, %s80
    %p87 = scmp.eq.s32.totalorder %s14, 1
    %p88 = por %p86, %p87
    %p89 = scmp.ne.s32.totalorder %s80, %s81
    %p90 = scmp.eq.s32.totalorder %s14, 0
    %p91 = por %p89, %p90
    %p92 = scmp.ne.s32.totalorder %s80, %s81
    %p93 = scmp.eq.s32.totalorder %s15, 1
    %p94 = por %p92, %p93
    %p96 = scmp.ne.s32.totalorder %s81, %s95
    %p97 = scmp.eq.s32.totalorder %s15, 0
    %p98 = por %p96, %p97
    %s99 = ssub.s32 %s16, %s28
    %s100 = ssub.s32 %s17, %s24
    %s101 = sor.u32 %s99, %s100
    %p102 = scmp.eq.s32.totalorder %s101, 0
    %s104 = sadd.s32 %s103, 1
    %s105 = scalar_select %p102, %s103, %s104
    %p108 = pneg %p102
    %p109 = scmp.eq.s32.totalorder %s9, 1
    %p110 = por %p108, %p109
    %p111 = scmp.ne.s32.totalorder %s103, %s106
    %p112 = scmp.eq.s32.totalorder %s9, 0
    %p113 = por %p111, %p112
    %p114 = scmp.ne.s32.totalorder %s103, %s106
    %p115 = scmp.eq.s32.totalorder %s14, 1
    %p116 = por %p114, %p115
    %p117 = scmp.ne.s32.totalorder %s106, %s107
    %p118 = scmp.eq.s32.totalorder %s14, 0
    %p119 = por %p117, %p118
    %p120 = scmp.ne.s32.totalorder %s106, %s107
    %p121 = scmp.eq.s32.totalorder %s15, 1
    %p122 = por %p120, %p121
    %p124 = scmp.ne.s32.totalorder %s107, %s123
    %p125 = scmp.eq.s32.totalorder %s15, 0
    %p126 = por %p124, %p125
    %p127 = scmp.le.s32.totalorder 1, %s9
    %p128 = scmp.lt.s32.totalorder %s9, 3
    %p129 = pnand %p127, %p128
    %p130 = pneg %p129
    // Predicated region
    $region9: #{patchgan_forward.10} parent=5 // pred_check
      _
    $region10: #{patchgan_forward.10} parent=5 // pred_check_branch
      %132 = sbr.rel (%p129) target = $region12
    $region11: #{patchgan_forward.10} parent=5 // pred_region
      %s133 = ssub.s32 %s9, 1
      // Predicated region
      $region13: #{patchgan_forward.10} parent=11 // pred_check
        %p134 = pneg %p70
      $region14: #{patchgan_forward.10} parent=11 // pred_check_branch
        %136 = sbr.rel (%p134) target = $region16
      $region15: #{patchgan_forward.10} parent=11 // pred_region
        _
      $region16: #{patchgan_forward.10} parent=11 // pred_fallthru
        _
      // Predicated region
      $region17: #{patchgan_forward.10} parent=11 // pred_check
        %p137 = pneg %p91
      $region18: #{patchgan_forward.10} parent=11 // pred_check_branch
        %139 = sbr.rel (%p137) target = $region20
      $region19: #{patchgan_forward.10} parent=11 // pred_region
        _
      $region20: #{patchgan_forward.10} parent=11 // pred_fallthru
        _
    $region12: #{patchgan_forward.10} parent=5 // pred_fallthru
      _
    %p140 = scmp.lt.s32.totalorder %s9, 2
    // Predicated region
    $region21: #{patchgan_forward.10} parent=5 // pred_check
      %p141 = pneg %p140
    $region22: #{patchgan_forward.10} parent=5 // pred_check_branch
      %143 = sbr.rel (%p141) target = $region24
    $region23: #{patchgan_forward.10} parent=5 // pred_region
      // Predicated region
      $region25: #{patchgan_forward.10} parent=23 // pred_check
        %p144 = pneg %p43
      $region26: #{patchgan_forward.10} parent=23 // pred_check_branch
        %146 = sbr.rel (%p144) target = $region28
      $region27: #{patchgan_forward.10} parent=23 // pred_region
        %s147 = smul.u32 2, %s17
        %p148 = scmp.lt.s32.totalorder %s16, 1
        %s149 = scalar_select %p148, %s16, 1
        %p150 = scmp.lt.s32.totalorder %s147, 1
        %s151 = scalar_select %p150, %s147, 1
        %s152 = smul.addr %s149, 2
        %s153 = sadd.s32 %s151, %s152
        %s154 = scalar_lea.vmem %s0, %s153
        %s155 = smul.u32 2, %s17
      $region28: #{patchgan_forward.10} parent=23 // pred_fallthru
        _
    $region24: #{patchgan_forward.10} parent=5 // pred_fallthru
      _
    %p156 = scmp.le.s32.totalorder 1, %s9
    %p157 = scmp.lt.s32.totalorder %s9, 3
    %p158 = pnand %p156, %p157
    %p159 = pneg %p158
    // Predicated region
    $region29: #{patchgan_forward.10} parent=5 // pred_check
      _
    $region30: #{patchgan_forward.10} parent=5 // pred_check_branch
      %161 = sbr.rel (%p158) target = $region32
    $region31: #{patchgan_forward.10} parent=5 // pred_region
      %s162 = ssub.s32 %s9, 1
      %s163 = smul.u32 2, %s19
      %p164 = scmp.lt.s32.totalorder %s18, 1
      %s165 = scalar_select %p164, %s18, 1
      %p166 = scmp.lt.s32.totalorder %s163, 1
      %s167 = scalar_select %p166, %s163, 1
      %s168 = smul.addr %s165, 2
      %s169 = sadd.s32 %s167, %s168
      %s170 = scalar_lea.vmem %s0, %s169
      %p171 = pneg %p49
      %p172 = pneg %p46
      %p173 = pneg %p70
      %p174 = pneg %p67
      %p175 = pneg %p91
      %p176 = pneg %p88
      %p177 = pneg %p119
      %p178 = pneg %p116
      %s179 = smul.u32 2, %s19
      %p180 = scmp.lt.s32.totalorder %s18, 1
      %s181 = scalar_select %p180, %s18, 1
      %p182 = scmp.lt.s32.totalorder %s179, 1
      %s183 = scalar_select %p182, %s179, 1
      %s184 = smul.addr %s181, 2
      %s185 = sadd.s32 %s183, %s184
      %s186 = scalar_lea.vmem %s3, %s185
      %s187 = smul.u32 2, %s19
      %p188 = scmp.lt.s32.totalorder %s18, 1
      %s189 = scalar_select %p188, %s18, 1
      %p190 = scmp.lt.s32.totalorder %s187, 1
      %s191 = scalar_select %p190, %s187, 1
      %s192 = smul.addr %s189, 2
      %s193 = sadd.s32 %s191, %s192
      %s194 = scalar_lea.vmem %s0, %s193
      %s195 = smul.u32 2, %s19
      %s196 = smul.u32 2, %s19
      %p197 = scmp.lt.s32.totalorder %s18, 1
      %s198 = scalar_select %p197, %s18, 1
      %p199 = scmp.lt.s32.totalorder %s196, 1
      %s200 = scalar_select %p199, %s196, 1
      %s201 = smul.addr %s198, 2
      %s202 = sadd.s32 %s200, %s201
      %s203 = scalar_lea.vmem %s3, %s202
      %s204 = smul.u32 2, %s19
      %v205 = vld [vmem:[%s194] sm:$0x1]
      %v206 = vld [vmem:[%s194 + $0x1] sm:$0x1]
      %v207 = vunpack.c.l.bf16 %v205
      %v208 = vunpack.c.l.bf16 %v206
      %v209 = vld [vmem:[%s1] sm:$0x1]
      %v211 = vlaneseq
      %v212 = vshrl.u32 %v211, 7
      %v213 = vsub.s32 0, %v212
      %v214 = vrot.slane %v209, %v213
      %v216 = vmul.f32 %v207, %v214
      %v217 = vmul.f32 %v208, %v214
      %v218 = vld [vmem:[%s2] sm:$0x1]
      %v220 = vlaneseq
      %v221 = vshrl.u32 %v220, 7
      %v222 = vsub.s32 0, %v221
      %v223 = vrot.slane %v218, %v222
      %v225 = vadd.f32 %v216, %v223
      %v226 = vadd.f32 %v217, %v223
      %vm227 = vcmp.ge.f32.partialorder %v225, 0.0
      %vm228 = vcmp.ge.f32.partialorder %v226, 0.0
      %v229 = vmul.f32 %v225, 0.2
      %v230 = vmul.f32 %v226, 0.2
      %v231 = vsel %vm227, %v225, %v229
      %v232 = vsel %vm228, %v226, %v230
      %v233 = vpack.c.bf16 %v231, %v231
      %v234 = vpack.c.bf16 %v232, %v232
      %235 = vst [vmem:[%s203] sm:$0x1] %v233
      %236 = vst [vmem:[%s203 + $0x1] sm:$0x1] %v234
      %s237 = smul.u32 2, %s19
      %p238 = scmp.lt.s32.totalorder %s18, 1
      %s239 = scalar_select %p238, %s18, 1
      %p240 = scmp.lt.s32.totalorder %s237, 1
      %s241 = scalar_select %p240, %s237, 1
      %s242 = smul.addr %s239, 2
      %s243 = sadd.s32 %s241, %s242
      %s244 = scalar_lea.vmem %s3, %s243
      // Predicated region
      $region33: #{patchgan_forward.10} parent=31 // pred_check
        %p245 = pneg %p116
      $region34: #{patchgan_forward.10} parent=31 // pred_check_branch
        %247 = sbr.rel (%p245) target = $region36
      $region35: #{patchgan_forward.10} parent=31 // pred_region
        %s248 = smul.u32 2, %s19
      $region36: #{patchgan_forward.10} parent=31 // pred_fallthru
        _
    $region32: #{patchgan_forward.10} parent=5 // pred_fallthru
      _
    %p249 = scmp.le.s32.totalorder 2, %s9
    // Predicated region
    $region37: #{patchgan_forward.10} parent=5 // pred_check
      %p250 = pneg %p249
    $region38: #{patchgan_forward.10} parent=5 // pred_check_branch
      %252 = sbr.rel (%p250) target = $region40
    $region39: #{patchgan_forward.10} parent=5 // pred_region
      %s253 = ssub.s32 %s9, 2
      // Predicated region
      $region41: #{patchgan_forward.10} parent=39 // pred_check
        %p254 = pneg %p122
      $region42: #{patchgan_forward.10} parent=39 // pred_check_branch
        %256 = sbr.rel (%p254) target = $region44
      $region43: #{patchgan_forward.10} parent=39 // pred_region
        %s257 = smul.u32 2, %s21
        %p258 = scmp.lt.s32.totalorder %s20, 1
        %s259 = scalar_select %p258, %s20, 1
        %p260 = scmp.lt.s32.totalorder %s257, 1
        %s261 = scalar_select %p260, %s257, 1
        %s262 = smul.addr %s259, 2
        %s263 = sadd.s32 %s261, %s262
        %s264 = scalar_lea.vmem %s3, %s263
      $region44: #{patchgan_forward.10} parent=39 // pred_fallthru
        _
    $region40: #{patchgan_forward.10} parent=5 // pred_fallthru
      _
  $region6: #{patchgan_forward.10} parent=0 // loop_footer
    %s13 = sadd.s32 1, %s9
  $region7: #{patchgan_forward.10} parent=0 // loop_footer_branch
    %8 = sbr.rel target = $region3
  $region8: #{patchgan_forward.10} parent=0 // loop_exit
    _

// kernel: patchgan_forward.9
$region0: #{patchgan_forward.9}
  #allocation0 [shape = 'u32[]', space=smem, size = 0x4, offset = 0x4, fixed_abs, tag = 'smem constant byte address 0x4 - core index']
  #allocation1 [shape = 'u32[144,128]{1,0:T(1,128)}', space=vmem, size = 0x12000, scoped, tag = 'internal scratch']
  %s0 = inlined_call_operand.vmem [shape: bf16[2,3,3,128], index: 0, kind: input, shape index: {}]
  %s1 = inlined_call_operand.vmem [shape: bf16[2,256,128], index: 1, kind: input, shape index: {}]
  %s2 = inlined_call_operand.vmem [shape: bf16[2,2,2,128], index: 2, kind: output, shape index: {0}]
  %s3 = inlined_call_operand.vmem [shape: f32[2,1,2,128], index: 3, kind: output, shape index: {1}]
  %4 = xla_tuple %s2, %s3
  %s5 = sld [smem:[#allocation0]]
  $region49: #{patchgan_forward.9} parent=0
    _
  %s7 = ssub.s32 1, %s5
  %s8 = scalar_select 0, %s7, %s5
  loop: start=0, step=1, limit=4
  $region2: #{patchgan_forward.9} parent=0 // loop_pre_header
    _
  $region3: #{patchgan_forward.9} parent=0 // loop_header
    %s10 = sphi 0, %s14
    %p11 = scmp.ge.s32.totalorder %s10, 4
    %s17 = sphi 0, %s29
    %s18 = sphi 0, %s25
    %s19 = sphi 0, %s17
    %s20 = sphi 0, %s18
    %s21 = sphi 0, %s19
    %s22 = sphi 0, %s20
    %s32 = sphi 0, %s34
    %s35 = sphi 0, %s32
    %s36 = sphi 0, %s35
    %s52 = sphi 0, %s36
    %s56 = sphi 0, %s56
    %s58 = sphi 0, %s56
    %s59 = sphi 0, %s58
    %s73 = sphi 0, %s59
    %s81 = sphi 0, %s83
    %s84 = sphi 0, %s81
    %s85 = sphi 0, %s84
    %s101 = sphi 0, %s85
    %s109 = sphi 0, %s111
    %s112 = sphi 0, %s109
    %s113 = sphi 0, %s112
    %s129 = sphi 0, %s113
  $region4: #{patchgan_forward.9} parent=0 // loop_header_branch
    %13 = sbr.rel (%p11) target = $region8
  $region5: #{patchgan_forward.9} parent=0 // loop_body
    %s15 = ssub.s32 %s10, 1
    %s16 = ssub.s32 %s10, 2
    %s23 = sadd.s32 1, %s18
    %p24 = scmp.ge.s32.totalorder %s23, 1
    %s25 = scalar_select %p24, 0, %s23
    %s26 = sadd.s32 1, %s17
    %s27 = scalar_select %p24, %s26, %s17
    %p28 = scmp.ge.s32.totalorder %s27, 2
    %s29 = scalar_select %p28, 0, %s27
    %s30 = ssub.s32 %s17, %s29
    %p31 = scmp.eq.s32.totalorder %s30, 0
    %s33 = sadd.s32 %s32, 1
    %s34 = scalar_select %p31, %s32, %s33
    %p37 = pneg %p31
    %p38 = scmp.eq.s32.totalorder %s10, 1
    %p39 = por %p37, %p38
    %p40 = scmp.ne.s32.totalorder %s32, %s35
    %p41 = scmp.eq.s32.totalorder %s10, 0
    %p42 = por %p40, %p41
    %p43 = scmp.ne.s32.totalorder %s32, %s35
    %p44 = scmp.eq.s32.totalorder %s15, 1
    %p45 = por %p43, %p44
    %p46 = scmp.ne.s32.totalorder %s35, %s36
    %p47 = scmp.eq.s32.totalorder %s15, 0
    %p48 = por %p46, %p47
    %p49 = scmp.ne.s32.totalorder %s35, %s36
    %p50 = scmp.eq.s32.totalorder %s16, 1
    %p51 = por %p49, %p50
    %p53 = scmp.ne.s32.totalorder %s36, %s52
    %p54 = scmp.eq.s32.totalorder %s16, 0
    %p55 = por %p53, %p54
    %s57 = sadd.s32 %s56, 1
    %p60 = scmp.eq.s32.totalorder %s10, 1
    %p61 = scmp.ne.s32.totalorder %s56, %s58
    %p62 = scmp.eq.s32.totalorder %s10, 0
    %p63 = por %p61, %p62
    %p64 = scmp.ne.s32.totalorder %s56, %s58
    %p65 = scmp.eq.s32.totalorder %s15, 1
    %p66 = por %p64, %p65
    %p67 = scmp.ne.s32.totalorder %s58, %s59
    %p68 = scmp.eq.s32.totalorder %s15, 0
    %p69 = por %p67, %p68
    %p70 = scmp.ne.s32.totalorder %s58, %s59
    %p71 = scmp.eq.s32.totalorder %s16, 1
    %p72 = por %p70, %p71
    %p74 = scmp.ne.s32.totalorder %s59, %s73
    %p75 = scmp.eq.s32.totalorder %s16, 0
    %p76 = por %p74, %p75
    %s77 = ssub.s32 %s17, %s29
    %s78 = ssub.s32 %s18, %s25
    %s79 = sor.u32 %s77, %s78
    %p80 = scmp.eq.s32.totalorder %s79, 0
    %s82 = sadd.s32 %s81, 1
    %s83 = scalar_select %p80, %s81, %s82
    %p86 = pneg %p80
    %p87 = scmp.eq.s32.totalorder %s10, 1
    %p88 = por %p86, %p87
    %p89 = scmp.ne.s32.totalorder %s81, %s84
    %p90 = scmp.eq.s32.totalorder %s10, 0
    %p91 = por %p89, %p90
    %p92 = scmp.ne.s32.totalorder %s81, %s84
    %p93 = scmp.eq.s32.totalorder %s15, 1
    %p94 = por %p92, %p93
    %p95 = scmp.ne.s32.totalorder %s84, %s85
    %p96 = scmp.eq.s32.totalorder %s15, 0
    %p97 = por %p95, %p96
    %p98 = scmp.ne.s32.totalorder %s84, %s85
    %p99 = scmp.eq.s32.totalorder %s16, 1
    %p100 = por %p98, %p99
    %p102 = scmp.ne.s32.totalorder %s85, %s101
    %p103 = scmp.eq.s32.totalorder %s16, 0
    %p104 = por %p102, %p103
    %s105 = ssub.s32 %s17, %s29
    %s106 = ssub.s32 %s18, %s25
    %s107 = sor.u32 %s105, %s106
    %p108 = scmp.eq.s32.totalorder %s107, 0
    %s110 = sadd.s32 %s109, 1
    %s111 = scalar_select %p108, %s109, %s110
    %p114 = pneg %p108
    %p115 = scmp.eq.s32.totalorder %s10, 1
    %p116 = por %p114, %p115
    %p117 = scmp.ne.s32.totalorder %s109, %s112
    %p118 = scmp.eq.s32.totalorder %s10, 0
    %p119 = por %p117, %p118
    %p120 = scmp.ne.s32.totalorder %s109, %s112
    %p121 = scmp.eq.s32.totalorder %s15, 1
    %p122 = por %p120, %p121
    %p123 = scmp.ne.s32.totalorder %s112, %s113
    %p124 = scmp.eq.s32.totalorder %s15, 0
    %p125 = por %p123, %p124
    %p126 = scmp.ne.s32.totalorder %s112, %s113
    %p127 = scmp.eq.s32.totalorder %s16, 1
    %p128 = por %p126, %p127
    %p130 = scmp.ne.s32.totalorder %s113, %s129
    %p131 = scmp.eq.s32.totalorder %s16, 0
    %p132 = por %p130, %p131
    %p133 = scmp.le.s32.totalorder 1, %s10
    %p134 = scmp.lt.s32.totalorder %s10, 3
    %p135 = pnand %p133, %p134
    %p136 = pneg %p135
    // Predicated region
    $region9: #{patchgan_forward.9} parent=5 // pred_check
      _
    $region10: #{patchgan_forward.9} parent=5 // pred_check_branch
      %138 = sbr.rel (%p135) target = $region12
    $region11: #{patchgan_forward.9} parent=5 // pred_region
      %s139 = ssub.s32 %s10, 1
      // Predicated region
      $region13: #{patchgan_forward.9} parent=11 // pred_check
        %p140 = pneg %p69
      $region14: #{patchgan_forward.9} parent=11 // pred_check_branch
        %142 = sbr.rel (%p140) target = $region16
      $region15: #{patchgan_forward.9} parent=11 // pred_region
        _
      $region16: #{patchgan_forward.9} parent=11 // pred_fallthru
        _
    $region12: #{patchgan_forward.9} parent=5 // pred_fallthru
      _
    %p143 = scmp.lt.s32.totalorder %s10, 2
    // Predicated region
    $region17: #{patchgan_forward.9} parent=5 // pred_check
      %p144 = pneg %p143
    $region18: #{patchgan_forward.9} parent=5 // pred_check_branch
      %146 = sbr.rel (%p144) target = $region20
    $region19: #{patchgan_forward.9} parent=5 // pred_region
      // Predicated region
      $region21: #{patchgan_forward.9} parent=19 // pred_check
        %p147 = pneg %p42
      $region22: #{patchgan_forward.9} parent=19 // pred_check_branch
        %149 = sbr.rel (%p147) target = $region24
      $region23: #{patchgan_forward.9} parent=19 // pred_region
        %p150 = scmp.lt.s32.totalorder %s17, 1
        %s151 = scalar_select %p150, %s17, 1
        %s152 = smul.addr %s151, 3
        %s153 = smul.addr %s152, 2
        %s154 = scalar_lea.vmem %s0, %s153
      $region24: #{patchgan_forward.9} parent=19 // pred_fallthru
        _
    $region20: #{patchgan_forward.9} parent=5 // pred_fallthru
      _
    %p155 = scmp.le.s32.totalorder 1, %s10
    %p156 = scmp.lt.s32.totalorder %s10, 3
    %p157 = pnand %p155, %p156
    %p158 = pneg %p157
    // Predicated region
    $region25: #{patchgan_forward.9} parent=5 // pred_check
      _
    $region26: #{patchgan_forward.9} parent=5 // pred_check_branch
      %160 = sbr.rel (%p157) target = $region28
    $region27: #{patchgan_forward.9} parent=5 // pred_region
      %s161 = ssub.s32 %s10, 1
      %p162 = scmp.lt.s32.totalorder %s19, 1
      %s163 = scalar_select %p162, %s19, 1
      %s164 = smul.addr %s163, 3
      %s165 = smul.addr %s164, 2
      %s166 = scalar_lea.vmem %s0, %s165
      %p167 = pneg %p48
      %p168 = pneg %p45
      %p169 = pneg %p69
      %p170 = pneg %p66
      %p171 = pneg %p97
      %p172 = pneg %p94
      %s173 = smul.u32 2, %s20
      %p174 = scmp.lt.s32.totalorder %s19, 1
      %s175 = scalar_select %p174, %s19, 1
      %p176 = scmp.lt.s32.totalorder %s173, 1
      %s177 = scalar_select %p176, %s173, 1
      %s178 = smul.addr %s175, 2
      %s179 = sadd.s32 %s177, %s178
      %s180 = scalar_lea.vmem %s2, %s179
      %p181 = pneg %p125
      %p182 = pneg %p122
      %p183 = scmp.lt.s32.totalorder %s19, 1
      %s184 = scalar_select %p183, %s19, 1
      %p185 = scmp.lt.s32.totalorder %s20, 0
      %s186 = scalar_select %p185, %s20, 0
      %s187 = sadd.s32 %s186, %s184
      %s188 = smul.addr %s187, 2
      %s189 = scalar_lea.vmem %s3, %s188
      %p190 = scmp.lt.s32.totalorder %s19, 1
      %s191 = scalar_select %p190, %s19, 1
      %s192 = smul.addr %s191, 3
      %s193 = smul.addr %s192, 2
      %s194 = scalar_lea.vmem %s0, %s193
      %s195 = smul.u32 2, %s20
      %p196 = scmp.lt.s32.totalorder %s19, 1
      %s197 = scalar_select %p196, %s19, 1
      %p198 = scmp.lt.s32.totalorder %s195, 1
      %s199 = scalar_select %p198, %s195, 1
      %s200 = smul.addr %s197, 2
      %s201 = sadd.s32 %s199, %s200
      %s202 = scalar_lea.vmem %s2, %s201
      %s203 = smul.u32 2, %s20
      %p204 = scmp.lt.s32.totalorder %s19, 1
      %s205 = scalar_select %p204, %s19, 1
      %p206 = scmp.lt.s32.totalorder %s20, 0
      %s207 = scalar_select %p206, %s20, 0
      %s208 = sadd.s32 %s207, %s205
      %s209 = smul.addr %s208, 2
      %s210 = scalar_lea.vmem %s3, %s209
      %s212 = smul.u32 %s20, 2
      %s213 = smul.addr %s212, 2
      %s214 = scalar_lea.vmem %s194, %s213
      %v215 = vld [vmem:[%s214] sm:$0x1]
      %v216 = vld [vmem:[%s214 + $0x2] sm:$0x1]
      %v217 = vld [vmem:[%s214] sm:$0x3]
      %v218 = vld [vmem:[%s214 + $0x2] sm:$0x3]
      %v222 = vunpack.c.l.s4 1983009808
      %v223 = vunpack.c.0.s8 %v222
      %v224 = vlaneseq
      %v225 = vshrl.u32 %v224, 7
      %v226 = vsub.s32 %v223, %v225
      %v227 = vrot.slane %v217, %v226
      %v229 = vunpack.c.l.s4 1983009808
      %v230 = vunpack.c.0.s8 %v229
      %v231 = vlaneseq
      %v232 = vshrl.u32 %v231, 7
      %v233 = vsub.s32 %v230, %v232
      %v234 = vrot.slane %v218, %v233
      %v236 = vshrl.u32 %v227, 16
      %v238 = vshll.u32 %v227, 16
      %v240 = vrot.slane %v238, 1
      %v241 = vor.u32 %v236, %v240
      %v243 = vshrl.u32 %v234, 16
      %v245 = vshll.u32 %v234, 16
      %v247 = vrot.slane %v245, 1
      %v248 = vor.u32 %v243, %v247
      %v251 = vcombine.low %v215, %v241
      %v253 = vunpack.c.l.s4 1966171168
      %v254 = vunpack.c.0.s8 %v253
      %v255 = vlaneseq
      %v256 = vshrl.u32 %v255, 7
      %v257 = vsub.s32 %v254, %v256
      %v258 = vrot.slane %v251, %v257
      %v260 = vunpack.c.l.s4 1966171168
      %v261 = vunpack.c.0.s8 %v260
      %v262 = vlaneseq
      %v263 = vshrl.u32 %v262, 7
      %v264 = vsub.s32 %v261, %v263
      %v265 = vrot.slane %v258, %v264
      %v266 = vcombine.low %v216, %v248
      %v268 = vunpack.c.l.s4 1966171168
      %v269 = vunpack.c.0.s8 %v268
      %v270 = vlaneseq
      %v271 = vshrl.u32 %v270, 7
      %v272 = vsub.s32 %v269, %v271
      %v273 = vrot.slane %v266, %v272
      %v275 = vunpack.c.l.s4 1966171168
      %v276 = vunpack.c.0.s8 %v275
      %v277 = vlaneseq
      %v278 = vshrl.u32 %v277, 7
      %v279 = vsub.s32 %v276, %v278
      %v280 = vrot.slane %v273, %v279
      %v281 = vld [vmem:[%s1] sm:$0xf]
      %v282 = vld [vmem:[%s1 + $0x4] sm:$0xf]
      %v283 = vld [vmem:[%s1 + $0x8] sm:$0xf]
      %v284 = vld [vmem:[%s1 + $0xc] sm:$0xf]
      %v285 = vld [vmem:[%s1 + $0x10] sm:$0xf]
      %v286 = vld [vmem:[%s1 + $0x14] sm:$0xf]
      %v287 = vld [vmem:[%s1 + $0x18] sm:$0xf]
      %v288 = vld [vmem:[%s1 + $0x1c] sm:$0xf]
      %v289 = vld [vmem:[%s1 + $0x20] sm:$0xf]
      %v290 = vld [vmem:[%s1 + $0x24] sm:$0xf]
      %v291 = vld [vmem:[%s1 + $0x28] sm:$0xf]
      %v292 = vld [vmem:[%s1 + $0x2c] sm:$0xf]
      %v293 = vld [vmem:[%s1 + $0x30] sm:$0xf]
      %v294 = vld [vmem:[%s1 + $0x34] sm:$0xf]
      %v295 = vld [vmem:[%s1 + $0x38] sm:$0xf]
      %v296 = vld [vmem:[%s1 + $0x3c] sm:$0xf]
      %v297 = vld [vmem:[%s1 + $0x40] sm:$0xf]
      %v298 = vld [vmem:[%s1 + $0x44] sm:$0xf]
      %v299 = vld [vmem:[%s1 + $0x48] sm:$0xf]
      %v300 = vld [vmem:[%s1 + $0x4c] sm:$0xf]
      %v301 = vld [vmem:[%s1 + $0x50] sm:$0xf]
      %v302 = vld [vmem:[%s1 + $0x54] sm:$0xf]
      %v303 = vld [vmem:[%s1 + $0x58] sm:$0xf]
      %v304 = vld [vmem:[%s1 + $0x5c] sm:$0xf]
      %v305 = vld [vmem:[%s1 + $0x60] sm:$0xf]
      %v306 = vld [vmem:[%s1 + $0x64] sm:$0xf]
      %v307 = vld [vmem:[%s1 + $0x68] sm:$0xf]
      %v308 = vld [vmem:[%s1 + $0x6c] sm:$0xf]
      %v309 = vld [vmem:[%s1 + $0x70] sm:$0xf]
      %v310 = vld [vmem:[%s1 + $0x74] sm:$0xf]
      %v311 = vld [vmem:[%s1 + $0x78] sm:$0xf]
      %v312 = vld [vmem:[%s1 + $0x7c] sm:$0xf]
      %s313 = sadd.s32 %s212, 1
      %s314 = smul.addr %s313, 2
      %s315 = scalar_lea.vmem %s194, %s314
      %v316 = vld [vmem:[%s315] sm:$0x1]
      %v317 = vld [vmem:[%s315 + $0x2] sm:$0x1]
      %v318 = vld [vmem:[%s315] sm:$0x3]
      %v319 = vld [vmem:[%s315 + $0x2] sm:$0x3]
      %v323 = vunpack.c.l.s4 1983009808
      %v324 = vunpack.c.0.s8 %v323
      %v325 = vlaneseq
      %v326 = vshrl.u32 %v325, 7
      %v327 = vsub.s32 %v324, %v326
      %v328 = vrot.slane %v318, %v327
      %v330 = vunpack.c.l.s4 1983009808
      %v331 = vunpack.c.0.s8 %v330
      %v332 = vlaneseq
      %v333 = vshrl.u32 %v332, 7
      %v334 = vsub.s32 %v331, %v333
      %v335 = vrot.slane %v319, %v334
      %v337 = vshrl.u32 %v328, 16
      %v339 = vshll.u32 %v328, 16
      %v341 = vrot.slane %v339, 1
      %v342 = vor.u32 %v337, %v341
      %v344 = vshrl.u32 %v335, 16
      %v346 = vshll.u32 %v335, 16
      %v348 = vrot.slane %v346, 1
      %v349 = vor.u32 %v344, %v348
      %v352 = vcombine.low %v316, %v342
      %v354 = vunpack.c.l.s4 1966171168
      %v355 = vunpack.c.0.s8 %v354
      %v356 = vlaneseq
      %v357 = vshrl.u32 %v356, 7
      %v358 = vsub.s32 %v355, %v357
      %v359 = vrot.slane %v352, %v358
      %v361 = vunpack.c.l.s4 1966171168
      %v362 = vunpack.c.0.s8 %v361
      %v363 = vlaneseq
      %v364 = vshrl.u32 %v363, 7
      %v365 = vsub.s32 %v362, %v364
      %v366 = vrot.slane %v359, %v365
      %v367 = vcombine.low %v317, %v349
      %v369 = vunpack.c.l.s4 1966171168
      %v370 = vunpack.c.0.s8 %v369
      %v371 = vlaneseq
      %v372 = vshrl.u32 %v371, 7
      %v373 = vsub.s32 %v370, %v372
      %v374 = vrot.slane %v367, %v373
      %v376 = vunpack.c.l.s4 1966171168
      %v377 = vunpack.c.0.s8 %v376
      %v378 = vlaneseq
      %v379 = vshrl.u32 %v378, 7
      %v380 = vsub.s32 %v377, %v379
      %v381 = vrot.slane %v374, %v380
      %s382 = scalar_lea.vmem %s1, 128
      %v383 = vld [vmem:[%s382] sm:$0xf]
      %v384 = vld [vmem:[%s382 + $0x4] sm:$0xf]
      %v385 = vld [vmem:[%s382 + $0x8] sm:$0xf]
      %v386 = vld [vmem:[%s382 + $0xc] sm:$0xf]
      %v387 = vld [vmem:[%s382 + $0x10] sm:$0xf]
      %v388 = vld [vmem:[%s382 + $0x14] sm:$0xf]
      %v389 = vld [vmem:[%s382 + $0x18] sm:$0xf]
      %v390 = vld [vmem:[%s382 + $0x1c] sm:$0xf]
      %v391 = vld [vmem:[%s382 + $0x20] sm:$0xf]
      %v392 = vld [vmem:[%s382 + $0x24] sm:$0xf]
      %v393 = vld [vmem:[%s382 + $0x28] sm:$0xf]
      %v394 = vld [vmem:[%s382 + $0x2c] sm:$0xf]
      %v395 = vld [vmem:[%s382 + $0x30] sm:$0xf]
      %v396 = vld [vmem:[%s382 + $0x34] sm:$0xf]
      %v397 = vld [vmem:[%s382 + $0x38] sm:$0xf]
      %v398 = vld [vmem:[%s382 + $0x3c] sm:$0xf]
      %v399 = vld [vmem:[%s382 + $0x40] sm:$0xf]
      %v400 = vld [vmem:[%s382 + $0x44] sm:$0xf]
      %v401 = vld [vmem:[%s382 + $0x48] sm:$0xf]
      %v402 = vld [vmem:[%s382 + $0x4c] sm:$0xf]
      %v403 = vld [vmem:[%s382 + $0x50] sm:$0xf]
      %v404 = vld [vmem:[%s382 + $0x54] sm:$0xf]
      %v405 = vld [vmem:[%s382 + $0x58] sm:$0xf]
      %v406 = vld [vmem:[%s382 + $0x5c] sm:$0xf]
      %v407 = vld [vmem:[%s382 + $0x60] sm:$0xf]
      %v408 = vld [vmem:[%s382 + $0x64] sm:$0xf]
      %v409 = vld [vmem:[%s382 + $0x68] sm:$0xf]
      %v410 = vld [vmem:[%s382 + $0x6c] sm:$0xf]
      %v411 = vld [vmem:[%s382 + $0x70] sm:$0xf]
      %v412 = vld [vmem:[%s382 + $0x74] sm:$0xf]
      %v413 = vld [vmem:[%s382 + $0x78] sm:$0xf]
      %v414 = vld [vmem:[%s382 + $0x7c] sm:$0xf]
      %v415 = vcombine.low %v366, %v381
      %v417 = vunpack.c.l.s4 1966171168
      %v418 = vunpack.c.0.s8 %v417
      %v419 = vlaneseq
      %v420 = vshrl.u32 %v419, 7
      %v421 = vsub.s32 %v418, %v420
      %v422 = vrot.slane %v415, %v421
      %v423 = vcombine.high %v422, %v422
      %v425 = vunpack.c.l.s4 1966171168
      %v426 = vunpack.c.0.s8 %v425
      %v427 = vlaneseq
      %v428 = vshrl.u32 %v427, 7
      %v429 = vsub.s32 %v426, %v428
      %v430 = vrot.slane %v422, %v429
      %v432 = vunpack.c.l.s4 1966171168
      %v433 = vunpack.c.0.s8 %v432
      %v434 = vlaneseq
      %v435 = vshrl.u32 %v434, 7
      %v436 = vsub.s32 %v433, %v435
      %v437 = vrot.slane %v423, %v436
      %v472 = vunpack.c.l.b16 %v383
      %v473 = vunpack.c.l.b16 %v384
      %v474 = vunpack.c.l.b16 %v385
      %v475 = vunpack.c.l.b16 %v386
      %v476 = vunpack.c.l.b16 %v387
      %v477 = vunpack.c.l.b16 %v388
      %v478 = vunpack.c.l.b16 %v389
      %v479 = vunpack.c.l.b16 %v390
      %v480 = vunpack.c.l.b16 %v391
      %v481 = vunpack.c.l.b16 %v392
      %v482 = vunpack.c.l.b16 %v393
      %v483 = vunpack.c.l.b16 %v394
      %v484 = vunpack.c.l.b16 %v395
      %v485 = vunpack.c.l.b16 %v396
      %v486 = vunpack.c.l.b16 %v397
      %v487 = vunpack.c.l.b16 %v398
      %v488 = vunpack.c.l.b16 %v399
      %v489 = vunpack.c.l.b16 %v400
      %v490 = vunpack.c.l.b16 %v401
      %v491 = vunpack.c.l.b16 %v402
      %v492 = vunpack.c.l.b16 %v403
      %v493 = vunpack.c.l.b16 %v404
      %v494 = vunpack.c.l.b16 %v405
      %v495 = vunpack.c.l.b16 %v406
      %v496 = vunpack.c.l.b16 %v407
      %v497 = vunpack.c.l.b16 %v408
      %v498 = vunpack.c.l.b16 %v409
      %v499 = vunpack.c.l.b16 %v410
      %v500 = vunpack.c.l.b16 %v411
      %v501 = vunpack.c.l.b16 %v412
      %v502 = vunpack.c.l.b16 %v413
      %v503 = vunpack.c.l.b16 %v414
      %v504 = vpack.c.b16 %v473, %v472
      %v505 = vpack.c.b16 %v475, %v474
      %v506 = vpack.c.b16 %v477, %v476
      %v507 = vpack.c.b16 %v479, %v478
      %v508 = vpack.c.b16 %v481, %v480
      %v509 = vpack.c.b16 %v483, %v482
      %v510 = vpack.c.b16 %v485, %v484
      %v511 = vpack.c.b16 %v487, %v486
      %v512 = vpack.c.b16 %v489, %v488
      %v513 = vpack.c.b16 %v491, %v490
      %v514 = vpack.c.b16 %v493, %v492
      %v515 = vpack.c.b16 %v495, %v494
      %v516 = vpack.c.b16 %v497, %v496
      %v517 = vpack.c.b16 %v499, %v498
      %v518 = vpack.c.b16 %v501, %v500
      %v519 = vpack.c.b16 %v503, %v502
      %536 = vmatprep.subr.bf16.mxu0 0
      %537 = vmatpush1.bf16.msra.mxu0 %v504
      %538 = vmatprep.subr.bf16.mxu0 0
      %539 = vmatpush1.bf16.msra.mxu0 %v505
      %540 = vmatprep.subr.bf16.mxu0 0
      %541 = vmatpush1.bf16.msra.mxu0 %v506
      %542 = vmatprep.subr.bf16.mxu0 0
      %543 = vmatpush1.bf16.msra.mxu0 %v507
      %544 = vmatprep.subr.bf16.mxu0 0
      %545 = vmatpush1.bf16.msra.mxu0 %v508
      %546 = vmatprep.subr.bf16.mxu0 0
      %547 = vmatpush1.bf16.msra.mxu0 %v509
      %548 = vmatprep.subr.bf16.mxu0 0
      %549 = vmatpush1.bf16.msra.mxu0 %v510
      %550 = vmatprep.subr.bf16.mxu0 0
      %551 = vmatpush1.bf16.msra.mxu0 %v511
      %552 = vmatprep.subr.bf16.mxu0 0
      %553 = vmatpush1.bf16.msra.mxu0 %v512
      %554 = vmatprep.subr.bf16.mxu0 0
      %555 = vmatpush1.bf16.msra.mxu0 %v513
      %556 = vmatprep.subr.bf16.mxu0 0
      %557 = vmatpush1.bf16.msra.mxu0 %v514
      %558 = vmatprep.subr.bf16.mxu0 0
      %559 = vmatpush1.bf16.msra.mxu0 %v515
      %560 = vmatprep.subr.bf16.mxu0 0
      %561 = vmatpush1.bf16.msra.mxu0 %v516
      %562 = vmatprep.subr.bf16.mxu0 0
      %563 = vmatpush1.bf16.msra.mxu0 %v517
      %564 = vmatprep.subr.bf16.mxu0 0
      %565 = vmatpush1.bf16.msra.mxu0 %v518
      %566 = vmatprep.subr.bf16.mxu0 0
      %567 = vmatpush1.bf16.msra.mxu0 %v519
      %568 = vmatprep.mubr.bf16.mxu0 %v437
      %569 = vmatmul.mubr.bf16.gmra.mrb[0].mxu0 %v430
      %v570 = vpop.f32.mrb[0].mxu0
      %v571 = vadd.f32 0.0, %v570
      %v572 = vpop.f32.mrb[0].mxu0
      %v573 = vpop.f32.mrb[0].mxu0
      %v574 = vpop.f32.mrb[0].mxu0
      %575 = vdwg.mxu0
      %v576 = vcombine.low %v265, %v280
      %v578 = vunpack.c.l.s4 1966171168
      %v579 = vunpack.c.0.s8 %v578
      %v580 = vlaneseq
      %v581 = vshrl.u32 %v580, 7
      %v582 = vsub.s32 %v579, %v581
      %v583 = vrot.slane %v576, %v582
      %v584 = vcombine.high %v583, %v583
      %v586 = vunpack.c.l.s4 1966171168
      %v587 = vunpack.c.0.s8 %v586
      %v588 = vlaneseq
      %v589 = vshrl.u32 %v588, 7
      %v590 = vsub.s32 %v587, %v589
      %v591 = vrot.slane %v583, %v590
      %v593 = vunpack.c.l.s4 1966171168
      %v594 = vunpack.c.0.s8 %v593
      %v595 = vlaneseq
      %v596 = vshrl.u32 %v595, 7
      %v597 = vsub.s32 %v594, %v596
      %v598 = vrot.slane %v584, %v597
      %v633 = vunpack.c.l.b16 %v281
      %v634 = vunpack.c.l.b16 %v282
      %v635 = vunpack.c.l.b16 %v283
      %v636 = vunpack.c.l.b16 %v284
      %v637 = vunpack.c.l.b16 %v285
      %v638 = vunpack.c.l.b16 %v286
      %v639 = vunpack.c.l.b16 %v287
      %v640 = vunpack.c.l.b16 %v288
      %v641 = vunpack.c.l.b16 %v289
      %v642 = vunpack.c.l.b16 %v290
      %v643 = vunpack.c.l.b16 %v291
      %v644 = vunpack.c.l.b16 %v292
      %v645 = vunpack.c.l.b16 %v293
      %v646 = vunpack.c.l.b16 %v294
      %v647 = vunpack.c.l.b16 %v295
      %v648 = vunpack.c.l.b16 %v296
      %v649 = vunpack.c.l.b16 %v297
      %v650 = vunpack.c.l.b16 %v298
      %v651 = vunpack.c.l.b16 %v299
      %v652 = vunpack.c.l.b16 %v300
      %v653 = vunpack.c.l.b16 %v301
      %v654 = vunpack.c.l.b16 %v302
      %v655 = vunpack.c.l.b16 %v303
      %v656 = vunpack.c.l.b16 %v304
      %v657 = vunpack.c.l.b16 %v305
      %v658 = vunpack.c.l.b16 %v306
      %v659 = vunpack.c.l.b16 %v307
      %v660 = vunpack.c.l.b16 %v308
      %v661 = vunpack.c.l.b16 %v309
      %v662 = vunpack.c.l.b16 %v310
      %v663 = vunpack.c.l.b16 %v311
      %v664 = vunpack.c.l.b16 %v312
      %v665 = vpack.c.b16 %v634, %v633
      %v666 = vpack.c.b16 %v636, %v635
      %v667 = vpack.c.b16 %v638, %v637
      %v668 = vpack.c.b16 %v640, %v639
      %v669 = vpack.c.b16 %v642, %v641
      %v670 = vpack.c.b16 %v644, %v643
      %v671 = vpack.c.b16 %v646, %v645
      %v672 = vpack.c.b16 %v648, %v647
      %v673 = vpack.c.b16 %v650, %v649
      %v674 = vpack.c.b16 %v652, %v651
      %v675 = vpack.c.b16 %v654, %v653
      %v676 = vpack.c.b16 %v656, %v655
      %v677 = vpack.c.b16 %v658, %v657
      %v678 = vpack.c.b16 %v660, %v659
      %v679 = vpack.c.b16 %v662, %v661
      %v680 = vpack.c.b16 %v664, %v663
      %697 = vmatprep.subr.bf16.mxu0 0
      %698 = vmatpush1.bf16.msra.mxu0 %v665
      %699 = vmatprep.subr.bf16.mxu0 0
      %700 = vmatpush1.bf16.msra.mxu0 %v666
      %701 = vmatprep.subr.bf16.mxu0 0
      %702 = vmatpush1.bf16.msra.mxu0 %v667
      %703 = vmatprep.subr.bf16.mxu0 0
      %704 = vmatpush1.bf16.msra.mxu0 %v668
      %705 = vmatprep.subr.bf16.mxu0 0
      %706 = vmatpush1.bf16.msra.mxu0 %v669
      %707 = vmatprep.subr.bf16.mxu0 0
      %708 = vmatpush1.bf16.msra.mxu0 %v670
      %709 = vmatprep.subr.bf16.mxu0 0
      %710 = vmatpush1.bf16.msra.mxu0 %v671
      %711 = vmatprep.subr.bf16.mxu0 0
      %712 = vmatpush1.bf16.msra.mxu0 %v672
      %713 = vmatprep.subr.bf16.mxu0 0
      %714 = vmatpush1.bf16.msra.mxu0 %v673
      %715 = vmatprep.subr.bf16.mxu0 0
      %716 = vmatpush1.bf16.msra.mxu0 %v674
      %717 = vmatprep.subr.bf16.mxu0 0
      %718 = vmatpush1.bf16.msra.mxu0 %v675
      %719 = vmatprep.subr.bf16.mxu0 0
      %720 = vmatpush1.bf16.msra.mxu0 %v676
      %721 = vmatprep.subr.bf16.mxu0 0
      %722 = vmatpush1.bf16.msra.mxu0 %v677
      %723 = vmatprep.subr.bf16.mxu0 0
      %724 = vmatpush1.bf16.msra.mxu0 %v678
      %725 = vmatprep.subr.bf16.mxu0 0
      %726 = vmatpush1.bf16.msra.mxu0 %v679
      %727 = vmatprep.subr.bf16.mxu0 0
      %728 = vmatpush1.bf16.msra.mxu0 %v680
      %729 = vmatprep.mubr.bf16.mxu0 %v598
      %730 = vmatmul.mubr.bf16.gmra.mrb[0].mxu0 %v591
      %v731 = vpop.f32.mrb[0].mxu0
      %v732 = vadd.f32 %v571, %v731
      %v733 = vpop.f32.mrb[0].mxu0
      %v734 = vpop.f32.mrb[0].mxu0
      %v735 = vpop.f32.mrb[0].mxu0
      %736 = vdwg.mxu0
      %v739 = vunpack.c.l.s4 1983009808
      %v740 = vunpack.c.0.s8 %v739
      %v741 = vlaneseq
      %v742 = vshrl.u32 %v741, 7
      %v743 = vsub.s32 %v740, %v742
      %v744 = vrot.slane %v732, %v743
      %v745 = vcombine.high %v744, %v744
      %v748 = vpack.c.bf16 %v744, %v744
      %v749 = vpack.c.bf16 %v745, %v745
      %750 = vst [vmem:[%s202] sm:$0x1] %v748
      %751 = vst [vmem:[%s202 + $0x1] sm:$0x1] %v749
      %vm752 = vcmask 1043456
      %v753 = vsel %vm752, %v732, 0.0
      %v754 = vrot.slane %v753, 4
      %v755 = vadd.f32 %v753, %v754
      %v756 = vrot.slane %v755, 2
      %v757 = vadd.f32 %v755, %v756
      %v758 = vrot.slane %v757, 1
      %v759 = vadd.f32 %v757, %v758
      %v760 = vmul.f32 %v732, %v732
      %v761 = vsel %vm752, %v760, 0.0
      %v762 = vrot.slane %v761, 4
      %v763 = vadd.f32 %v761, %v762
      %v764 = vrot.slane %v763, 2
      %v765 = vadd.f32 %v763, %v764
      %v766 = vrot.slane %v765, 1
      %v767 = vadd.f32 %v765, %v766
      %vm768 = vcmask 1040384
      %v769 = vsel %vm768, %v759, %v767
      %770 = vst [vmem:[%s210] sm:$0x3] %v769
      %s771 = smul.u32 2, %s20
      %p772 = scmp.lt.s32.totalorder %s19, 1
      %s773 = scalar_select %p772, %s19, 1
      %p774 = scmp.lt.s32.totalorder %s771, 1
      %s775 = scalar_select %p774, %s771, 1
      %s776 = smul.addr %s773, 2
      %s777 = sadd.s32 %s775, %s776
      %s778 = scalar_lea.vmem %s2, %s777
      %p779 = scmp.lt.s32.totalorder %s19, 1
      %s780 = scalar_select %p779, %s19, 1
      %p781 = scmp.lt.s32.totalorder %s20, 0
      %s782 = scalar_select %p781, %s20, 0
      %s783 = sadd.s32 %s782, %s780
      %s784 = smul.addr %s783, 2
      %s785 = scalar_lea.vmem %s3, %s784
      // Predicated region
      $region29: #{patchgan_forward.9} parent=27 // pred_check
        %p786 = pneg %p94
      $region30: #{patchgan_forward.9} parent=27 // pred_check_branch
        %788 = sbr.rel (%p786) target = $region32
      $region31: #{patchgan_forward.9} parent=27 // pred_region
        %s789 = smul.u32 2, %s20
      $region32: #{patchgan_forward.9} parent=27 // pred_fallthru
        _
      // Predicated region
      $region33: #{patchgan_forward.9} parent=27 // pred_check
        %p790 = pneg %p122
      $region34: #{patchgan_forward.9} parent=27 // pred_check_branch
        %792 = sbr.rel (%p790) target = $region36
      $region35: #{patchgan_forward.9} parent=27 // pred_region
        _
      $region36: #{patchgan_forward.9} parent=27 // pred_fallthru
        _
    $region28: #{patchgan_forward.9} parent=5 // pred_fallthru
      _
    %p793 = scmp.le.s32.totalorder 2, %s10
    // Predicated region
    $region37: #{patchgan_forward.9} parent=5 // pred_check
      %p794 = pneg %p793
    $region38: #{patchgan_forward.9} parent=5 // pred_check_branch
      %796 = sbr.rel (%p794) target = $region40
    $region39: #{patchgan_forward.9} parent=5 // pred_region
      %s797 = ssub.s32 %s10, 2
      // Predicated region
      $region41: #{patchgan_forward.9} parent=39 // pred_check
        %p798 = pneg %p100
      $region42: #{patchgan_forward.9} parent=39 // pred_check_branch
        %800 = sbr.rel (%p798) target = $region44
      $region43: #{patchgan_forward.9} parent=39 // pred_region
        %s801 = smul.u32 2, %s22
        %p802 = scmp.lt.s32.totalorder %s21, 1
        %s803 = scalar_select %p802, %s21, 1
        %p804 = scmp.lt.s32.totalorder %s801, 1
        %s805 = scalar_select %p804, %s801, 1
        %s806 = smul.addr %s803, 2
        %s807 = sadd.s32 %s805, %s806
        %s808 = scalar_lea.vmem %s2, %s807
      $region44: #{patchgan_forward.9} parent=39 // pred_fallthru
        _
      // Predicated region
      $region45: #{patchgan_forward.9} parent=39 // pred_check
        %p809 = pneg %p128
      $region46: #{patchgan_forward.9} parent=39 // pred_check_branch
        %811 = sbr.rel (%p809) target = $region48
      $region47: #{patchgan_forward.9} parent=39 // pred_region
        %p812 = scmp.lt.s32.totalorder %s21, 1
        %s813 = scalar_select %p812, %s21, 1
        %p814 = scmp.lt.s32.totalorder %s22, 0
        %s815 = scalar_select %p814, %s22, 0
        %s816 = sadd.s32 %s815, %s813
        %s817 = smul.addr %s816, 2
        %s818 = scalar_lea.vmem %s3, %s817
      $region48: #{patchgan_forward.9} parent=39 // pred_fallthru
        _
    $region40: #{patchgan_forward.9} parent=5 // pred_fallthru
      _
  $region6: #{patchgan_forward.9} parent=0 // loop_footer
    %s14 = sadd.s32 1, %s10
  $region7: #{patchgan_forward.9} parent=0 // loop_footer_branch
    %9 = sbr.rel target = $region3
  $region8: #{patchgan_forward.9} parent=0 // loop_exit
    _

// kernel: patchgan_forward.11
$region0: #{patchgan_forward.11}
  #allocation0 [shape = 'u32[]', space=smem, size = 0x4, offset = 0x4, fixed_abs, tag = 'smem constant byte address 0x4 - core index']
  #allocation1 [shape = 'u32[144,128]{1,0:T(1,128)}', space=vmem, size = 0x12000, scoped, tag = 'internal scratch']
  %s0 = inlined_call_operand.vmem [shape: bf16[2,4,4,64], index: 0, kind: input, shape index: {}]
  %s1 = inlined_call_operand.vmem [shape: bf16[4,256,128], index: 1, kind: input, shape index: {}]
  %s2 = inlined_call_operand.vmem [shape: f32[1,128], index: 2, kind: input, shape index: {}]
  %s3 = inlined_call_operand.vmem [shape: f32[2,1,1,128], index: 3, kind: output, shape index: {}]
  %s4 = sld [smem:[#allocation0]]
  $region45: #{patchgan_forward.11} parent=0
    _
  %s6 = ssub.s32 1, %s4
  %s7 = scalar_select 0, %s6, %s4
  loop: start=0, step=1, limit=4
  $region2: #{patchgan_forward.11} parent=0 // loop_pre_header
    _
  $region3: #{patchgan_forward.11} parent=0 // loop_header
    %s9 = sphi 0, %s13
    %p10 = scmp.ge.s32.totalorder %s9, 4
    %s16 = sphi 0, %s28
    %s17 = sphi 0, %s24
    %s18 = sphi 0, %s16
    %s19 = sphi 0, %s17
    %s20 = sphi 0, %s18
    %s21 = sphi 0, %s19
    %s31 = sphi 0, %s33
    %s34 = sphi 0, %s31
    %s35 = sphi 0, %s34
    %s51 = sphi 0, %s35
    %s55 = sphi 0, %s55
    %s57 = sphi 0, %s55
    %s58 = sphi 0, %s57
    %s72 = sphi 0, %s58
    %s76 = sphi 0, %s76
    %s78 = sphi 0, %s76
    %s79 = sphi 0, %s78
    %s93 = sphi 0, %s79
    %s101 = sphi 0, %s103
    %s104 = sphi 0, %s101
    %s105 = sphi 0, %s104
    %s121 = sphi 0, %s105
  $region4: #{patchgan_forward.11} parent=0 // loop_header_branch
    %12 = sbr.rel (%p10) target = $region8
  $region5: #{patchgan_forward.11} parent=0 // loop_body
    %s14 = ssub.s32 %s9, 1
    %s15 = ssub.s32 %s9, 2
    %s22 = sadd.s32 1, %s17
    %p23 = scmp.ge.s32.totalorder %s22, 1
    %s24 = scalar_select %p23, 0, %s22
    %s25 = sadd.s32 1, %s16
    %s26 = scalar_select %p23, %s25, %s16
    %p27 = scmp.ge.s32.totalorder %s26, 2
    %s28 = scalar_select %p27, 0, %s26
    %s29 = ssub.s32 %s16, %s28
    %p30 = scmp.eq.s32.totalorder %s29, 0
    %s32 = sadd.s32 %s31, 1
    %s33 = scalar_select %p30, %s31, %s32
    %p36 = pneg %p30
    %p37 = scmp.eq.s32.totalorder %s9, 1
    %p38 = por %p36, %p37
    %p39 = scmp.ne.s32.totalorder %s31, %s34
    %p40 = scmp.eq.s32.totalorder %s9, 0
    %p41 = por %p39, %p40
    %p42 = scmp.ne.s32.totalorder %s31, %s34
    %p43 = scmp.eq.s32.totalorder %s14, 1
    %p44 = por %p42, %p43
    %p45 = scmp.ne.s32.totalorder %s34, %s35
    %p46 = scmp.eq.s32.totalorder %s14, 0
    %p47 = por %p45, %p46
    %p48 = scmp.ne.s32.totalorder %s34, %s35
    %p49 = scmp.eq.s32.totalorder %s15, 1
    %p50 = por %p48, %p49
    %p52 = scmp.ne.s32.totalorder %s35, %s51
    %p53 = scmp.eq.s32.totalorder %s15, 0
    %p54 = por %p52, %p53
    %s56 = sadd.s32 %s55, 1
    %p59 = scmp.eq.s32.totalorder %s9, 1
    %p60 = scmp.ne.s32.totalorder %s55, %s57
    %p61 = scmp.eq.s32.totalorder %s9, 0
    %p62 = por %p60, %p61
    %p63 = scmp.ne.s32.totalorder %s55, %s57
    %p64 = scmp.eq.s32.totalorder %s14, 1
    %p65 = por %p63, %p64
    %p66 = scmp.ne.s32.totalorder %s57, %s58
    %p67 = scmp.eq.s32.totalorder %s14, 0
    %p68 = por %p66, %p67
    %p69 = scmp.ne.s32.totalorder %s57, %s58
    %p70 = scmp.eq.s32.totalorder %s15, 1
    %p71 = por %p69, %p70
    %p73 = scmp.ne.s32.totalorder %s58, %s72
    %p74 = scmp.eq.s32.totalorder %s15, 0
    %p75 = por %p73, %p74
    %s77 = sadd.s32 %s76, 1
    %p80 = scmp.eq.s32.totalorder %s9, 1
    %p81 = scmp.ne.s32.totalorder %s76, %s78
    %p82 = scmp.eq.s32.totalorder %s9, 0
    %p83 = por %p81, %p82
    %p84 = scmp.ne.s32.totalorder %s76, %s78
    %p85 = scmp.eq.s32.totalorder %s14, 1
    %p86 = por %p84, %p85
    %p87 = scmp.ne.s32.totalorder %s78, %s79
    %p88 = scmp.eq.s32.totalorder %s14, 0
    %p89 = por %p87, %p88
    %p90 = scmp.ne.s32.totalorder %s78, %s79
    %p91 = scmp.eq.s32.totalorder %s15, 1
    %p92 = por %p90, %p91
    %p94 = scmp.ne.s32.totalorder %s79, %s93
    %p95 = scmp.eq.s32.totalorder %s15, 0
    %p96 = por %p94, %p95
    %s97 = ssub.s32 %s16, %s28
    %s98 = ssub.s32 %s17, %s24
    %s99 = sor.u32 %s97, %s98
    %p100 = scmp.eq.s32.totalorder %s99, 0
    %s102 = sadd.s32 %s101, 1
    %s103 = scalar_select %p100, %s101, %s102
    %p106 = pneg %p100
    %p107 = scmp.eq.s32.totalorder %s9, 1
    %p108 = por %p106, %p107
    %p109 = scmp.ne.s32.totalorder %s101, %s104
    %p110 = scmp.eq.s32.totalorder %s9, 0
    %p111 = por %p109, %p110
    %p112 = scmp.ne.s32.totalorder %s101, %s104
    %p113 = scmp.eq.s32.totalorder %s14, 1
    %p114 = por %p112, %p113
    %p115 = scmp.ne.s32.totalorder %s104, %s105
    %p116 = scmp.eq.s32.totalorder %s14, 0
    %p117 = por %p115, %p116
    %p118 = scmp.ne.s32.totalorder %s104, %s105
    %p119 = scmp.eq.s32.totalorder %s15, 1
    %p120 = por %p118, %p119
    %p122 = scmp.ne.s32.totalorder %s105, %s121
    %p123 = scmp.eq.s32.totalorder %s15, 0
    %p124 = por %p122, %p123
    %p125 = scmp.le.s32.totalorder 1, %s9
    %p126 = scmp.lt.s32.totalorder %s9, 3
    %p127 = pnand %p125, %p126
    %p128 = pneg %p127
    // Predicated region
    $region9: #{patchgan_forward.11} parent=5 // pred_check
      _
    $region10: #{patchgan_forward.11} parent=5 // pred_check_branch
      %130 = sbr.rel (%p127) target = $region12
    $region11: #{patchgan_forward.11} parent=5 // pred_region
      %s131 = ssub.s32 %s9, 1
      // Predicated region
      $region13: #{patchgan_forward.11} parent=11 // pred_check
        %p132 = pneg %p68
      $region14: #{patchgan_forward.11} parent=11 // pred_check_branch
        %134 = sbr.rel (%p132) target = $region16
      $region15: #{patchgan_forward.11} parent=11 // pred_region
        _
      $region16: #{patchgan_forward.11} parent=11 // pred_fallthru
        _
      // Predicated region
      $region17: #{patchgan_forward.11} parent=11 // pred_check
        %p135 = pneg %p89
      $region18: #{patchgan_forward.11} parent=11 // pred_check_branch
        %137 = sbr.rel (%p135) target = $region20
      $region19: #{patchgan_forward.11} parent=11 // pred_region
        _
      $region20: #{patchgan_forward.11} parent=11 // pred_fallthru
        _
    $region12: #{patchgan_forward.11} parent=5 // pred_fallthru
      _
    %p138 = scmp.lt.s32.totalorder %s9, 2
    // Predicated region
    $region21: #{patchgan_forward.11} parent=5 // pred_check
      %p139 = pneg %p138
    $region22: #{patchgan_forward.11} parent=5 // pred_check_branch
      %141 = sbr.rel (%p139) target = $region24
    $region23: #{patchgan_forward.11} parent=5 // pred_region
      // Predicated region
      $region25: #{patchgan_forward.11} parent=23 // pred_check
        %p142 = pneg %p41
      $region26: #{patchgan_forward.11} parent=23 // pred_check_branch
        %144 = sbr.rel (%p142) target = $region28
      $region27: #{patchgan_forward.11} parent=23 // pred_region
        %p145 = scmp.lt.s32.totalorder %s16, 1
        %s146 = scalar_select %p145, %s16, 1
        %s147 = smul.addr %s146, 4
        %s148 = smul.addr %s147, 2
        %s149 = scalar_lea.vmem %s0, %s148
      $region28: #{patchgan_forward.11} parent=23 // pred_fallthru
        _
    $region24: #{patchgan_forward.11} parent=5 // pred_fallthru
      _
    %p150 = scmp.le.s32.totalorder 1, %s9
    %p151 = scmp.lt.s32.totalorder %s9, 3
    %p152 = pnand %p150, %p151
    %p153 = pneg %p152
    // Predicated region
    $region29: #{patchgan_forward.11} parent=5 // pred_check
      _
    $region30: #{patchgan_forward.11} parent=5 // pred_check_branch
      %155 = sbr.rel (%p152) target = $region32
    $region31: #{patchgan_forward.11} parent=5 // pred_region
      %s156 = ssub.s32 %s9, 1
      %p157 = scmp.lt.s32.totalorder %s18, 1
      %s158 = scalar_select %p157, %s18, 1
      %s159 = smul.addr %s158, 4
      %s160 = smul.addr %s159, 2
      %s161 = scalar_lea.vmem %s0, %s160
      %p162 = pneg %p47
      %p163 = pneg %p44
      %p164 = pneg %p68
      %p165 = pneg %p65
      %p166 = pneg %p89
      %p167 = pneg %p86
      %p168 = pneg %p117
      %p169 = pneg %p114
      %p170 = scmp.lt.s32.totalorder %s18, 1
      %s171 = scalar_select %p170, %s18, 1
      %p172 = scmp.lt.s32.totalorder %s19, 0
      %s173 = scalar_select %p172, %s19, 0
      %s174 = sadd.s32 %s173, %s171
      %s175 = scalar_lea.vmem %s3, %s174
      %p176 = scmp.lt.s32.totalorder %s18, 1
      %s177 = scalar_select %p176, %s18, 1
      %s178 = smul.addr %s177, 4
      %s179 = smul.addr %s178, 2
      %s180 = scalar_lea.vmem %s0, %s179
      %p181 = scmp.lt.s32.totalorder %s18, 1
      %s182 = scalar_select %p181, %s18, 1
      %p183 = scmp.lt.s32.totalorder %s19, 0
      %s184 = scalar_select %p183, %s19, 0
      %s185 = sadd.s32 %s184, %s182
      %s186 = scalar_lea.vmem %s3, %s185
      %s188 = smul.addr %s19, 2
      %s189 = scalar_lea.vmem %s180, %s188
      %v190 = vld [vmem:[%s189] sm:$0x1]
      %v191 = vld [vmem:[%s189] sm:$0x2]
      %v194 = vunpack.c.l.s4 1983009808
      %v195 = vunpack.c.0.s8 %v194
      %v196 = vlaneseq
      %v197 = vshrl.u32 %v196, 7
      %v198 = vsub.s32 %v195, %v197
      %v199 = vrot.slane %v190, %v198
      %v201 = vshrl.u32 %v199, 16
      %203 = vrot.lane.b32.xlu0 %v201, 64
      %v204 = vpop.permute.xlu0 %203
      %v207 = vunpack.c.l.s4 1983009808
      %v208 = vunpack.c.0.s8 %v207
      %v209 = vlaneseq
      %v210 = vshrl.u32 %v209, 7
      %v211 = vsub.s32 %v208, %v210
      %v212 = vrot.slane %v191, %v211
      %v213 = vrot.slane %v212, 1
      %v215 = vshrl.u32 %v212, 16
      %v217 = vrot.slane %v215, 1
      %218 = vrot.lane.b32.xlu0 %v217, 64
      %v219 = vpop.permute.xlu0 %218
      %vm220 = vcmask 523264
      %v223 = vsel %vm220, %v190, %v204
      %v227 = vsel %vm220, %v213, %v219
      %v229 = vld [vmem:[%s1] sm:$0xf]
      %v230 = vld [vmem:[%s1 + $0x4] sm:$0xf]
      %v231 = vld [vmem:[%s1 + $0x8] sm:$0xf]
      %v232 = vld [vmem:[%s1 + $0xc] sm:$0xf]
      %v233 = vld [vmem:[%s1 + $0x10] sm:$0xf]
      %v234 = vld [vmem:[%s1 + $0x14] sm:$0xf]
      %v235 = vld [vmem:[%s1 + $0x18] sm:$0xf]
      %v236 = vld [vmem:[%s1 + $0x1c] sm:$0xf]
      %v237 = vld [vmem:[%s1 + $0x20] sm:$0xf]
      %v238 = vld [vmem:[%s1 + $0x24] sm:$0xf]
      %v239 = vld [vmem:[%s1 + $0x28] sm:$0xf]
      %v240 = vld [vmem:[%s1 + $0x2c] sm:$0xf]
      %v241 = vld [vmem:[%s1 + $0x30] sm:$0xf]
      %v242 = vld [vmem:[%s1 + $0x34] sm:$0xf]
      %v243 = vld [vmem:[%s1 + $0x38] sm:$0xf]
      %v244 = vld [vmem:[%s1 + $0x3c] sm:$0xf]
      %v245 = vld [vmem:[%s1 + $0x40] sm:$0xf]
      %v246 = vld [vmem:[%s1 + $0x44] sm:$0xf]
      %v247 = vld [vmem:[%s1 + $0x48] sm:$0xf]
      %v248 = vld [vmem:[%s1 + $0x4c] sm:$0xf]
      %v249 = vld [vmem:[%s1 + $0x50] sm:$0xf]
      %v250 = vld [vmem:[%s1 + $0x54] sm:$0xf]
      %v251 = vld [vmem:[%s1 + $0x58] sm:$0xf]
      %v252 = vld [vmem:[%s1 + $0x5c] sm:$0xf]
      %v253 = vld [vmem:[%s1 + $0x60] sm:$0xf]
      %v254 = vld [vmem:[%s1 + $0x64] sm:$0xf]
      %v255 = vld [vmem:[%s1 + $0x68] sm:$0xf]
      %v256 = vld [vmem:[%s1 + $0x6c] sm:$0xf]
      %v257 = vld [vmem:[%s1 + $0x70] sm:$0xf]
      %v258 = vld [vmem:[%s1 + $0x74] sm:$0xf]
      %v259 = vld [vmem:[%s1 + $0x78] sm:$0xf]
      %v260 = vld [vmem:[%s1 + $0x7c] sm:$0xf]
      %s261 = sadd.s32 %s19, 1
      %s262 = smul.addr %s261, 2
      %s263 = scalar_lea.vmem %s180, %s262
      %v264 = vld [vmem:[%s263] sm:$0x1]
      %v265 = vld [vmem:[%s263] sm:$0x2]
      %v268 = vunpack.c.l.s4 1983009808
      %v269 = vunpack.c.0.s8 %v268
      %v270 = vlaneseq
      %v271 = vshrl.u32 %v270, 7
      %v272 = vsub.s32 %v269, %v271
      %v273 = vrot.slane %v264, %v272
      %v275 = vshrl.u32 %v273, 16
      %277 = vrot.lane.b32.xlu0 %v275, 64
      %v278 = vpop.permute.xlu0 %277
      %v281 = vunpack.c.l.s4 1983009808
      %v282 = vunpack.c.0.s8 %v281
      %v283 = vlaneseq
      %v284 = vshrl.u32 %v283, 7
      %v285 = vsub.s32 %v282, %v284
      %v286 = vrot.slane %v265, %v285
      %v287 = vrot.slane %v286, 1
      %v289 = vshrl.u32 %v286, 16
      %v291 = vrot.slane %v289, 1
      %292 = vrot.lane.b32.xlu0 %v291, 64
      %v293 = vpop.permute.xlu0 %292
      %v296 = vsel %vm220, %v264, %v278
      %v300 = vsel %vm220, %v287, %v293
      %s302 = scalar_lea.vmem %s1, 128
      %v303 = vld [vmem:[%s302] sm:$0xf]
      %v304 = vld [vmem:[%s302 + $0x4] sm:$0xf]
      %v305 = vld [vmem:[%s302 + $0x8] sm:$0xf]
      %v306 = vld [vmem:[%s302 + $0xc] sm:$0xf]
      %v307 = vld [vmem:[%s302 + $0x10] sm:$0xf]
      %v308 = vld [vmem:[%s302 + $0x14] sm:$0xf]
      %v309 = vld [vmem:[%s302 + $0x18] sm:$0xf]
      %v310 = vld [vmem:[%s302 + $0x1c] sm:$0xf]
      %v311 = vld [vmem:[%s302 + $0x20] sm:$0xf]
      %v312 = vld [vmem:[%s302 + $0x24] sm:$0xf]
      %v313 = vld [vmem:[%s302 + $0x28] sm:$0xf]
      %v314 = vld [vmem:[%s302 + $0x2c] sm:$0xf]
      %v315 = vld [vmem:[%s302 + $0x30] sm:$0xf]
      %v316 = vld [vmem:[%s302 + $0x34] sm:$0xf]
      %v317 = vld [vmem:[%s302 + $0x38] sm:$0xf]
      %v318 = vld [vmem:[%s302 + $0x3c] sm:$0xf]
      %v319 = vld [vmem:[%s302 + $0x40] sm:$0xf]
      %v320 = vld [vmem:[%s302 + $0x44] sm:$0xf]
      %v321 = vld [vmem:[%s302 + $0x48] sm:$0xf]
      %v322 = vld [vmem:[%s302 + $0x4c] sm:$0xf]
      %v323 = vld [vmem:[%s302 + $0x50] sm:$0xf]
      %v324 = vld [vmem:[%s302 + $0x54] sm:$0xf]
      %v325 = vld [vmem:[%s302 + $0x58] sm:$0xf]
      %v326 = vld [vmem:[%s302 + $0x5c] sm:$0xf]
      %v327 = vld [vmem:[%s302 + $0x60] sm:$0xf]
      %v328 = vld [vmem:[%s302 + $0x64] sm:$0xf]
      %v329 = vld [vmem:[%s302 + $0x68] sm:$0xf]
      %v330 = vld [vmem:[%s302 + $0x6c] sm:$0xf]
      %v331 = vld [vmem:[%s302 + $0x70] sm:$0xf]
      %v332 = vld [vmem:[%s302 + $0x74] sm:$0xf]
      %v333 = vld [vmem:[%s302 + $0x78] sm:$0xf]
      %v334 = vld [vmem:[%s302 + $0x7c] sm:$0xf]
      %v367 = vunpack.c.l.b16 %v303
      %v368 = vunpack.c.l.b16 %v304
      %v369 = vunpack.c.l.b16 %v305
      %v370 = vunpack.c.l.b16 %v306
      %v371 = vunpack.c.l.b16 %v307
      %v372 = vunpack.c.l.b16 %v308
      %v373 = vunpack.c.l.b16 %v309
      %v374 = vunpack.c.l.b16 %v310
      %v375 = vunpack.c.l.b16 %v311
      %v376 = vunpack.c.l.b16 %v312
      %v377 = vunpack.c.l.b16 %v313
      %v378 = vunpack.c.l.b16 %v314
      %v379 = vunpack.c.l.b16 %v315
      %v380 = vunpack.c.l.b16 %v316
      %v381 = vunpack.c.l.b16 %v317
      %v382 = vunpack.c.l.b16 %v318
      %v383 = vunpack.c.l.b16 %v319
      %v384 = vunpack.c.l.b16 %v320
      %v385 = vunpack.c.l.b16 %v321
      %v386 = vunpack.c.l.b16 %v322
      %v387 = vunpack.c.l.b16 %v323
      %v388 = vunpack.c.l.b16 %v324
      %v389 = vunpack.c.l.b16 %v325
      %v390 = vunpack.c.l.b16 %v326
      %v391 = vunpack.c.l.b16 %v327
      %v392 = vunpack.c.l.b16 %v328
      %v393 = vunpack.c.l.b16 %v329
      %v394 = vunpack.c.l.b16 %v330
      %v395 = vunpack.c.l.b16 %v331
      %v396 = vunpack.c.l.b16 %v332
      %v397 = vunpack.c.l.b16 %v333
      %v398 = vunpack.c.l.b16 %v334
      %v399 = vpack.c.b16 %v368, %v367
      %v400 = vpack.c.b16 %v370, %v369
      %v401 = vpack.c.b16 %v372, %v371
      %v402 = vpack.c.b16 %v374, %v373
      %v403 = vpack.c.b16 %v376, %v375
      %v404 = vpack.c.b16 %v378, %v377
      %v405 = vpack.c.b16 %v380, %v379
      %v406 = vpack.c.b16 %v382, %v381
      %v407 = vpack.c.b16 %v384, %v383
      %v408 = vpack.c.b16 %v386, %v385
      %v409 = vpack.c.b16 %v388, %v387
      %v410 = vpack.c.b16 %v390, %v389
      %v411 = vpack.c.b16 %v392, %v391
      %v412 = vpack.c.b16 %v394, %v393
      %v413 = vpack.c.b16 %v396, %v395
      %v414 = vpack.c.b16 %v398, %v397
      %431 = vmatprep.subr.bf16.mxu0 0
      %432 = vmatpush1.bf16.msra.mxu0 %v399
      %433 = vmatprep.subr.bf16.mxu0 0
      %434 = vmatpush1.bf16.msra.mxu0 %v400
      %435 = vmatprep.subr.bf16.mxu0 0
      %436 = vmatpush1.bf16.msra.mxu0 %v401
      %437 = vmatprep.subr.bf16.mxu0 0
      %438 = vmatpush1.bf16.msra.mxu0 %v402
      %439 = vmatprep.subr.bf16.mxu0 0
      %440 = vmatpush1.bf16.msra.mxu0 %v403
      %441 = vmatprep.subr.bf16.mxu0 0
      %442 = vmatpush1.bf16.msra.mxu0 %v404
      %443 = vmatprep.subr.bf16.mxu0 0
      %444 = vmatpush1.bf16.msra.mxu0 %v405
      %445 = vmatprep.subr.bf16.mxu0 0
      %446 = vmatpush1.bf16.msra.mxu0 %v406
      %447 = vmatprep.subr.bf16.mxu0 0
      %448 = vmatpush1.bf16.msra.mxu0 %v407
      %449 = vmatprep.subr.bf16.mxu0 0
      %450 = vmatpush1.bf16.msra.mxu0 %v408
      %451 = vmatprep.subr.bf16.mxu0 0
      %452 = vmatpush1.bf16.msra.mxu0 %v409
      %453 = vmatprep.subr.bf16.mxu0 0
      %454 = vmatpush1.bf16.msra.mxu0 %v410
      %455 = vmatprep.subr.bf16.mxu0 0
      %456 = vmatpush1.bf16.msra.mxu0 %v411
      %457 = vmatprep.subr.bf16.mxu0 0
      %458 = vmatpush1.bf16.msra.mxu0 %v412
      %459 = vmatprep.subr.bf16.mxu0 0
      %460 = vmatpush1.bf16.msra.mxu0 %v413
      %461 = vmatprep.subr.bf16.mxu0 0
      %462 = vmatpush1.bf16.msra.mxu0 %v414
      %463 = vmatprep.mubr.bf16.mxu0 %v300
      %464 = vmatmul.mubr.bf16.gmra.mrb[0].mxu0 %v296
      %v465 = vpop.f32.mrb[0].mxu0
      %v466 = vadd.f32 0.0, %v465
      %v467 = vpop.f32.mrb[0].mxu0
      %v468 = vpop.f32.mrb[0].mxu0
      %v469 = vpop.f32.mrb[0].mxu0
      %470 = vdwg.mxu0
      %v503 = vunpack.c.l.b16 %v229
      %v504 = vunpack.c.l.b16 %v230
      %v505 = vunpack.c.l.b16 %v231
      %v506 = vunpack.c.l.b16 %v232
      %v507 = vunpack.c.l.b16 %v233
      %v508 = vunpack.c.l.b16 %v234
      %v509 = vunpack.c.l.b16 %v235
      %v510 = vunpack.c.l.b16 %v236
      %v511 = vunpack.c.l.b16 %v237
      %v512 = vunpack.c.l.b16 %v238
      %v513 = vunpack.c.l.b16 %v239
      %v514 = vunpack.c.l.b16 %v240
      %v515 = vunpack.c.l.b16 %v241
      %v516 = vunpack.c.l.b16 %v242
      %v517 = vunpack.c.l.b16 %v243
      %v518 = vunpack.c.l.b16 %v244
      %v519 = vunpack.c.l.b16 %v245
      %v520 = vunpack.c.l.b16 %v246
      %v521 = vunpack.c.l.b16 %v247
      %v522 = vunpack.c.l.b16 %v248
      %v523 = vunpack.c.l.b16 %v249
      %v524 = vunpack.c.l.b16 %v250
      %v525 = vunpack.c.l.b16 %v251
      %v526 = vunpack.c.l.b16 %v252
      %v527 = vunpack.c.l.b16 %v253
      %v528 = vunpack.c.l.b16 %v254
      %v529 = vunpack.c.l.b16 %v255
      %v530 = vunpack.c.l.b16 %v256
      %v531 = vunpack.c.l.b16 %v257
      %v532 = vunpack.c.l.b16 %v258
      %v533 = vunpack.c.l.b16 %v259
      %v534 = vunpack.c.l.b16 %v260
      %v535 = vpack.c.b16 %v504, %v503
      %v536 = vpack.c.b16 %v506, %v505
      %v537 = vpack.c.b16 %v508, %v507
      %v538 = vpack.c.b16 %v510, %v509
      %v539 = vpack.c.b16 %v512, %v511
      %v540 = vpack.c.b16 %v514, %v513
      %v541 = vpack.c.b16 %v516, %v515
      %v542 = vpack.c.b16 %v518, %v517
      %v543 = vpack.c.b16 %v520, %v519
      %v544 = vpack.c.b16 %v522, %v521
      %v545 = vpack.c.b16 %v524, %v523
      %v546 = vpack.c.b16 %v526, %v525
      %v547 = vpack.c.b16 %v528, %v527
      %v548 = vpack.c.b16 %v530, %v529
      %v549 = vpack.c.b16 %v532, %v531
      %v550 = vpack.c.b16 %v534, %v533
      %567 = vmatprep.subr.bf16.mxu0 0
      %568 = vmatpush1.bf16.msra.mxu0 %v535
      %569 = vmatprep.subr.bf16.mxu0 0
      %570 = vmatpush1.bf16.msra.mxu0 %v536
      %571 = vmatprep.subr.bf16.mxu0 0
      %572 = vmatpush1.bf16.msra.mxu0 %v537
      %573 = vmatprep.subr.bf16.mxu0 0
      %574 = vmatpush1.bf16.msra.mxu0 %v538
      %575 = vmatprep.subr.bf16.mxu0 0
      %576 = vmatpush1.bf16.msra.mxu0 %v539
      %577 = vmatprep.subr.bf16.mxu0 0
      %578 = vmatpush1.bf16.msra.mxu0 %v540
      %579 = vmatprep.subr.bf16.mxu0 0
      %580 = vmatpush1.bf16.msra.mxu0 %v541
      %581 = vmatprep.subr.bf16.mxu0 0
      %582 = vmatpush1.bf16.msra.mxu0 %v542
      %583 = vmatprep.subr.bf16.mxu0 0
      %584 = vmatpush1.bf16.msra.mxu0 %v543
      %585 = vmatprep.subr.bf16.mxu0 0
      %586 = vmatpush1.bf16.msra.mxu0 %v544
      %587 = vmatprep.subr.bf16.mxu0 0
      %588 = vmatpush1.bf16.msra.mxu0 %v545
      %589 = vmatprep.subr.bf16.mxu0 0
      %590 = vmatpush1.bf16.msra.mxu0 %v546
      %591 = vmatprep.subr.bf16.mxu0 0
      %592 = vmatpush1.bf16.msra.mxu0 %v547
      %593 = vmatprep.subr.bf16.mxu0 0
      %594 = vmatpush1.bf16.msra.mxu0 %v548
      %595 = vmatprep.subr.bf16.mxu0 0
      %596 = vmatpush1.bf16.msra.mxu0 %v549
      %597 = vmatprep.subr.bf16.mxu0 0
      %598 = vmatpush1.bf16.msra.mxu0 %v550
      %599 = vmatprep.mubr.bf16.mxu0 %v227
      %600 = vmatmul.mubr.bf16.gmra.mrb[0].mxu0 %v223
      %v601 = vpop.f32.mrb[0].mxu0
      %v602 = vadd.f32 %v466, %v601
      %v603 = vpop.f32.mrb[0].mxu0
      %v604 = vpop.f32.mrb[0].mxu0
      %v605 = vpop.f32.mrb[0].mxu0
      %606 = vdwg.mxu0
      %s607 = sadd.s32 %s19, 2
      %s608 = smul.addr %s607, 2
      %s609 = scalar_lea.vmem %s180, %s608
      %v610 = vld [vmem:[%s609] sm:$0x1]
      %v611 = vld [vmem:[%s609] sm:$0x2]
      %v614 = vunpack.c.l.s4 1983009808
      %v615 = vunpack.c.0.s8 %v614
      %v616 = vlaneseq
      %v617 = vshrl.u32 %v616, 7
      %v618 = vsub.s32 %v615, %v617
      %v619 = vrot.slane %v610, %v618
      %v621 = vshrl.u32 %v619, 16
      %623 = vrot.lane.b32.xlu0 %v621, 64
      %v624 = vpop.permute.xlu0 %623
      %v627 = vunpack.c.l.s4 1983009808
      %v628 = vunpack.c.0.s8 %v627
      %v629 = vlaneseq
      %v630 = vshrl.u32 %v629, 7
      %v631 = vsub.s32 %v628, %v630
      %v632 = vrot.slane %v611, %v631
      %v633 = vrot.slane %v632, 1
      %v635 = vshrl.u32 %v632, 16
      %v637 = vrot.slane %v635, 1
      %638 = vrot.lane.b32.xlu0 %v637, 64
      %v639 = vpop.permute.xlu0 %638
      %v642 = vsel %vm220, %v610, %v624
      %v646 = vsel %vm220, %v633, %v639
      %s648 = scalar_lea.vmem %s1, 256
      %v649 = vld [vmem:[%s648] sm:$0xf]
      %v650 = vld [vmem:[%s648 + $0x4] sm:$0xf]
      %v651 = vld [vmem:[%s648 + $0x8] sm:$0xf]
      %v652 = vld [vmem:[%s648 + $0xc] sm:$0xf]
      %v653 = vld [vmem:[%s648 + $0x10] sm:$0xf]
      %v654 = vld [vmem:[%s648 + $0x14] sm:$0xf]
      %v655 = vld [vmem:[%s648 + $0x18] sm:$0xf]
      %v656 = vld [vmem:[%s648 + $0x1c] sm:$0xf]
      %v657 = vld [vmem:[%s648 + $0x20] sm:$0xf]
      %v658 = vld [vmem:[%s648 + $0x24] sm:$0xf]
      %v659 = vld [vmem:[%s648 + $0x28] sm:$0xf]
      %v660 = vld [vmem:[%s648 + $0x2c] sm:$0xf]
      %v661 = vld [vmem:[%s648 + $0x30] sm:$0xf]
      %v662 = vld [vmem:[%s648 + $0x34] sm:$0xf]
      %v663 = vld [vmem:[%s648 + $0x38] sm:$0xf]
      %v664 = vld [vmem:[%s648 + $0x3c] sm:$0xf]
      %v665 = vld [vmem:[%s648 + $0x40] sm:$0xf]
      %v666 = vld [vmem:[%s648 + $0x44] sm:$0xf]
      %v667 = vld [vmem:[%s648 + $0x48] sm:$0xf]
      %v668 = vld [vmem:[%s648 + $0x4c] sm:$0xf]
      %v669 = vld [vmem:[%s648 + $0x50] sm:$0xf]
      %v670 = vld [vmem:[%s648 + $0x54] sm:$0xf]
      %v671 = vld [vmem:[%s648 + $0x58] sm:$0xf]
      %v672 = vld [vmem:[%s648 + $0x5c] sm:$0xf]
      %v673 = vld [vmem:[%s648 + $0x60] sm:$0xf]
      %v674 = vld [vmem:[%s648 + $0x64] sm:$0xf]
      %v675 = vld [vmem:[%s648 + $0x68] sm:$0xf]
      %v676 = vld [vmem:[%s648 + $0x6c] sm:$0xf]
      %v677 = vld [vmem:[%s648 + $0x70] sm:$0xf]
      %v678 = vld [vmem:[%s648 + $0x74] sm:$0xf]
      %v679 = vld [vmem:[%s648 + $0x78] sm:$0xf]
      %v680 = vld [vmem:[%s648 + $0x7c] sm:$0xf]
      %v713 = vunpack.c.l.b16 %v649
      %v714 = vunpack.c.l.b16 %v650
      %v715 = vunpack.c.l.b16 %v651
      %v716 = vunpack.c.l.b16 %v652
      %v717 = vunpack.c.l.b16 %v653
      %v718 = vunpack.c.l.b16 %v654
      %v719 = vunpack.c.l.b16 %v655
      %v720 = vunpack.c.l.b16 %v656
      %v721 = vunpack.c.l.b16 %v657
      %v722 = vunpack.c.l.b16 %v658
      %v723 = vunpack.c.l.b16 %v659
      %v724 = vunpack.c.l.b16 %v660
      %v725 = vunpack.c.l.b16 %v661
      %v726 = vunpack.c.l.b16 %v662
      %v727 = vunpack.c.l.b16 %v663
      %v728 = vunpack.c.l.b16 %v664
      %v729 = vunpack.c.l.b16 %v665
      %v730 = vunpack.c.l.b16 %v666
      %v731 = vunpack.c.l.b16 %v667
      %v732 = vunpack.c.l.b16 %v668
      %v733 = vunpack.c.l.b16 %v669
      %v734 = vunpack.c.l.b16 %v670
      %v735 = vunpack.c.l.b16 %v671
      %v736 = vunpack.c.l.b16 %v672
      %v737 = vunpack.c.l.b16 %v673
      %v738 = vunpack.c.l.b16 %v674
      %v739 = vunpack.c.l.b16 %v675
      %v740 = vunpack.c.l.b16 %v676
      %v741 = vunpack.c.l.b16 %v677
      %v742 = vunpack.c.l.b16 %v678
      %v743 = vunpack.c.l.b16 %v679
      %v744 = vunpack.c.l.b16 %v680
      %v745 = vpack.c.b16 %v714, %v713
      %v746 = vpack.c.b16 %v716, %v715
      %v747 = vpack.c.b16 %v718, %v717
      %v748 = vpack.c.b16 %v720, %v719
      %v749 = vpack.c.b16 %v722, %v721
      %v750 = vpack.c.b16 %v724, %v723
      %v751 = vpack.c.b16 %v726, %v725
      %v752 = vpack.c.b16 %v728, %v727
      %v753 = vpack.c.b16 %v730, %v729
      %v754 = vpack.c.b16 %v732, %v731
      %v755 = vpack.c.b16 %v734, %v733
      %v756 = vpack.c.b16 %v736, %v735
      %v757 = vpack.c.b16 %v738, %v737
      %v758 = vpack.c.b16 %v740, %v739
      %v759 = vpack.c.b16 %v742, %v741
      %v760 = vpack.c.b16 %v744, %v743
      %777 = vmatprep.subr.bf16.mxu0 0
      %778 = vmatpush1.bf16.msra.mxu0 %v745
      %779 = vmatprep.subr.bf16.mxu0 0
      %780 = vmatpush1.bf16.msra.mxu0 %v746
      %781 = vmatprep.subr.bf16.mxu0 0
      %782 = vmatpush1.bf16.msra.mxu0 %v747
      %783 = vmatprep.subr.bf16.mxu0 0
      %784 = vmatpush1.bf16.msra.mxu0 %v748
      %785 = vmatprep.subr.bf16.mxu0 0
      %786 = vmatpush1.bf16.msra.mxu0 %v749
      %787 = vmatprep.subr.bf16.mxu0 0
      %788 = vmatpush1.bf16.msra.mxu0 %v750
      %789 = vmatprep.subr.bf16.mxu0 0
      %790 = vmatpush1.bf16.msra.mxu0 %v751
      %791 = vmatprep.subr.bf16.mxu0 0
      %792 = vmatpush1.bf16.msra.mxu0 %v752
      %793 = vmatprep.subr.bf16.mxu0 0
      %794 = vmatpush1.bf16.msra.mxu0 %v753
      %795 = vmatprep.subr.bf16.mxu0 0
      %796 = vmatpush1.bf16.msra.mxu0 %v754
      %797 = vmatprep.subr.bf16.mxu0 0
      %798 = vmatpush1.bf16.msra.mxu0 %v755
      %799 = vmatprep.subr.bf16.mxu0 0
      %800 = vmatpush1.bf16.msra.mxu0 %v756
      %801 = vmatprep.subr.bf16.mxu0 0
      %802 = vmatpush1.bf16.msra.mxu0 %v757
      %803 = vmatprep.subr.bf16.mxu0 0
      %804 = vmatpush1.bf16.msra.mxu0 %v758
      %805 = vmatprep.subr.bf16.mxu0 0
      %806 = vmatpush1.bf16.msra.mxu0 %v759
      %807 = vmatprep.subr.bf16.mxu0 0
      %808 = vmatpush1.bf16.msra.mxu0 %v760
      %809 = vmatprep.mubr.bf16.mxu0 %v646
      %810 = vmatmul.mubr.bf16.gmra.mrb[0].mxu0 %v642
      %v811 = vpop.f32.mrb[0].mxu0
      %v812 = vadd.f32 0.0, %v811
      %v813 = vpop.f32.mrb[0].mxu0
      %v814 = vpop.f32.mrb[0].mxu0
      %v815 = vpop.f32.mrb[0].mxu0
      %816 = vdwg.mxu0
      %v817 = vadd.f32 %v602, %v812
      %s818 = sadd.s32 %s19, 3
      %s819 = smul.addr %s818, 2
      %s820 = scalar_lea.vmem %s180, %s819
      %v821 = vld [vmem:[%s820] sm:$0x1]
      %v822 = vld [vmem:[%s820] sm:$0x2]
      %v825 = vunpack.c.l.s4 1983009808
      %v826 = vunpack.c.0.s8 %v825
      %v827 = vlaneseq
      %v828 = vshrl.u32 %v827, 7
      %v829 = vsub.s32 %v826, %v828
      %v830 = vrot.slane %v821, %v829
      %v832 = vshrl.u32 %v830, 16
      %834 = vrot.lane.b32.xlu0 %v832, 64
      %v835 = vpop.permute.xlu0 %834
      %v838 = vunpack.c.l.s4 1983009808
      %v839 = vunpack.c.0.s8 %v838
      %v840 = vlaneseq
      %v841 = vshrl.u32 %v840, 7
      %v842 = vsub.s32 %v839, %v841
      %v843 = vrot.slane %v822, %v842
      %v844 = vrot.slane %v843, 1
      %v846 = vshrl.u32 %v843, 16
      %v848 = vrot.slane %v846, 1
      %849 = vrot.lane.b32.xlu0 %v848, 64
      %v850 = vpop.permute.xlu0 %849
      %v853 = vsel %vm220, %v821, %v835
      %v857 = vsel %vm220, %v844, %v850
      %s859 = scalar_lea.vmem %s1, 384
      %v860 = vld [vmem:[%s859] sm:$0xf]
      %v861 = vld [vmem:[%s859 + $0x4] sm:$0xf]
      %v862 = vld [vmem:[%s859 + $0x8] sm:$0xf]
      %v863 = vld [vmem:[%s859 + $0xc] sm:$0xf]
      %v864 = vld [vmem:[%s859 + $0x10] sm:$0xf]
      %v865 = vld [vmem:[%s859 + $0x14] sm:$0xf]
      %v866 = vld [vmem:[%s859 + $0x18] sm:$0xf]
      %v867 = vld [vmem:[%s859 + $0x1c] sm:$0xf]
      %v868 = vld [vmem:[%s859 + $0x20] sm:$0xf]
      %v869 = vld [vmem:[%s859 + $0x24] sm:$0xf]
      %v870 = vld [vmem:[%s859 + $0x28] sm:$0xf]
      %v871 = vld [vmem:[%s859 + $0x2c] sm:$0xf]
      %v872 = vld [vmem:[%s859 + $0x30] sm:$0xf]
      %v873 = vld [vmem:[%s859 + $0x34] sm:$0xf]
      %v874 = vld [vmem:[%s859 + $0x38] sm:$0xf]
      %v875 = vld [vmem:[%s859 + $0x3c] sm:$0xf]
      %v876 = vld [vmem:[%s859 + $0x40] sm:$0xf]
      %v877 = vld [vmem:[%s859 + $0x44] sm:$0xf]
      %v878 = vld [vmem:[%s859 + $0x48] sm:$0xf]
      %v879 = vld [vmem:[%s859 + $0x4c] sm:$0xf]
      %v880 = vld [vmem:[%s859 + $0x50] sm:$0xf]
      %v881 = vld [vmem:[%s859 + $0x54] sm:$0xf]
      %v882 = vld [vmem:[%s859 + $0x58] sm:$0xf]
      %v883 = vld [vmem:[%s859 + $0x5c] sm:$0xf]
      %v884 = vld [vmem:[%s859 + $0x60] sm:$0xf]
      %v885 = vld [vmem:[%s859 + $0x64] sm:$0xf]
      %v886 = vld [vmem:[%s859 + $0x68] sm:$0xf]
      %v887 = vld [vmem:[%s859 + $0x6c] sm:$0xf]
      %v888 = vld [vmem:[%s859 + $0x70] sm:$0xf]
      %v889 = vld [vmem:[%s859 + $0x74] sm:$0xf]
      %v890 = vld [vmem:[%s859 + $0x78] sm:$0xf]
      %v891 = vld [vmem:[%s859 + $0x7c] sm:$0xf]
      %v924 = vunpack.c.l.b16 %v860
      %v925 = vunpack.c.l.b16 %v861
      %v926 = vunpack.c.l.b16 %v862
      %v927 = vunpack.c.l.b16 %v863
      %v928 = vunpack.c.l.b16 %v864
      %v929 = vunpack.c.l.b16 %v865
      %v930 = vunpack.c.l.b16 %v866
      %v931 = vunpack.c.l.b16 %v867
      %v932 = vunpack.c.l.b16 %v868
      %v933 = vunpack.c.l.b16 %v869
      %v934 = vunpack.c.l.b16 %v870
      %v935 = vunpack.c.l.b16 %v871
      %v936 = vunpack.c.l.b16 %v872
      %v937 = vunpack.c.l.b16 %v873
      %v938 = vunpack.c.l.b16 %v874
      %v939 = vunpack.c.l.b16 %v875
      %v940 = vunpack.c.l.b16 %v876
      %v941 = vunpack.c.l.b16 %v877
      %v942 = vunpack.c.l.b16 %v878
      %v943 = vunpack.c.l.b16 %v879
      %v944 = vunpack.c.l.b16 %v880
      %v945 = vunpack.c.l.b16 %v881
      %v946 = vunpack.c.l.b16 %v882
      %v947 = vunpack.c.l.b16 %v883
      %v948 = vunpack.c.l.b16 %v884
      %v949 = vunpack.c.l.b16 %v885
      %v950 = vunpack.c.l.b16 %v886
      %v951 = vunpack.c.l.b16 %v887
      %v952 = vunpack.c.l.b16 %v888
      %v953 = vunpack.c.l.b16 %v889
      %v954 = vunpack.c.l.b16 %v890
      %v955 = vunpack.c.l.b16 %v891
      %v956 = vpack.c.b16 %v925, %v924
      %v957 = vpack.c.b16 %v927, %v926
      %v958 = vpack.c.b16 %v929, %v928
      %v959 = vpack.c.b16 %v931, %v930
      %v960 = vpack.c.b16 %v933, %v932
      %v961 = vpack.c.b16 %v935, %v934
      %v962 = vpack.c.b16 %v937, %v936
      %v963 = vpack.c.b16 %v939, %v938
      %v964 = vpack.c.b16 %v941, %v940
      %v965 = vpack.c.b16 %v943, %v942
      %v966 = vpack.c.b16 %v945, %v944
      %v967 = vpack.c.b16 %v947, %v946
      %v968 = vpack.c.b16 %v949, %v948
      %v969 = vpack.c.b16 %v951, %v950
      %v970 = vpack.c.b16 %v953, %v952
      %v971 = vpack.c.b16 %v955, %v954
      %988 = vmatprep.subr.bf16.mxu0 0
      %989 = vmatpush1.bf16.msra.mxu0 %v956
      %990 = vmatprep.subr.bf16.mxu0 0
      %991 = vmatpush1.bf16.msra.mxu0 %v957
      %992 = vmatprep.subr.bf16.mxu0 0
      %993 = vmatpush1.bf16.msra.mxu0 %v958
      %994 = vmatprep.subr.bf16.mxu0 0
      %995 = vmatpush1.bf16.msra.mxu0 %v959
      %996 = vmatprep.subr.bf16.mxu0 0
      %997 = vmatpush1.bf16.msra.mxu0 %v960
      %998 = vmatprep.subr.bf16.mxu0 0
      %999 = vmatpush1.bf16.msra.mxu0 %v961
      %1000 = vmatprep.subr.bf16.mxu0 0
      %1001 = vmatpush1.bf16.msra.mxu0 %v962
      %1002 = vmatprep.subr.bf16.mxu0 0
      %1003 = vmatpush1.bf16.msra.mxu0 %v963
      %1004 = vmatprep.subr.bf16.mxu0 0
      %1005 = vmatpush1.bf16.msra.mxu0 %v964
      %1006 = vmatprep.subr.bf16.mxu0 0
      %1007 = vmatpush1.bf16.msra.mxu0 %v965
      %1008 = vmatprep.subr.bf16.mxu0 0
      %1009 = vmatpush1.bf16.msra.mxu0 %v966
      %1010 = vmatprep.subr.bf16.mxu0 0
      %1011 = vmatpush1.bf16.msra.mxu0 %v967
      %1012 = vmatprep.subr.bf16.mxu0 0
      %1013 = vmatpush1.bf16.msra.mxu0 %v968
      %1014 = vmatprep.subr.bf16.mxu0 0
      %1015 = vmatpush1.bf16.msra.mxu0 %v969
      %1016 = vmatprep.subr.bf16.mxu0 0
      %1017 = vmatpush1.bf16.msra.mxu0 %v970
      %1018 = vmatprep.subr.bf16.mxu0 0
      %1019 = vmatpush1.bf16.msra.mxu0 %v971
      %1020 = vmatprep.mubr.bf16.mxu0 %v857
      %1021 = vmatmul.mubr.bf16.gmra.mrb[0].mxu0 %v853
      %v1022 = vpop.f32.mrb[0].mxu0
      %v1023 = vadd.f32 0.0, %v1022
      %v1024 = vpop.f32.mrb[0].mxu0
      %v1025 = vpop.f32.mrb[0].mxu0
      %v1026 = vpop.f32.mrb[0].mxu0
      %1027 = vdwg.mxu0
      %v1028 = vadd.f32 %v817, %v1023
      %v1029 = vld [vmem:[%s2] sm:$0x1]
      %v1030 = vadd.f32 %v1028, %v1029
      %1031 = vst [vmem:[%s186] sm:$0x1] %v1030
      %p1032 = scmp.lt.s32.totalorder %s18, 1
      %s1033 = scalar_select %p1032, %s18, 1
      %p1034 = scmp.lt.s32.totalorder %s19, 0
      %s1035 = scalar_select %p1034, %s19, 0
      %s1036 = sadd.s32 %s1035, %s1033
      %s1037 = scalar_lea.vmem %s3, %s1036
      // Predicated region
      $region33: #{patchgan_forward.11} parent=31 // pred_check
        %p1038 = pneg %p114
      $region34: #{patchgan_forward.11} parent=31 // pred_check_branch
        %1040 = sbr.rel (%p1038) target = $region36
      $region35: #{patchgan_forward.11} parent=31 // pred_region
        _
      $region36: #{patchgan_forward.11} parent=31 // pred_fallthru
        _
    $region32: #{patchgan_forward.11} parent=5 // pred_fallthru
      _
    %p1041 = scmp.le.s32.totalorder 2, %s9
    // Predicated region
    $region37: #{patchgan_forward.11} parent=5 // pred_check
      %p1042 = pneg %p1041
    $region38: #{patchgan_forward.11} parent=5 // pred_check_branch
      %1044 = sbr.rel (%p1042) target = $region40
    $region39: #{patchgan_forward.11} parent=5 // pred_region
      %s1045 = ssub.s32 %s9, 2
      // Predicated region
      $region41: #{patchgan_forward.11} parent=39 // pred_check
        %p1046 = pneg %p120
      $region42: #{patchgan_forward.11} parent=39 // pred_check_branch
        %1048 = sbr.rel (%p1046) target = $region44
      $region43: #{patchgan_forward.11} parent=39 // pred_region
        %p1049 = scmp.lt.s32.totalorder %s20, 1
        %s1050 = scalar_select %p1049, %s20, 1
        %p1051 = scmp.lt.s32.totalorder %s21, 0
        %s1052 = scalar_select %p1051, %s21, 0
        %s1053 = sadd.s32 %s1052, %s1050
        %s1054 = scalar_lea.vmem %s3, %s1053
      $region44: #{patchgan_forward.11} parent=39 // pred_fallthru
        _
    $region40: #{patchgan_forward.11} parent=5 // pred_fallthru
      _
  $region6: #{patchgan_forward.11} parent=0 // loop_footer
    %s13 = sadd.s32 1, %s9
  $region7: #{patchgan_forward.11} parent=0 // loop_footer_branch
    %8 = sbr.rel target = $region3
  $region8: #{patchgan_forward.11} parent=0 // loop_exit
    _

</llo_original>
